<compile_context>
chip_gen: v5e
topology: v5e:2x2
jax: 0.10.0
libtpu: 0.0.40
codegen_flags: <defaults>
</compile_context>

<pallas_src>
import math
from functools import partial

import jax
import jax.numpy as jnp
from jax.experimental import pallas as pl
from jax.experimental.pallas import tpu as pltpu

_VMEM_LIMIT = 32 * 1024 * 1024  # explicit scoped-VMEM budget; safe on v5e/v6e/v7x
_LN_EPS = 1e-5                  # torch.nn.LayerNorm default


def _layer_norm(y, g, b, eps):
    mu = jnp.mean(y, axis=-1, keepdims=True)
    var = jnp.mean((y - mu) ** 2, axis=-1, keepdims=True)
    return (y - mu) * jax.lax.rsqrt(var + eps) * g + b


# ---------------------------------------------------------------------------
# Single fused kernel: posenc + nlayers encoder layers + fused decoder heads.
# No grid — everything (weights + activations) lives in VMEM for one call.
# ---------------------------------------------------------------------------
def fused_transformer_kernel(
        src_ref, mask_ref, pe_ref,
        wqkv_ref, bqkv_ref, wo_ref, bo_ref,
        g1_ref, bn1_ref, w1_ref, fb1_ref, w2_ref, fb2_ref, g2_ref, bn2_ref,
        wdec_ref, bdec_ref,
        xenc_ref, dec_ref,
        *, B, S, E, nhead, nlayers, eps, scale):
    dh = E // nhead
    inv_sqrt_dh = 1.0 / math.sqrt(dh)

    # --- scale + positional encoding (f32) ---
    x = src_ref[...].astype(jnp.float32) * scale + pe_ref[...]      # (B, S, E)
    x = x.reshape(B * S, E)                                          # flat rows
    mask = mask_ref[...].astype(jnp.float32)                         # (S, S)

    # --- encoder layers (static loop over stacked weights) ---
    for l in range(nlayers):
        # packed QKV projection: bf16 operands, f32 MXU accumulation
        qkv = jnp.dot(x.astype(jnp.bfloat16), wqkv_ref[l],
                      preferred_element_type=jnp.float32) + bqkv_ref[l]  # (B*S, 3E)
        q, k, v = qkv[:, :E], qkv[:, E:2 * E], qkv[:, 2 * E:]

        # per-head masked softmax attention, batched over B via einsum
        head_ctx = []
        for h in range(nhead):                                       # nhead small
            sl = slice(h * dh, (h + 1) * dh)
            qh = q[:, sl].reshape(B, S, dh).astype(jnp.bfloat16)
            kh = k[:, sl].reshape(B, S, dh).astype(jnp.bfloat16)
            vh = v[:, sl].reshape(B, S, dh).astype(jnp.bfloat16)
            s = jnp.einsum('bqd,bkd->bqk', qh, kh,
                           preferred_element_type=jnp.float32) * inv_sqrt_dh
            s = s + mask                                              # additive mask
            s = s - jnp.max(s, axis=-1, keepdims=True)
            p = jnp.exp(s)
            p = p / jnp.sum(p, axis=-1, keepdims=True)                # exact divide
            ctx_h = jnp.einsum('bqk,bkd->bqd', p.astype(jnp.bfloat16), vh,
                               preferred_element_type=jnp.float32)    # (B, S, dh)
            head_ctx.append(ctx_h.reshape(B * S, dh))
        ctx = jnp.concatenate(head_ctx, axis=-1)                      # (B*S, E)

        # ONE full-depth output projection (K = E)
        attn = jnp.dot(ctx.astype(jnp.bfloat16), wo_ref[l],
                       preferred_element_type=jnp.float32) + bo_ref[l]

        # residual + LayerNorm 1 (f32)
        y = _layer_norm(x + attn, g1_ref[l], bn1_ref[l], eps)

        # feed-forward: relu(y @ W1 + b1) @ W2 + b2
        h1 = jnp.maximum(
            jnp.dot(y.astype(jnp.bfloat16), w1_ref[l],
                    preferred_element_type=jnp.float32) + fb1_ref[l], 0.0)
        f = jnp.dot(h1.astype(jnp.bfloat16), w2_ref[l],
                    preferred_element_type=jnp.float32) + fb2_ref[l]

        # residual + LayerNorm 2 (f32)
        x = _layer_norm(y + f, g2_ref[l], bn2_ref[l], eps)

    # --- outputs: encoder activations + fused, lane-padded decoder heads ---
    xenc_ref[...] = x.reshape(B, S, E)
    dec_ref[...] = jnp.dot(x.astype(jnp.bfloat16), wdec_ref[...],
                           preferred_element_type=jnp.float32) + bdec_ref[...]


def transformer_forward(src, src_mask, params, *, nhead, eps=_LN_EPS):
    B, S, E = src.shape
    assert E % nhead == 0
    nlayers = params["wqkv"].shape[0]
    Fp = params["w_dec"].shape[1]
    pe = params["pe"][None, :S, :]                    # (1, S, E) broadcast slab

    kernel = partial(fused_transformer_kernel, B=B, S=S, E=E, nhead=nhead,
                     nlayers=nlayers, eps=eps, scale=math.sqrt(E))
    xenc, dec = pl.pallas_call(
        kernel,
        out_shape=(jax.ShapeDtypeStruct((B, S, E), jnp.float32),
                   jax.ShapeDtypeStruct((B * S, Fp), jnp.float32)),
        compiler_params=pltpu.CompilerParams(vmem_limit_bytes=_VMEM_LIMIT),
    )(src, src_mask, pe,
      params["wqkv"], params["bqkv"], params["wo"], params["bo"],
      params["ln1_g"], params["ln1_b"], params["w1"], params["b1"],
      params["w2"], params["b2"], params["ln2_g"], params["ln2_b"],
      params["w_dec"], params["b_dec"])

    npoi, ncat = params["num_poi"], params["num_cat"]
    out_poi = dec[:, :npoi].reshape(B, S, npoi)
    out_time = dec[:, npoi:npoi + 1].reshape(B, S, 1)
    out_cat = dec[:, npoi + 1:npoi + 1 + ncat].reshape(B, S, ncat)
    return out_poi, out_time, out_cat, xenc


# ---------------------------------------------------------------------------
# Parameters / buffers (stacked per-layer, fused + lane-padded decoder heads)
# ---------------------------------------------------------------------------
def make_positional_encoding(max_len, d_model):
    position = jnp.arange(max_len, dtype=jnp.float32)[:, None]
    div_term = jnp.exp(jnp.arange(0, d_model, 2, dtype=jnp.float32)
                       * (-math.log(10000.0) / d_model))
    pe = jnp.zeros((max_len, d_model), dtype=jnp.float32)
    pe = pe.at[:, 0::2].set(jnp.sin(position * div_term))
    pe = pe.at[:, 1::2].set(jnp.cos(position * div_term))
    return pe


def make_causal_mask(sz):
    # generate_square_subsequent_mask: 0 on/below the diagonal, -inf above.
    # -1e9 underflows to exactly 0 after exp(); identical post-softmax.
    i = jnp.arange(sz)[:, None]
    j = jnp.arange(sz)[None, :]
    return jnp.where(j > i, jnp.float32(-1e9), jnp.float32(0.0))


def _uniform(key, shape, bound):
    return jax.random.uniform(key, shape, jnp.float32, minval=-bound, maxval=bound)


def init_params(key, num_poi, num_cat, embed_size, nhid, nlayers, max_len=100):
    E = embed_size
    params = {"pe": make_positional_encoding(max_len, E),
              "num_poi": num_poi, "num_cat": num_cat}
    names = ("wqkv", "bqkv", "wo", "bo", "ln1_g", "ln1_b",
             "w1", "b1", "w2", "b2", "ln2_g", "ln2_b")
    per = {n: [] for n in names}
    k = key
    for _ in range(nlayers):
        k, k1, k2, k3, k4, k5, k6, k7 = jax.random.split(k, 8)
        per["wqkv"].append(_uniform(k1, (E, 3 * E), 1.0 / math.sqrt(E)).astype(jnp.bfloat16))
        per["bqkv"].append(jnp.zeros((1, 3 * E), jnp.float32))
        per["wo"].append(_uniform(k2, (E, E), 1.0 / math.sqrt(E)).astype(jnp.bfloat16))
        per["bo"].append(_uniform(k3, (1, E), 1.0 / math.sqrt(E)))
        per["ln1_g"].append(jnp.ones((1, E), jnp.float32))
        per["ln1_b"].append(jnp.zeros((1, E), jnp.float32))
        per["w1"].append(_uniform(k4, (E, nhid), 1.0 / math.sqrt(E)).astype(jnp.bfloat16))
        per["b1"].append(_uniform(k5, (1, nhid), 1.0 / math.sqrt(E)))
        per["w2"].append(_uniform(k6, (nhid, E), 1.0 / math.sqrt(nhid)).astype(jnp.bfloat16))
        per["b2"].append(_uniform(k7, (1, E), 1.0 / math.sqrt(nhid)))
        per["ln2_g"].append(jnp.ones((1, E), jnp.float32))
        per["ln2_b"].append(jnp.zeros((1, E), jnp.float32))
    for n in names:
        params[n] = jnp.stack(per[n])                        # (L, ...)

    # decoder heads: concatenate poi|time|cat along the output dim and pad to a
    # multiple of 128 ONCE at init (lane-dense stores, no runtime pad ops).
    k, kpoi, kt1, kt2, kc1, kc2 = jax.random.split(k, 6)
    w_poi = _uniform(kpoi, (E, num_poi), 0.1)                # init_weights(): U(-0.1,0.1)
    b_poi = jnp.zeros((num_poi,), jnp.float32)               # init_weights(): zero bias
    w_time = _uniform(kt1, (E, 1), 1.0 / math.sqrt(E))
    b_time = _uniform(kt2, (1,), 1.0 / math.sqrt(E))
    w_cat = _uniform(kc1, (E, num_cat), 1.0 / math.sqrt(E))
    b_cat = _uniform(kc2, (num_cat,), 1.0 / math.sqrt(E))
    F = num_poi + 1 + num_cat
    Fp = ((F + 127) // 128) * 128
    w_dec = jnp.concatenate([w_poi, w_time, w_cat], axis=1)
    b_dec = jnp.concatenate([b_poi, b_time, b_cat])[None, :]
    params["w_dec"] = jnp.pad(w_dec, ((0, 0), (0, Fp - F))).astype(jnp.bfloat16)
    params["b_dec"] = jnp.pad(b_dec, ((0, 0), (0, Fp - F)))
    return params


# ---------------------------------------------------------------------------
# Pure-JAX reference (mirrors the bf16-operand / f32-accumulation casts)
# ---------------------------------------------------------------------------
def _bdot(a, b):
    return jnp.dot(a.astype(jnp.bfloat16), b.astype(jnp.bfloat16),
                   preferred_element_type=jnp.float32)


def reference_forward(src, mask, params, *, nhead, eps=_LN_EPS):
    B, S, E = src.shape
    L = params["wqkv"].shape[0]
    dh = E // nhead
    inv_sqrt_dh = 1.0 / math.sqrt(dh)
    x = src * math.sqrt(E) + params["pe"][None, :S, :]
    x = x.reshape(B * S, E)
    for l in range(L):
        qkv = _bdot(x, params["wqkv"][l]) + params["bqkv"][l]
        q, k, v = qkv[:, :E], qkv[:, E:2 * E], qkv[:, 2 * E:]
        heads = []
        for h in range(nhead):
            sl = slice(h * dh, (h + 1) * dh)
            qh = q[:, sl].reshape(B, S, dh).astype(jnp.bfloat16)
            kh = k[:, sl].reshape(B, S, dh).astype(jnp.bfloat16)
            vh = v[:, sl].reshape(B, S, dh).astype(jnp.bfloat16)
            s = jnp.einsum('bqd,bkd->bqk', qh, kh,
                           preferred_element_type=jnp.float32) * inv_sqrt_dh + mask
            s = s - jnp.max(s, axis=-1, keepdims=True)
            p = jnp.exp(s)
            p = p / jnp.sum(p, axis=-1, keepdims=True)
            ctx_h = jnp.einsum('bqk,bkd->bqd', p.astype(jnp.bfloat16), vh,
                               preferred_element_type=jnp.float32)
            heads.append(ctx_h.reshape(B * S, dh))
        ctx = jnp.concatenate(heads, axis=-1)
        attn = _bdot(ctx, params["wo"][l]) + params["bo"][l]
        y = _layer_norm(x + attn, params["ln1_g"][l], params["ln1_b"][l], eps)
        h1 = jnp.maximum(_bdot(y, params["w1"][l]) + params["b1"][l], 0.0)
        f = _bdot(h1, params["w2"][l]) + params["b2"][l]
        x = _layer_norm(y + f, params["ln2_g"][l], params["ln2_b"][l], eps)
    dec = _bdot(x, params["w_dec"]) + params["b_dec"]
    npoi, ncat = params["num_poi"], params["num_cat"]
    out_poi = dec[:, :npoi].reshape(B, S, npoi)
    out_time = dec[:, npoi:npoi + 1].reshape(B, S, 1)
    out_cat = dec[:, npoi + 1:npoi + 1 + ncat].reshape(B, S, ncat)
    return out_poi, out_time, out_cat, x.reshape(B, S, E)


# ---------------------------------------------------------------------------
if __name__ == "__main__":
    key = jax.random.PRNGKey(0)
    k_src, k_p = jax.random.split(key)

    # Small, lane-friendly demo sizes consistent with the module.
    B, S = 2, 16
    embed_size, nhead, nhid, nlayers = 128, 2, 256, 2
    num_poi, num_cat = 300, 40            # exercises the fused/lane-padded decoder

    src = jax.random.normal(k_src, (B, S, embed_size), jnp.float32)
    src_mask = make_causal_mask(S)
    params = init_params(k_p, num_poi, num_cat, embed_size, nhid, nlayers)

    out_poi, out_time, out_cat, x_enc = transformer_forward(
        src, src_mask, params, nhead=nhead)
    jax.block_until_ready((out_poi, out_time, out_cat, x_enc))

    ref_poi, ref_time, ref_cat, ref_x = reference_forward(
        src, src_mask, params, nhead=nhead)

    assert out_poi.shape == (B, S, num_poi)
    assert out_time.shape == (B, S, 1)
    assert out_cat.shape == (B, S, num_cat)
    assert x_enc.shape == (B, S, embed_size)
    for got, ref in ((out_poi, ref_poi), (out_time, ref_time),
                     (out_cat, ref_cat), (x_enc, ref_x)):
        err = float(jnp.max(jnp.abs(got - ref)))
        assert jnp.allclose(got, ref, atol=3e-2, rtol=3e-2), f"max abs err {err}"

    print("KERNEL_OK")
</pallas_src>

<mosaic_0001>
module attributes {stable_mosaic.version = 11 : i64} {
  func.func @fused_transformer_kernel(%arg0: memref<2x16x128xf32, #tpu.memory_space<vmem>>, %arg1: memref<16x16xf32, #tpu.memory_space<vmem>>, %arg2: memref<1x16x128xf32, #tpu.memory_space<vmem>>, %arg3: memref<2x128x384xbf16, #tpu.memory_space<vmem>>, %arg4: memref<2x1x384xf32, #tpu.memory_space<vmem>>, %arg5: memref<2x128x128xbf16, #tpu.memory_space<vmem>>, %arg6: memref<2x1x128xf32, #tpu.memory_space<vmem>>, %arg7: memref<2x1x128xf32, #tpu.memory_space<vmem>>, %arg8: memref<2x1x128xf32, #tpu.memory_space<vmem>>, %arg9: memref<2x128x256xbf16, #tpu.memory_space<vmem>>, %arg10: memref<2x1x256xf32, #tpu.memory_space<vmem>>, %arg11: memref<2x256x128xbf16, #tpu.memory_space<vmem>>, %arg12: memref<2x1x128xf32, #tpu.memory_space<vmem>>, %arg13: memref<2x1x128xf32, #tpu.memory_space<vmem>>, %arg14: memref<2x1x128xf32, #tpu.memory_space<vmem>>, %arg15: memref<128x384xbf16, #tpu.memory_space<vmem>>, %arg16: memref<1x384xf32, #tpu.memory_space<vmem>>, %arg17: memref<2x16x128xf32, #tpu.memory_space<vmem>>, %arg18: memref<32x384xf32, #tpu.memory_space<vmem>>) attributes {dimension_semantics = [], scalar_prefetch = 0 : i64, scratch_operands = 0 : i64, tpu.core_type = #tpu.core_type<tc>} {
    %c0 = arith.constant 0 : index
    %c0_0 = arith.constant 0 : index
    %c0_1 = arith.constant 0 : index
    %0 = vector.load %arg0[%c0, %c0_0, %c0_1] : memref<2x16x128xf32, #tpu.memory_space<vmem>>, vector<2x16x128xf32>
    %cst = arith.constant 11.3137083 : f32
    %1 = vector.broadcast %cst : f32 to vector<2x16x128xf32>
    %2 = arith.mulf %0, %1 : vector<2x16x128xf32>
    %c0_2 = arith.constant 0 : index
    %c0_3 = arith.constant 0 : index
    %c0_4 = arith.constant 0 : index
    %3 = vector.load %arg2[%c0_2, %c0_3, %c0_4] : memref<1x16x128xf32, #tpu.memory_space<vmem>>, vector<1x16x128xf32>
    %4 = vector.broadcast %3 : vector<1x16x128xf32> to vector<2x16x128xf32>
    %5 = arith.addf %2, %4 : vector<2x16x128xf32>
    %6 = vector.shape_cast %5 : vector<2x16x128xf32> to vector<32x128xf32>
    %c0_5 = arith.constant 0 : index
    %c0_6 = arith.constant 0 : index
    %7 = vector.load %arg1[%c0_5, %c0_6] : memref<16x16xf32, #tpu.memory_space<vmem>>, vector<16x16xf32>
    %8 = arith.truncf %6 : vector<32x128xf32> to vector<32x128xbf16>
    %c0_7 = arith.constant 0 : index
    %c0_8 = arith.constant 0 : index
    %c0_9 = arith.constant 0 : index
    %9 = vector.load %arg3[%c0_7, %c0_8, %c0_9] : memref<2x128x384xbf16, #tpu.memory_space<vmem>>, vector<1x128x384xbf16>
    %10 = vector.shape_cast %9 : vector<1x128x384xbf16> to vector<128x384xbf16>
    %cst_10 = arith.constant dense<0.000000e+00> : vector<32x384xf32>
    %11 = tpu.matmul %8, %10, %cst_10 {dimension_numbers = #tpu.dot_dimension_numbers<[1], [0], [0], [1], [0, 0, 1, 1], [], []>} : vector<32x128xbf16>, vector<128x384xbf16>, vector<32x384xf32> -> vector<32x384xf32>
    %c0_11 = arith.constant 0 : index
    %c0_12 = arith.constant 0 : index
    %c0_13 = arith.constant 0 : index
    %12 = vector.load %arg4[%c0_11, %c0_12, %c0_13] : memref<2x1x384xf32, #tpu.memory_space<vmem>>, vector<1x1x384xf32>
    %13 = vector.shape_cast %12 : vector<1x1x384xf32> to vector<1x384xf32>
    %14 = vector.broadcast %13 : vector<1x384xf32> to vector<32x384xf32>
    %15 = arith.addf %11, %14 : vector<32x384xf32>
    %16 = vector.extract_strided_slice %15 {offsets = [0, 0], sizes = [32, 128], strides = [1, 1]} : vector<32x384xf32> to vector<32x128xf32>
    %17 = vector.extract_strided_slice %15 {offsets = [0, 128], sizes = [32, 128], strides = [1, 1]} : vector<32x384xf32> to vector<32x128xf32>
    %18 = vector.extract_strided_slice %15 {offsets = [0, 256], sizes = [32, 128], strides = [1, 1]} : vector<32x384xf32> to vector<32x128xf32>
    %19 = vector.extract_strided_slice %16 {offsets = [0, 0], sizes = [32, 64], strides = [1, 1]} : vector<32x128xf32> to vector<32x64xf32>
    %20 = vector.shape_cast %19 : vector<32x64xf32> to vector<2x16x64xf32>
    %21 = arith.truncf %20 : vector<2x16x64xf32> to vector<2x16x64xbf16>
    %22 = vector.extract_strided_slice %17 {offsets = [0, 0], sizes = [32, 64], strides = [1, 1]} : vector<32x128xf32> to vector<32x64xf32>
    %23 = vector.shape_cast %22 : vector<32x64xf32> to vector<2x16x64xf32>
    %24 = arith.truncf %23 : vector<2x16x64xf32> to vector<2x16x64xbf16>
    %25 = vector.extract_strided_slice %18 {offsets = [0, 0], sizes = [32, 64], strides = [1, 1]} : vector<32x128xf32> to vector<32x64xf32>
    %26 = vector.shape_cast %25 : vector<32x64xf32> to vector<2x16x64xf32>
    %27 = arith.truncf %26 : vector<2x16x64xf32> to vector<2x16x64xbf16>
    "tpu.trace_start"() <{level = 10 : i32, message = "bqd,bkd->bqk"}> : () -> ()
    %cst_14 = arith.constant dense<0.000000e+00> : vector<2x16x16xf32>
    %28 = tpu.matmul %21, %24, %cst_14 {dimension_numbers = #tpu.dot_dimension_numbers<[2], [2], [1], [1], [0, 0, 0, 1, 1, 1], [0], [0]>} : vector<2x16x64xbf16>, vector<2x16x64xbf16>, vector<2x16x16xf32> -> vector<2x16x16xf32>
    "tpu.trace_stop"() : () -> ()
    %cst_15 = arith.constant 1.250000e-01 : f32
    %29 = vector.broadcast %cst_15 : f32 to vector<2x16x16xf32>
    %30 = arith.mulf %28, %29 : vector<2x16x16xf32>
    %31 = vector.shape_cast %7 : vector<16x16xf32> to vector<1x16x16xf32>
    %32 = vector.broadcast %31 : vector<1x16x16xf32> to vector<2x16x16xf32>
    %33 = arith.addf %30, %32 : vector<2x16x16xf32>
    %cst_16 = arith.constant dense<0xFF800000> : vector<2x16xf32>
    %34 = vector.multi_reduction <maximumf>, %33, %cst_16 [2] : vector<2x16x16xf32> to vector<2x16xf32>
    %35 = vector.shape_cast %34 : vector<2x16xf32> to vector<2x16x1xf32>
    %36 = vector.broadcast %35 : vector<2x16x1xf32> to vector<2x16x16xf32>
    %37 = arith.subf %33, %36 : vector<2x16x16xf32>
    %38 = math.exp %37 : vector<2x16x16xf32>
    %cst_17 = arith.constant dense<0.000000e+00> : vector<2x16xf32>
    %39 = vector.multi_reduction <add>, %38, %cst_17 [2] : vector<2x16x16xf32> to vector<2x16xf32>
    %40 = vector.shape_cast %39 : vector<2x16xf32> to vector<2x16x1xf32>
    %41 = vector.broadcast %40 : vector<2x16x1xf32> to vector<2x16x16xf32>
    %42 = arith.divf %38, %41 : vector<2x16x16xf32>
    %43 = arith.truncf %42 : vector<2x16x16xf32> to vector<2x16x16xbf16>
    "tpu.trace_start"() <{level = 10 : i32, message = "bqk,bkd->bqd"}> : () -> ()
    %cst_18 = arith.constant dense<0.000000e+00> : vector<2x16x64xf32>
    %44 = tpu.matmul %43, %27, %cst_18 {dimension_numbers = #tpu.dot_dimension_numbers<[2], [1], [1], [2], [0, 0, 0, 1, 1, 2], [0], [0]>} : vector<2x16x16xbf16>, vector<2x16x64xbf16>, vector<2x16x64xf32> -> vector<2x16x64xf32>
    "tpu.trace_stop"() : () -> ()
    %45 = vector.shape_cast %44 : vector<2x16x64xf32> to vector<32x64xf32>
    %46 = vector.extract_strided_slice %16 {offsets = [0, 64], sizes = [32, 64], strides = [1, 1]} : vector<32x128xf32> to vector<32x64xf32>
    %47 = vector.shape_cast %46 : vector<32x64xf32> to vector<2x16x64xf32>
    %48 = arith.truncf %47 : vector<2x16x64xf32> to vector<2x16x64xbf16>
    %49 = vector.extract_strided_slice %17 {offsets = [0, 64], sizes = [32, 64], strides = [1, 1]} : vector<32x128xf32> to vector<32x64xf32>
    %50 = vector.shape_cast %49 : vector<32x64xf32> to vector<2x16x64xf32>
    %51 = arith.truncf %50 : vector<2x16x64xf32> to vector<2x16x64xbf16>
    %52 = vector.extract_strided_slice %18 {offsets = [0, 64], sizes = [32, 64], strides = [1, 1]} : vector<32x128xf32> to vector<32x64xf32>
    %53 = vector.shape_cast %52 : vector<32x64xf32> to vector<2x16x64xf32>
    %54 = arith.truncf %53 : vector<2x16x64xf32> to vector<2x16x64xbf16>
    "tpu.trace_start"() <{level = 10 : i32, message = "bqd,bkd->bqk"}> : () -> ()
    %cst_19 = arith.constant dense<0.000000e+00> : vector<2x16x16xf32>
    %55 = tpu.matmul %48, %51, %cst_19 {dimension_numbers = #tpu.dot_dimension_numbers<[2], [2], [1], [1], [0, 0, 0, 1, 1, 1], [0], [0]>} : vector<2x16x64xbf16>, vector<2x16x64xbf16>, vector<2x16x16xf32> -> vector<2x16x16xf32>
    "tpu.trace_stop"() : () -> ()
    %cst_20 = arith.constant 1.250000e-01 : f32
    %56 = vector.broadcast %cst_20 : f32 to vector<2x16x16xf32>
    %57 = arith.mulf %55, %56 : vector<2x16x16xf32>
    %58 = vector.shape_cast %7 : vector<16x16xf32> to vector<1x16x16xf32>
    %59 = vector.broadcast %58 : vector<1x16x16xf32> to vector<2x16x16xf32>
    %60 = arith.addf %57, %59 : vector<2x16x16xf32>
    %cst_21 = arith.constant dense<0xFF800000> : vector<2x16xf32>
    %61 = vector.multi_reduction <maximumf>, %60, %cst_21 [2] : vector<2x16x16xf32> to vector<2x16xf32>
    %62 = vector.shape_cast %61 : vector<2x16xf32> to vector<2x16x1xf32>
    %63 = vector.broadcast %62 : vector<2x16x1xf32> to vector<2x16x16xf32>
    %64 = arith.subf %60, %63 : vector<2x16x16xf32>
    %65 = math.exp %64 : vector<2x16x16xf32>
    %cst_22 = arith.constant dense<0.000000e+00> : vector<2x16xf32>
    %66 = vector.multi_reduction <add>, %65, %cst_22 [2] : vector<2x16x16xf32> to vector<2x16xf32>
    %67 = vector.shape_cast %66 : vector<2x16xf32> to vector<2x16x1xf32>
    %68 = vector.broadcast %67 : vector<2x16x1xf32> to vector<2x16x16xf32>
    %69 = arith.divf %65, %68 : vector<2x16x16xf32>
    %70 = arith.truncf %69 : vector<2x16x16xf32> to vector<2x16x16xbf16>
    "tpu.trace_start"() <{level = 10 : i32, message = "bqk,bkd->bqd"}> : () -> ()
    %cst_23 = arith.constant dense<0.000000e+00> : vector<2x16x64xf32>
    %71 = tpu.matmul %70, %54, %cst_23 {dimension_numbers = #tpu.dot_dimension_numbers<[2], [1], [1], [2], [0, 0, 0, 1, 1, 2], [0], [0]>} : vector<2x16x16xbf16>, vector<2x16x64xbf16>, vector<2x16x64xf32> -> vector<2x16x64xf32>
    "tpu.trace_stop"() : () -> ()
    %72 = vector.shape_cast %71 : vector<2x16x64xf32> to vector<32x64xf32>
    %73 = tpu.concatenate %45, %72 in 1 : vector<32x64xf32>, vector<32x64xf32> -> vector<32x128xf32>
    %74 = arith.truncf %73 : vector<32x128xf32> to vector<32x128xbf16>
    %c0_24 = arith.constant 0 : index
    %c0_25 = arith.constant 0 : index
    %c0_26 = arith.constant 0 : index
    %75 = vector.load %arg5[%c0_24, %c0_25, %c0_26] : memref<2x128x128xbf16, #tpu.memory_space<vmem>>, vector<1x128x128xbf16>
    %76 = vector.shape_cast %75 : vector<1x128x128xbf16> to vector<128x128xbf16>
    %cst_27 = arith.constant dense<0.000000e+00> : vector<32x128xf32>
    %77 = tpu.matmul %74, %76, %cst_27 {dimension_numbers = #tpu.dot_dimension_numbers<[1], [0], [0], [1], [0, 0, 1, 1], [], []>} : vector<32x128xbf16>, vector<128x128xbf16>, vector<32x128xf32> -> vector<32x128xf32>
    %c0_28 = arith.constant 0 : index
    %c0_29 = arith.constant 0 : index
    %c0_30 = arith.constant 0 : index
    %78 = vector.load %arg6[%c0_28, %c0_29, %c0_30] : memref<2x1x128xf32, #tpu.memory_space<vmem>>, vector<1x1x128xf32>
    %79 = vector.shape_cast %78 : vector<1x1x128xf32> to vector<1x128xf32>
    %80 = vector.broadcast %79 : vector<1x128xf32> to vector<32x128xf32>
    %81 = arith.addf %77, %80 : vector<32x128xf32>
    %82 = arith.addf %6, %81 : vector<32x128xf32>
    %c0_31 = arith.constant 0 : index
    %c0_32 = arith.constant 0 : index
    %c0_33 = arith.constant 0 : index
    %83 = vector.load %arg7[%c0_31, %c0_32, %c0_33] : memref<2x1x128xf32, #tpu.memory_space<vmem>>, vector<1x1x128xf32>
    %84 = vector.shape_cast %83 : vector<1x1x128xf32> to vector<1x128xf32>
    %c0_34 = arith.constant 0 : index
    %c0_35 = arith.constant 0 : index
    %c0_36 = arith.constant 0 : index
    %85 = vector.load %arg8[%c0_34, %c0_35, %c0_36] : memref<2x1x128xf32, #tpu.memory_space<vmem>>, vector<1x1x128xf32>
    %86 = vector.shape_cast %85 : vector<1x1x128xf32> to vector<1x128xf32>
    %cst_37 = arith.constant dense<0.000000e+00> : vector<32xf32>
    %87 = vector.multi_reduction <add>, %82, %cst_37 [1] : vector<32x128xf32> to vector<32xf32>
    %88 = vector.shape_cast %87 : vector<32xf32> to vector<32x1xf32>
    %cst_38 = arith.constant 1.280000e+02 : f32
    %89 = vector.broadcast %cst_38 : f32 to vector<32x1xf32>
    %90 = arith.divf %88, %89 : vector<32x1xf32>
    %91 = vector.broadcast %90 : vector<32x1xf32> to vector<32x128xf32>
    %92 = arith.subf %82, %91 : vector<32x128xf32>
    %93 = arith.mulf %92, %92 : vector<32x128xf32>
    %cst_39 = arith.constant dense<0.000000e+00> : vector<32xf32>
    %94 = vector.multi_reduction <add>, %93, %cst_39 [1] : vector<32x128xf32> to vector<32xf32>
    %95 = vector.shape_cast %94 : vector<32xf32> to vector<32x1xf32>
    %cst_40 = arith.constant 1.280000e+02 : f32
    %96 = vector.broadcast %cst_40 : f32 to vector<32x1xf32>
    %97 = arith.divf %95, %96 : vector<32x1xf32>
    %98 = vector.broadcast %90 : vector<32x1xf32> to vector<32x128xf32>
    %99 = arith.subf %82, %98 : vector<32x128xf32>
    %cst_41 = arith.constant 9.99999974E-6 : f32
    %100 = vector.broadcast %cst_41 : f32 to vector<32x1xf32>
    %101 = arith.addf %97, %100 : vector<32x1xf32>
    %102 = math.rsqrt %101 : vector<32x1xf32>
    %103 = vector.broadcast %102 : vector<32x1xf32> to vector<32x128xf32>
    %104 = arith.mulf %99, %103 : vector<32x128xf32>
    %105 = vector.broadcast %84 : vector<1x128xf32> to vector<32x128xf32>
    %106 = arith.mulf %104, %105 : vector<32x128xf32>
    %107 = vector.broadcast %86 : vector<1x128xf32> to vector<32x128xf32>
    %108 = arith.addf %106, %107 : vector<32x128xf32>
    %109 = arith.truncf %108 : vector<32x128xf32> to vector<32x128xbf16>
    %c0_42 = arith.constant 0 : index
    %c0_43 = arith.constant 0 : index
    %c0_44 = arith.constant 0 : index
    %110 = vector.load %arg9[%c0_42, %c0_43, %c0_44] : memref<2x128x256xbf16, #tpu.memory_space<vmem>>, vector<1x128x256xbf16>
    %111 = vector.shape_cast %110 : vector<1x128x256xbf16> to vector<128x256xbf16>
    %cst_45 = arith.constant dense<0.000000e+00> : vector<32x256xf32>
    %112 = tpu.matmul %109, %111, %cst_45 {dimension_numbers = #tpu.dot_dimension_numbers<[1], [0], [0], [1], [0, 0, 1, 1], [], []>} : vector<32x128xbf16>, vector<128x256xbf16>, vector<32x256xf32> -> vector<32x256xf32>
    %c0_46 = arith.constant 0 : index
    %c0_47 = arith.constant 0 : index
    %c0_48 = arith.constant 0 : index
    %113 = vector.load %arg10[%c0_46, %c0_47, %c0_48] : memref<2x1x256xf32, #tpu.memory_space<vmem>>, vector<1x1x256xf32>
    %114 = vector.shape_cast %113 : vector<1x1x256xf32> to vector<1x256xf32>
    %115 = vector.broadcast %114 : vector<1x256xf32> to vector<32x256xf32>
    %116 = arith.addf %112, %115 : vector<32x256xf32>
    %cst_49 = arith.constant 0.000000e+00 : f32
    %117 = vector.broadcast %cst_49 : f32 to vector<32x256xf32>
    %118 = arith.maximumf %116, %117 : vector<32x256xf32>
    %119 = arith.truncf %118 : vector<32x256xf32> to vector<32x256xbf16>
    %c0_50 = arith.constant 0 : index
    %c0_51 = arith.constant 0 : index
    %c0_52 = arith.constant 0 : index
    %120 = vector.load %arg11[%c0_50, %c0_51, %c0_52] : memref<2x256x128xbf16, #tpu.memory_space<vmem>>, vector<1x256x128xbf16>
    %121 = vector.shape_cast %120 : vector<1x256x128xbf16> to vector<256x128xbf16>
    %cst_53 = arith.constant dense<0.000000e+00> : vector<32x128xf32>
    %122 = tpu.matmul %119, %121, %cst_53 {dimension_numbers = #tpu.dot_dimension_numbers<[1], [0], [0], [1], [0, 0, 1, 1], [], []>} : vector<32x256xbf16>, vector<256x128xbf16>, vector<32x128xf32> -> vector<32x128xf32>
    %c0_54 = arith.constant 0 : index
    %c0_55 = arith.constant 0 : index
    %c0_56 = arith.constant 0 : index
    %123 = vector.load %arg12[%c0_54, %c0_55, %c0_56] : memref<2x1x128xf32, #tpu.memory_space<vmem>>, vector<1x1x128xf32>
    %124 = vector.shape_cast %123 : vector<1x1x128xf32> to vector<1x128xf32>
    %125 = vector.broadcast %124 : vector<1x128xf32> to vector<32x128xf32>
    %126 = arith.addf %122, %125 : vector<32x128xf32>
    %127 = arith.addf %108, %126 : vector<32x128xf32>
    %c0_57 = arith.constant 0 : index
    %c0_58 = arith.constant 0 : index
    %c0_59 = arith.constant 0 : index
    %128 = vector.load %arg13[%c0_57, %c0_58, %c0_59] : memref<2x1x128xf32, #tpu.memory_space<vmem>>, vector<1x1x128xf32>
    %129 = vector.shape_cast %128 : vector<1x1x128xf32> to vector<1x128xf32>
    %c0_60 = arith.constant 0 : index
    %c0_61 = arith.constant 0 : index
    %c0_62 = arith.constant 0 : index
    %130 = vector.load %arg14[%c0_60, %c0_61, %c0_62] : memref<2x1x128xf32, #tpu.memory_space<vmem>>, vector<1x1x128xf32>
    %131 = vector.shape_cast %130 : vector<1x1x128xf32> to vector<1x128xf32>
    %cst_63 = arith.constant dense<0.000000e+00> : vector<32xf32>
    %132 = vector.multi_reduction <add>, %127, %cst_63 [1] : vector<32x128xf32> to vector<32xf32>
    %133 = vector.shape_cast %132 : vector<32xf32> to vector<32x1xf32>
    %cst_64 = arith.constant 1.280000e+02 : f32
    %134 = vector.broadcast %cst_64 : f32 to vector<32x1xf32>
    %135 = arith.divf %133, %134 : vector<32x1xf32>
    %136 = vector.broadcast %135 : vector<32x1xf32> to vector<32x128xf32>
    %137 = arith.subf %127, %136 : vector<32x128xf32>
    %138 = arith.mulf %137, %137 : vector<32x128xf32>
    %cst_65 = arith.constant dense<0.000000e+00> : vector<32xf32>
    %139 = vector.multi_reduction <add>, %138, %cst_65 [1] : vector<32x128xf32> to vector<32xf32>
    %140 = vector.shape_cast %139 : vector<32xf32> to vector<32x1xf32>
    %cst_66 = arith.constant 1.280000e+02 : f32
    %141 = vector.broadcast %cst_66 : f32 to vector<32x1xf32>
    %142 = arith.divf %140, %141 : vector<32x1xf32>
    %143 = vector.broadcast %135 : vector<32x1xf32> to vector<32x128xf32>
    %144 = arith.subf %127, %143 : vector<32x128xf32>
    %cst_67 = arith.constant 9.99999974E-6 : f32
    %145 = vector.broadcast %cst_67 : f32 to vector<32x1xf32>
    %146 = arith.addf %142, %145 : vector<32x1xf32>
    %147 = math.rsqrt %146 : vector<32x1xf32>
    %148 = vector.broadcast %147 : vector<32x1xf32> to vector<32x128xf32>
    %149 = arith.mulf %144, %148 : vector<32x128xf32>
    %150 = vector.broadcast %129 : vector<1x128xf32> to vector<32x128xf32>
    %151 = arith.mulf %149, %150 : vector<32x128xf32>
    %152 = vector.broadcast %131 : vector<1x128xf32> to vector<32x128xf32>
    %153 = arith.addf %151, %152 : vector<32x128xf32>
    %154 = arith.truncf %153 : vector<32x128xf32> to vector<32x128xbf16>
    %c1 = arith.constant 1 : index
    %c0_68 = arith.constant 0 : index
    %c0_69 = arith.constant 0 : index
    %155 = vector.load %arg3[%c1, %c0_68, %c0_69] : memref<2x128x384xbf16, #tpu.memory_space<vmem>>, vector<1x128x384xbf16>
    %156 = vector.shape_cast %155 : vector<1x128x384xbf16> to vector<128x384xbf16>
    %cst_70 = arith.constant dense<0.000000e+00> : vector<32x384xf32>
    %157 = tpu.matmul %154, %156, %cst_70 {dimension_numbers = #tpu.dot_dimension_numbers<[1], [0], [0], [1], [0, 0, 1, 1], [], []>} : vector<32x128xbf16>, vector<128x384xbf16>, vector<32x384xf32> -> vector<32x384xf32>
    %c1_71 = arith.constant 1 : index
    %c0_72 = arith.constant 0 : index
    %c0_73 = arith.constant 0 : index
    %158 = vector.load %arg4[%c1_71, %c0_72, %c0_73] : memref<2x1x384xf32, #tpu.memory_space<vmem>>, vector<1x1x384xf32>
    %159 = vector.shape_cast %158 : vector<1x1x384xf32> to vector<1x384xf32>
    %160 = vector.broadcast %159 : vector<1x384xf32> to vector<32x384xf32>
    %161 = arith.addf %157, %160 : vector<32x384xf32>
    %162 = vector.extract_strided_slice %161 {offsets = [0, 0], sizes = [32, 128], strides = [1, 1]} : vector<32x384xf32> to vector<32x128xf32>
    %163 = vector.extract_strided_slice %161 {offsets = [0, 128], sizes = [32, 128], strides = [1, 1]} : vector<32x384xf32> to vector<32x128xf32>
    %164 = vector.extract_strided_slice %161 {offsets = [0, 256], sizes = [32, 128], strides = [1, 1]} : vector<32x384xf32> to vector<32x128xf32>
    %165 = vector.extract_strided_slice %162 {offsets = [0, 0], sizes = [32, 64], strides = [1, 1]} : vector<32x128xf32> to vector<32x64xf32>
    %166 = vector.shape_cast %165 : vector<32x64xf32> to vector<2x16x64xf32>
    %167 = arith.truncf %166 : vector<2x16x64xf32> to vector<2x16x64xbf16>
    %168 = vector.extract_strided_slice %163 {offsets = [0, 0], sizes = [32, 64], strides = [1, 1]} : vector<32x128xf32> to vector<32x64xf32>
    %169 = vector.shape_cast %168 : vector<32x64xf32> to vector<2x16x64xf32>
    %170 = arith.truncf %169 : vector<2x16x64xf32> to vector<2x16x64xbf16>
    %171 = vector.extract_strided_slice %164 {offsets = [0, 0], sizes = [32, 64], strides = [1, 1]} : vector<32x128xf32> to vector<32x64xf32>
    %172 = vector.shape_cast %171 : vector<32x64xf32> to vector<2x16x64xf32>
    %173 = arith.truncf %172 : vector<2x16x64xf32> to vector<2x16x64xbf16>
    "tpu.trace_start"() <{level = 10 : i32, message = "bqd,bkd->bqk"}> : () -> ()
    %cst_74 = arith.constant dense<0.000000e+00> : vector<2x16x16xf32>
    %174 = tpu.matmul %167, %170, %cst_74 {dimension_numbers = #tpu.dot_dimension_numbers<[2], [2], [1], [1], [0, 0, 0, 1, 1, 1], [0], [0]>} : vector<2x16x64xbf16>, vector<2x16x64xbf16>, vector<2x16x16xf32> -> vector<2x16x16xf32>
    "tpu.trace_stop"() : () -> ()
    %cst_75 = arith.constant 1.250000e-01 : f32
    %175 = vector.broadcast %cst_75 : f32 to vector<2x16x16xf32>
    %176 = arith.mulf %174, %175 : vector<2x16x16xf32>
    %177 = vector.shape_cast %7 : vector<16x16xf32> to vector<1x16x16xf32>
    %178 = vector.broadcast %177 : vector<1x16x16xf32> to vector<2x16x16xf32>
    %179 = arith.addf %176, %178 : vector<2x16x16xf32>
    %cst_76 = arith.constant dense<0xFF800000> : vector<2x16xf32>
    %180 = vector.multi_reduction <maximumf>, %179, %cst_76 [2] : vector<2x16x16xf32> to vector<2x16xf32>
    %181 = vector.shape_cast %180 : vector<2x16xf32> to vector<2x16x1xf32>
    %182 = vector.broadcast %181 : vector<2x16x1xf32> to vector<2x16x16xf32>
    %183 = arith.subf %179, %182 : vector<2x16x16xf32>
    %184 = math.exp %183 : vector<2x16x16xf32>
    %cst_77 = arith.constant dense<0.000000e+00> : vector<2x16xf32>
    %185 = vector.multi_reduction <add>, %184, %cst_77 [2] : vector<2x16x16xf32> to vector<2x16xf32>
    %186 = vector.shape_cast %185 : vector<2x16xf32> to vector<2x16x1xf32>
    %187 = vector.broadcast %186 : vector<2x16x1xf32> to vector<2x16x16xf32>
    %188 = arith.divf %184, %187 : vector<2x16x16xf32>
    %189 = arith.truncf %188 : vector<2x16x16xf32> to vector<2x16x16xbf16>
    "tpu.trace_start"() <{level = 10 : i32, message = "bqk,bkd->bqd"}> : () -> ()
    %cst_78 = arith.constant dense<0.000000e+00> : vector<2x16x64xf32>
    %190 = tpu.matmul %189, %173, %cst_78 {dimension_numbers = #tpu.dot_dimension_numbers<[2], [1], [1], [2], [0, 0, 0, 1, 1, 2], [0], [0]>} : vector<2x16x16xbf16>, vector<2x16x64xbf16>, vector<2x16x64xf32> -> vector<2x16x64xf32>
    "tpu.trace_stop"() : () -> ()
    %191 = vector.shape_cast %190 : vector<2x16x64xf32> to vector<32x64xf32>
    %192 = vector.extract_strided_slice %162 {offsets = [0, 64], sizes = [32, 64], strides = [1, 1]} : vector<32x128xf32> to vector<32x64xf32>
    %193 = vector.shape_cast %192 : vector<32x64xf32> to vector<2x16x64xf32>
    %194 = arith.truncf %193 : vector<2x16x64xf32> to vector<2x16x64xbf16>
    %195 = vector.extract_strided_slice %163 {offsets = [0, 64], sizes = [32, 64], strides = [1, 1]} : vector<32x128xf32> to vector<32x64xf32>
    %196 = vector.shape_cast %195 : vector<32x64xf32> to vector<2x16x64xf32>
    %197 = arith.truncf %196 : vector<2x16x64xf32> to vector<2x16x64xbf16>
    %198 = vector.extract_strided_slice %164 {offsets = [0, 64], sizes = [32, 64], strides = [1, 1]} : vector<32x128xf32> to vector<32x64xf32>
    %199 = vector.shape_cast %198 : vector<32x64xf32> to vector<2x16x64xf32>
    %200 = arith.truncf %199 : vector<2x16x64xf32> to vector<2x16x64xbf16>
    "tpu.trace_start"() <{level = 10 : i32, message = "bqd,bkd->bqk"}> : () -> ()
    %cst_79 = arith.constant dense<0.000000e+00> : vector<2x16x16xf32>
    %201 = tpu.matmul %194, %197, %cst_79 {dimension_numbers = #tpu.dot_dimension_numbers<[2], [2], [1], [1], [0, 0, 0, 1, 1, 1], [0], [0]>} : vector<2x16x64xbf16>, vector<2x16x64xbf16>, vector<2x16x16xf32> -> vector<2x16x16xf32>
    "tpu.trace_stop"() : () -> ()
    %cst_80 = arith.constant 1.250000e-01 : f32
    %202 = vector.broadcast %cst_80 : f32 to vector<2x16x16xf32>
    %203 = arith.mulf %201, %202 : vector<2x16x16xf32>
    %204 = vector.shape_cast %7 : vector<16x16xf32> to vector<1x16x16xf32>
    %205 = vector.broadcast %204 : vector<1x16x16xf32> to vector<2x16x16xf32>
    %206 = arith.addf %203, %205 : vector<2x16x16xf32>
    %cst_81 = arith.constant dense<0xFF800000> : vector<2x16xf32>
    %207 = vector.multi_reduction <maximumf>, %206, %cst_81 [2] : vector<2x16x16xf32> to vector<2x16xf32>
    %208 = vector.shape_cast %207 : vector<2x16xf32> to vector<2x16x1xf32>
    %209 = vector.broadcast %208 : vector<2x16x1xf32> to vector<2x16x16xf32>
    %210 = arith.subf %206, %209 : vector<2x16x16xf32>
    %211 = math.exp %210 : vector<2x16x16xf32>
    %cst_82 = arith.constant dense<0.000000e+00> : vector<2x16xf32>
    %212 = vector.multi_reduction <add>, %211, %cst_82 [2] : vector<2x16x16xf32> to vector<2x16xf32>
    %213 = vector.shape_cast %212 : vector<2x16xf32> to vector<2x16x1xf32>
    %214 = vector.broadcast %213 : vector<2x16x1xf32> to vector<2x16x16xf32>
    %215 = arith.divf %211, %214 : vector<2x16x16xf32>
    %216 = arith.truncf %215 : vector<2x16x16xf32> to vector<2x16x16xbf16>
    "tpu.trace_start"() <{level = 10 : i32, message = "bqk,bkd->bqd"}> : () -> ()
    %cst_83 = arith.constant dense<0.000000e+00> : vector<2x16x64xf32>
    %217 = tpu.matmul %216, %200, %cst_83 {dimension_numbers = #tpu.dot_dimension_numbers<[2], [1], [1], [2], [0, 0, 0, 1, 1, 2], [0], [0]>} : vector<2x16x16xbf16>, vector<2x16x64xbf16>, vector<2x16x64xf32> -> vector<2x16x64xf32>
    "tpu.trace_stop"() : () -> ()
    %218 = vector.shape_cast %217 : vector<2x16x64xf32> to vector<32x64xf32>
    %219 = tpu.concatenate %191, %218 in 1 : vector<32x64xf32>, vector<32x64xf32> -> vector<32x128xf32>
    %220 = arith.truncf %219 : vector<32x128xf32> to vector<32x128xbf16>
    %c1_84 = arith.constant 1 : index
    %c0_85 = arith.constant 0 : index
    %c0_86 = arith.constant 0 : index
    %221 = vector.load %arg5[%c1_84, %c0_85, %c0_86] : memref<2x128x128xbf16, #tpu.memory_space<vmem>>, vector<1x128x128xbf16>
    %222 = vector.shape_cast %221 : vector<1x128x128xbf16> to vector<128x128xbf16>
    %cst_87 = arith.constant dense<0.000000e+00> : vector<32x128xf32>
    %223 = tpu.matmul %220, %222, %cst_87 {dimension_numbers = #tpu.dot_dimension_numbers<[1], [0], [0], [1], [0, 0, 1, 1], [], []>} : vector<32x128xbf16>, vector<128x128xbf16>, vector<32x128xf32> -> vector<32x128xf32>
    %c1_88 = arith.constant 1 : index
    %c0_89 = arith.constant 0 : index
    %c0_90 = arith.constant 0 : index
    %224 = vector.load %arg6[%c1_88, %c0_89, %c0_90] : memref<2x1x128xf32, #tpu.memory_space<vmem>>, vector<1x1x128xf32>
    %225 = vector.shape_cast %224 : vector<1x1x128xf32> to vector<1x128xf32>
    %226 = vector.broadcast %225 : vector<1x128xf32> to vector<32x128xf32>
    %227 = arith.addf %223, %226 : vector<32x128xf32>
    %228 = arith.addf %153, %227 : vector<32x128xf32>
    %c1_91 = arith.constant 1 : index
    %c0_92 = arith.constant 0 : index
    %c0_93 = arith.constant 0 : index
    %229 = vector.load %arg7[%c1_91, %c0_92, %c0_93] : memref<2x1x128xf32, #tpu.memory_space<vmem>>, vector<1x1x128xf32>
    %230 = vector.shape_cast %229 : vector<1x1x128xf32> to vector<1x128xf32>
    %c1_94 = arith.constant 1 : index
    %c0_95 = arith.constant 0 : index
    %c0_96 = arith.constant 0 : index
    %231 = vector.load %arg8[%c1_94, %c0_95, %c0_96] : memref<2x1x128xf32, #tpu.memory_space<vmem>>, vector<1x1x128xf32>
    %232 = vector.shape_cast %231 : vector<1x1x128xf32> to vector<1x128xf32>
    %cst_97 = arith.constant dense<0.000000e+00> : vector<32xf32>
    %233 = vector.multi_reduction <add>, %228, %cst_97 [1] : vector<32x128xf32> to vector<32xf32>
    %234 = vector.shape_cast %233 : vector<32xf32> to vector<32x1xf32>
    %cst_98 = arith.constant 1.280000e+02 : f32
    %235 = vector.broadcast %cst_98 : f32 to vector<32x1xf32>
    %236 = arith.divf %234, %235 : vector<32x1xf32>
    %237 = vector.broadcast %236 : vector<32x1xf32> to vector<32x128xf32>
    %238 = arith.subf %228, %237 : vector<32x128xf32>
    %239 = arith.mulf %238, %238 : vector<32x128xf32>
    %cst_99 = arith.constant dense<0.000000e+00> : vector<32xf32>
    %240 = vector.multi_reduction <add>, %239, %cst_99 [1] : vector<32x128xf32> to vector<32xf32>
    %241 = vector.shape_cast %240 : vector<32xf32> to vector<32x1xf32>
    %cst_100 = arith.constant 1.280000e+02 : f32
    %242 = vector.broadcast %cst_100 : f32 to vector<32x1xf32>
    %243 = arith.divf %241, %242 : vector<32x1xf32>
    %244 = vector.broadcast %236 : vector<32x1xf32> to vector<32x128xf32>
    %245 = arith.subf %228, %244 : vector<32x128xf32>
    %cst_101 = arith.constant 9.99999974E-6 : f32
    %246 = vector.broadcast %cst_101 : f32 to vector<32x1xf32>
    %247 = arith.addf %243, %246 : vector<32x1xf32>
    %248 = math.rsqrt %247 : vector<32x1xf32>
    %249 = vector.broadcast %248 : vector<32x1xf32> to vector<32x128xf32>
    %250 = arith.mulf %245, %249 : vector<32x128xf32>
    %251 = vector.broadcast %230 : vector<1x128xf32> to vector<32x128xf32>
    %252 = arith.mulf %250, %251 : vector<32x128xf32>
    %253 = vector.broadcast %232 : vector<1x128xf32> to vector<32x128xf32>
    %254 = arith.addf %252, %253 : vector<32x128xf32>
    %255 = arith.truncf %254 : vector<32x128xf32> to vector<32x128xbf16>
    %c1_102 = arith.constant 1 : index
    %c0_103 = arith.constant 0 : index
    %c0_104 = arith.constant 0 : index
    %256 = vector.load %arg9[%c1_102, %c0_103, %c0_104] : memref<2x128x256xbf16, #tpu.memory_space<vmem>>, vector<1x128x256xbf16>
    %257 = vector.shape_cast %256 : vector<1x128x256xbf16> to vector<128x256xbf16>
    %cst_105 = arith.constant dense<0.000000e+00> : vector<32x256xf32>
    %258 = tpu.matmul %255, %257, %cst_105 {dimension_numbers = #tpu.dot_dimension_numbers<[1], [0], [0], [1], [0, 0, 1, 1], [], []>} : vector<32x128xbf16>, vector<128x256xbf16>, vector<32x256xf32> -> vector<32x256xf32>
    %c1_106 = arith.constant 1 : index
    %c0_107 = arith.constant 0 : index
    %c0_108 = arith.constant 0 : index
    %259 = vector.load %arg10[%c1_106, %c0_107, %c0_108] : memref<2x1x256xf32, #tpu.memory_space<vmem>>, vector<1x1x256xf32>
    %260 = vector.shape_cast %259 : vector<1x1x256xf32> to vector<1x256xf32>
    %261 = vector.broadcast %260 : vector<1x256xf32> to vector<32x256xf32>
    %262 = arith.addf %258, %261 : vector<32x256xf32>
    %cst_109 = arith.constant 0.000000e+00 : f32
    %263 = vector.broadcast %cst_109 : f32 to vector<32x256xf32>
    %264 = arith.maximumf %262, %263 : vector<32x256xf32>
    %265 = arith.truncf %264 : vector<32x256xf32> to vector<32x256xbf16>
    %c1_110 = arith.constant 1 : index
    %c0_111 = arith.constant 0 : index
    %c0_112 = arith.constant 0 : index
    %266 = vector.load %arg11[%c1_110, %c0_111, %c0_112] : memref<2x256x128xbf16, #tpu.memory_space<vmem>>, vector<1x256x128xbf16>
    %267 = vector.shape_cast %266 : vector<1x256x128xbf16> to vector<256x128xbf16>
    %cst_113 = arith.constant dense<0.000000e+00> : vector<32x128xf32>
    %268 = tpu.matmul %265, %267, %cst_113 {dimension_numbers = #tpu.dot_dimension_numbers<[1], [0], [0], [1], [0, 0, 1, 1], [], []>} : vector<32x256xbf16>, vector<256x128xbf16>, vector<32x128xf32> -> vector<32x128xf32>
    %c1_114 = arith.constant 1 : index
    %c0_115 = arith.constant 0 : index
    %c0_116 = arith.constant 0 : index
    %269 = vector.load %arg12[%c1_114, %c0_115, %c0_116] : memref<2x1x128xf32, #tpu.memory_space<vmem>>, vector<1x1x128xf32>
    %270 = vector.shape_cast %269 : vector<1x1x128xf32> to vector<1x128xf32>
    %271 = vector.broadcast %270 : vector<1x128xf32> to vector<32x128xf32>
    %272 = arith.addf %268, %271 : vector<32x128xf32>
    %273 = arith.addf %254, %272 : vector<32x128xf32>
    %c1_117 = arith.constant 1 : index
    %c0_118 = arith.constant 0 : index
    %c0_119 = arith.constant 0 : index
    %274 = vector.load %arg13[%c1_117, %c0_118, %c0_119] : memref<2x1x128xf32, #tpu.memory_space<vmem>>, vector<1x1x128xf32>
    %275 = vector.shape_cast %274 : vector<1x1x128xf32> to vector<1x128xf32>
    %c1_120 = arith.constant 1 : index
    %c0_121 = arith.constant 0 : index
    %c0_122 = arith.constant 0 : index
    %276 = vector.load %arg14[%c1_120, %c0_121, %c0_122] : memref<2x1x128xf32, #tpu.memory_space<vmem>>, vector<1x1x128xf32>
    %277 = vector.shape_cast %276 : vector<1x1x128xf32> to vector<1x128xf32>
    %cst_123 = arith.constant dense<0.000000e+00> : vector<32xf32>
    %278 = vector.multi_reduction <add>, %273, %cst_123 [1] : vector<32x128xf32> to vector<32xf32>
    %279 = vector.shape_cast %278 : vector<32xf32> to vector<32x1xf32>
    %cst_124 = arith.constant 1.280000e+02 : f32
    %280 = vector.broadcast %cst_124 : f32 to vector<32x1xf32>
    %281 = arith.divf %279, %280 : vector<32x1xf32>
    %282 = vector.broadcast %281 : vector<32x1xf32> to vector<32x128xf32>
    %283 = arith.subf %273, %282 : vector<32x128xf32>
    %284 = arith.mulf %283, %283 : vector<32x128xf32>
    %cst_125 = arith.constant dense<0.000000e+00> : vector<32xf32>
    %285 = vector.multi_reduction <add>, %284, %cst_125 [1] : vector<32x128xf32> to vector<32xf32>
    %286 = vector.shape_cast %285 : vector<32xf32> to vector<32x1xf32>
    %cst_126 = arith.constant 1.280000e+02 : f32
    %287 = vector.broadcast %cst_126 : f32 to vector<32x1xf32>
    %288 = arith.divf %286, %287 : vector<32x1xf32>
    %289 = vector.broadcast %281 : vector<32x1xf32> to vector<32x128xf32>
    %290 = arith.subf %273, %289 : vector<32x128xf32>
    %cst_127 = arith.constant 9.99999974E-6 : f32
    %291 = vector.broadcast %cst_127 : f32 to vector<32x1xf32>
    %292 = arith.addf %288, %291 : vector<32x1xf32>
    %293 = math.rsqrt %292 : vector<32x1xf32>
    %294 = vector.broadcast %293 : vector<32x1xf32> to vector<32x128xf32>
    %295 = arith.mulf %290, %294 : vector<32x128xf32>
    %296 = vector.broadcast %275 : vector<1x128xf32> to vector<32x128xf32>
    %297 = arith.mulf %295, %296 : vector<32x128xf32>
    %298 = vector.broadcast %277 : vector<1x128xf32> to vector<32x128xf32>
    %299 = arith.addf %297, %298 : vector<32x128xf32>
    %300 = vector.shape_cast %299 : vector<32x128xf32> to vector<2x16x128xf32>
    %c0_128 = arith.constant 0 : index
    %c0_129 = arith.constant 0 : index
    %c0_130 = arith.constant 0 : index
    %301 = vector.load %arg17[%c0_128, %c0_129, %c0_130] : memref<2x16x128xf32, #tpu.memory_space<vmem>>, vector<2x16x128xf32>
    tpu.vector_store %arg17[%c0_128, %c0_129, %c0_130], %300 {strides = array<i32>} : memref<2x16x128xf32, #tpu.memory_space<vmem>>, vector<2x16x128xf32>,
    %302 = arith.truncf %299 : vector<32x128xf32> to vector<32x128xbf16>
    %c0_131 = arith.constant 0 : index
    %c0_132 = arith.constant 0 : index
    %303 = vector.load %arg15[%c0_131, %c0_132] : memref<128x384xbf16, #tpu.memory_space<vmem>>, vector<128x384xbf16>
    %cst_133 = arith.constant dense<0.000000e+00> : vector<32x384xf32>
    %304 = tpu.matmul %302, %303, %cst_133 {dimension_numbers = #tpu.dot_dimension_numbers<[1], [0], [0], [1], [0, 0, 1, 1], [], []>} : vector<32x128xbf16>, vector<128x384xbf16>, vector<32x384xf32> -> vector<32x384xf32>
    %c0_134 = arith.constant 0 : index
    %c0_135 = arith.constant 0 : index
    %305 = vector.load %arg16[%c0_134, %c0_135] : memref<1x384xf32, #tpu.memory_space<vmem>>, vector<1x384xf32>
    %306 = vector.broadcast %305 : vector<1x384xf32> to vector<32x384xf32>
    %307 = arith.addf %304, %306 : vector<32x384xf32>
    %c0_136 = arith.constant 0 : index
    %c0_137 = arith.constant 0 : index
    %308 = vector.load %arg18[%c0_136, %c0_137] : memref<32x384xf32, #tpu.memory_space<vmem>>, vector<32x384xf32>
    tpu.vector_store %arg18[%c0_136, %c0_137], %307 {strides = array<i32>} : memref<32x384xf32, #tpu.memory_space<vmem>>, vector<32x384xf32>,
    return
  }
}

</mosaic_0001>

<llo_original>
// kernel: tpu_custom_call.1
$region0: #{tpu_custom_call.1}
  #allocation0 [shape = 'u32[]', space=smem, size = 0x4, offset = 0x4, fixed_abs, tag = 'smem constant byte address 0x4 - core index']
  #allocation1 [shape = 'u32[72,128]{1,0:T(1,128)}', space=vmem, size = 0x9000, scoped, tag = 'internal scratch']
  %s0 = inlined_call_operand.hbm [shape: f32[2,16,128], index: 0, kind: input, shape index: {}]
  %s1 = inlined_call_operand.hbm [shape: f32[16,16], index: 1, kind: input, shape index: {}]
  %s2 = inlined_call_operand.hbm [shape: f32[1,16,128], index: 2, kind: input, shape index: {}]
  %s3 = inlined_call_operand.hbm [shape: bf16[2,128,384], index: 3, kind: input, shape index: {}]
  %s4 = inlined_call_operand.hbm [shape: f32[2,1,384], index: 4, kind: input, shape index: {}]
  %s5 = inlined_call_operand.hbm [shape: bf16[2,128,128], index: 5, kind: input, shape index: {}]
  %s6 = inlined_call_operand.hbm [shape: f32[2,1,128], index: 6, kind: input, shape index: {}]
  %s7 = inlined_call_operand.hbm [shape: f32[2,1,128], index: 7, kind: input, shape index: {}]
  %s8 = inlined_call_operand.hbm [shape: f32[2,1,128], index: 8, kind: input, shape index: {}]
  %s9 = inlined_call_operand.hbm [shape: bf16[2,128,256], index: 9, kind: input, shape index: {}]
  %s10 = inlined_call_operand.vmem [shape: f32[2,1,256], index: 10, kind: input, shape index: {}]
  %s11 = inlined_call_operand.hbm [shape: bf16[2,256,128], index: 11, kind: input, shape index: {}]
  %s12 = inlined_call_operand.vmem [shape: f32[2,1,128], index: 12, kind: input, shape index: {}]
  %s13 = inlined_call_operand.vmem [shape: f32[2,1,128], index: 13, kind: input, shape index: {}]
  %s14 = inlined_call_operand.vmem [shape: f32[2,1,128], index: 14, kind: input, shape index: {}]
  %s15 = inlined_call_operand.hbm [shape: bf16[128,384], index: 15, kind: input, shape index: {}]
  %s16 = inlined_call_operand.vmem [shape: f32[1,384], index: 16, kind: input, shape index: {}]
  %s17 = inlined_call_operand.hbm [shape: f32[2,16,128], index: 17, kind: output, shape index: {0}]
  %s18 = inlined_call_operand.hbm [shape: f32[32,384], index: 18, kind: output, shape index: {1}]
  %19 = xla_tuple %s17, %s18
  %s20 = sld [smem:[#allocation0]]
  $region134: #{tpu_custom_call.1} parent=0
    _
  %s22 = ssub.s32 1, %s20
  %s23 = scalar_select 0, %s22, %s20
  $region1: #{tpu_custom_call.1} parent=0
    #allocation2 [shape = 'u8[16384]{0}', space=vmem, size = 0x4000, scoped, tag = 'input window, operand 0, single buffered']
    #allocation3 [shape = 's32[1]{0}', space=sflag, size = 0x4, scoped, tag = 'scoped memory for tpu_custom_call.1']
    #allocation4 [shape = 's32[1]{0}', space=sflag, size = 0x4, scoped, tag = 'scoped memory for tpu_custom_call.1']
    #allocation5 [shape = 'u8[8192]{0}', space=vmem, size = 0x2000, scoped, tag = 'input window, operand 1, single buffered']
    #allocation6 [shape = 's32[1]{0}', space=sflag, size = 0x4, scoped, tag = 'scoped memory for tpu_custom_call.1']
    #allocation7 [shape = 'u8[8192]{0}', space=vmem, size = 0x2000, scoped, tag = 'input window, operand 2, single buffered']
    #allocation8 [shape = 'u8[196608]{0}', space=vmem, size = 0x30000, scoped, tag = 'input window, operand 3, single buffered']
    #allocation9 [shape = 's32[1]{0}', space=sflag, size = 0x4, scoped, tag = 'scoped memory for tpu_custom_call.1']
    #allocation10 [shape = 'u8[3072]{0}', space=vmem, size = 0xc00, scoped, tag = 'input window, operand 4, single buffered']
    #allocation11 [shape = 'u8[65536]{0}', space=vmem, size = 0x10000, scoped, tag = 'input window, operand 5, single buffered']
    #allocation12 [shape = 's32[1]{0}', space=sflag, size = 0x4, scoped, tag = 'scoped memory for tpu_custom_call.1']
    #allocation13 [shape = 'u8[1024]{0}', space=vmem, size = 0x400, scoped, tag = 'input window, operand 6, single buffered']
    #allocation14 [shape = 'u8[1024]{0}', space=vmem, size = 0x400, scoped, tag = 'input window, operand 7, single buffered']
    #allocation15 [shape = 's32[1]{0}', space=sflag, size = 0x4, scoped, tag = 'scoped memory for tpu_custom_call.1']
    #allocation16 [shape = 'u8[1024]{0}', space=vmem, size = 0x400, scoped, tag = 'input window, operand 8, single buffered']
    #allocation17 [shape = 'u8[131072]{0}', space=vmem, size = 0x20000, scoped, tag = 'input window, operand 9, single buffered']
    #allocation18 [shape = 's32[1]{0}', space=sflag, size = 0x4, scoped, tag = 'scoped memory for tpu_custom_call.1']
    #allocation19 [shape = 'u8[131072]{0}', space=vmem, size = 0x20000, scoped, tag = 'input window, operand 11, single buffered']
    #allocation20 [shape = 'u8[98304]{0}', space=vmem, size = 0x18000, scoped, tag = 'input window, operand 15, single buffered']
    #allocation21 [shape = 's32[1]{0}', space=sflag, size = 0x4, scoped, tag = 'scoped memory for tpu_custom_call.1']
    #allocation22 [shape = 'u8[16384]{0}', space=vmem, size = 0x4000, scoped, tag = 'output window, operand 0, single buffered']
    #allocation23 [shape = 'u8[49152]{0}', space=vmem, size = 0xc000, scoped, tag = 'output window, operand 1, single buffered']
    #allocation24 [shape = 's32[1]{0}', space=sflag, size = 0x4, scoped, tag = 'scoped memory for tpu_custom_call.1']
    %24 = vsyncpa [#allocation3], 0
    %25 = vsyncpa [#allocation6], 0
    %26 = vsyncpa [#allocation9], 0
    %27 = vsyncpa [#allocation12], 0
    %28 = vsyncpa [#allocation15], 0
    %29 = vsyncpa [#allocation18], 0
    %30 = vsyncpa [#allocation21], 0
    %31 = vsyncpa [#allocation4], 0
    %32 = vsyncpa [#allocation24], 0
    // Predicated region
    $region2: #{tpu_custom_call.1} parent=1 // pred_check
      _
    $region3: #{tpu_custom_call.1} parent=1 // pred_check_branch
      %34 = sbr.rel (0) target = $region5
    $region4: #{tpu_custom_call.1} parent=1 // pred_region
      %36 = vsyncadd [#allocation3], 0
      %s37 = sshll.u32 %s0, 4
      %s38 = int_to_ptr.hbm [resolvable:$true] %s37
      %s39 = sshll.u32 [#allocation2], 4
      %s40 = int_to_ptr.vmem [resolvable:$true] %s39
      %45 = dma.hbm_to_vmem [thread:$0]  %s38, 512, %s40, [#allocation3], 128, 128, 8
    $region5: #{tpu_custom_call.1} parent=1 // pred_fallthru
      _
    // Predicated region
    $region6: #{tpu_custom_call.1} parent=1 // pred_check
      _
    $region7: #{tpu_custom_call.1} parent=1 // pred_check_branch
      %47 = sbr.rel (0) target = $region9
    $region8: #{tpu_custom_call.1} parent=1 // pred_region
      %49 = vsyncadd [#allocation6], 0
      %s50 = sshll.u32 %s1, 4
      %s51 = int_to_ptr.hbm [resolvable:$true] %s50
      %s52 = sshll.u32 [#allocation5], 4
      %s53 = int_to_ptr.vmem [resolvable:$true] %s52
      %58 = dma.hbm_to_vmem [thread:$0]  %s51, 256, %s53, [#allocation6], 128, 128, 8
    $region9: #{tpu_custom_call.1} parent=1 // pred_fallthru
      _
    // Predicated region
    $region10: #{tpu_custom_call.1} parent=1 // pred_check
      _
    $region11: #{tpu_custom_call.1} parent=1 // pred_check_branch
      %60 = sbr.rel (0) target = $region13
    $region12: #{tpu_custom_call.1} parent=1 // pred_region
      %62 = vsyncadd [#allocation6], 0
      %s63 = sshll.u32 %s2, 4
      %s64 = int_to_ptr.hbm [resolvable:$true] %s63
      %s65 = sshll.u32 [#allocation7], 4
      %s66 = int_to_ptr.vmem [resolvable:$true] %s65
      %71 = dma.hbm_to_vmem [thread:$0]  %s64, 256, %s66, [#allocation6], 128, 128, 8
    $region13: #{tpu_custom_call.1} parent=1 // pred_fallthru
      _
    // Predicated region
    $region14: #{tpu_custom_call.1} parent=1 // pred_check
      _
    $region15: #{tpu_custom_call.1} parent=1 // pred_check_branch
      %73 = sbr.rel (0) target = $region17
    $region16: #{tpu_custom_call.1} parent=1 // pred_region
      %75 = vsyncadd [#allocation9], 0
      %s76 = sshll.u32 %s3, 4
      %s77 = int_to_ptr.hbm [resolvable:$true] %s76
      %s78 = sshll.u32 [#allocation8], 4
      %s79 = int_to_ptr.vmem [resolvable:$true] %s78
      %84 = dma.hbm_to_vmem [thread:$0]  %s77, 6144, %s79, [#allocation9], 192, 192, 12
    $region17: #{tpu_custom_call.1} parent=1 // pred_fallthru
      _
    // Predicated region
    $region18: #{tpu_custom_call.1} parent=1 // pred_check
      _
    $region19: #{tpu_custom_call.1} parent=1 // pred_check_branch
      %86 = sbr.rel (0) target = $region21
    $region20: #{tpu_custom_call.1} parent=1 // pred_region
      %88 = vsyncadd [#allocation9], 0
      %s89 = sshll.u32 %s4, 4
      %s90 = int_to_ptr.hbm [resolvable:$true] %s89
      %s91 = sshll.u32 [#allocation10], 4
      %s92 = int_to_ptr.vmem [resolvable:$true] %s91
      %97 = dma.hbm_to_vmem [thread:$0]  %s90, 96, %s92, [#allocation9], 48, 48, 3
    $region21: #{tpu_custom_call.1} parent=1 // pred_fallthru
      _
    // Predicated region
    $region22: #{tpu_custom_call.1} parent=1 // pred_check
      _
    $region23: #{tpu_custom_call.1} parent=1 // pred_check_branch
      %99 = sbr.rel (0) target = $region25
    $region24: #{tpu_custom_call.1} parent=1 // pred_region
      %101 = vsyncadd [#allocation12], 0
      %s102 = sshll.u32 %s5, 4
      %s103 = int_to_ptr.hbm [resolvable:$true] %s102
      %s104 = sshll.u32 [#allocation11], 4
      %s105 = int_to_ptr.vmem [resolvable:$true] %s104
      %110 = dma.hbm_to_vmem [thread:$0]  %s103, 2048, %s105, [#allocation12], 64, 64, 4
    $region25: #{tpu_custom_call.1} parent=1 // pred_fallthru
      _
    // Predicated region
    $region26: #{tpu_custom_call.1} parent=1 // pred_check
      _
    $region27: #{tpu_custom_call.1} parent=1 // pred_check_branch
      %112 = sbr.rel (0) target = $region29
    $region28: #{tpu_custom_call.1} parent=1 // pred_region
      %114 = vsyncadd [#allocation12], 0
      %s115 = sshll.u32 %s6, 4
      %s116 = int_to_ptr.hbm [resolvable:$true] %s115
      %s117 = sshll.u32 [#allocation13], 4
      %s118 = int_to_ptr.vmem [resolvable:$true] %s117
      %123 = dma.hbm_to_vmem [thread:$0]  %s116, 32, %s118, [#allocation12], 16, 16, 1
    $region29: #{tpu_custom_call.1} parent=1 // pred_fallthru
      _
    // Predicated region
    $region30: #{tpu_custom_call.1} parent=1 // pred_check
      _
    $region31: #{tpu_custom_call.1} parent=1 // pred_check_branch
      %125 = sbr.rel (0) target = $region33
    $region32: #{tpu_custom_call.1} parent=1 // pred_region
      %127 = vsyncadd [#allocation15], 0
      %s128 = sshll.u32 %s7, 4
      %s129 = int_to_ptr.hbm [resolvable:$true] %s128
      %s130 = sshll.u32 [#allocation14], 4
      %s131 = int_to_ptr.vmem [resolvable:$true] %s130
      %136 = dma.hbm_to_vmem [thread:$0]  %s129, 32, %s131, [#allocation15], 16, 16, 1
    $region33: #{tpu_custom_call.1} parent=1 // pred_fallthru
      _
    // Predicated region
    $region34: #{tpu_custom_call.1} parent=1 // pred_check
      _
    $region35: #{tpu_custom_call.1} parent=1 // pred_check_branch
      %138 = sbr.rel (0) target = $region37
    $region36: #{tpu_custom_call.1} parent=1 // pred_region
      %140 = vsyncadd [#allocation15], 0
      %s141 = sshll.u32 %s8, 4
      %s142 = int_to_ptr.hbm [resolvable:$true] %s141
      %s143 = sshll.u32 [#allocation16], 4
      %s144 = int_to_ptr.vmem [resolvable:$true] %s143
      %149 = dma.hbm_to_vmem [thread:$0]  %s142, 32, %s144, [#allocation15], 16, 16, 1
    $region37: #{tpu_custom_call.1} parent=1 // pred_fallthru
      _
    // Predicated region
    $region38: #{tpu_custom_call.1} parent=1 // pred_check
      _
    $region39: #{tpu_custom_call.1} parent=1 // pred_check_branch
      %151 = sbr.rel (0) target = $region41
    $region40: #{tpu_custom_call.1} parent=1 // pred_region
      %153 = vsyncadd [#allocation18], 0
      %s154 = sshll.u32 %s9, 4
      %s155 = int_to_ptr.hbm [resolvable:$true] %s154
      %s156 = sshll.u32 [#allocation17], 4
      %s157 = int_to_ptr.vmem [resolvable:$true] %s156
      %162 = dma.hbm_to_vmem [thread:$0]  %s155, 4096, %s157, [#allocation18], 128, 128, 8
    $region41: #{tpu_custom_call.1} parent=1 // pred_fallthru
      _
    // Predicated region
    $region42: #{tpu_custom_call.1} parent=1 // pred_check
      _
    $region43: #{tpu_custom_call.1} parent=1 // pred_check_branch
      %164 = sbr.rel (0) target = $region45
    $region44: #{tpu_custom_call.1} parent=1 // pred_region
      _
    $region45: #{tpu_custom_call.1} parent=1 // pred_fallthru
      _
    // Predicated region
    $region46: #{tpu_custom_call.1} parent=1 // pred_check
      _
    $region47: #{tpu_custom_call.1} parent=1 // pred_check_branch
      %166 = sbr.rel (0) target = $region49
    $region48: #{tpu_custom_call.1} parent=1 // pred_region
      %168 = vsyncadd [#allocation18], 0
      %s169 = sshll.u32 %s11, 4
      %s170 = int_to_ptr.hbm [resolvable:$true] %s169
      %s171 = sshll.u32 [#allocation19], 4
      %s172 = int_to_ptr.vmem [resolvable:$true] %s171
      %177 = dma.hbm_to_vmem [thread:$0]  %s170, 4096, %s172, [#allocation18], 64, 64, 4
    $region49: #{tpu_custom_call.1} parent=1 // pred_fallthru
      _
    // Predicated region
    $region50: #{tpu_custom_call.1} parent=1 // pred_check
      _
    $region51: #{tpu_custom_call.1} parent=1 // pred_check_branch
      %179 = sbr.rel (0) target = $region53
    $region52: #{tpu_custom_call.1} parent=1 // pred_region
      _
    $region53: #{tpu_custom_call.1} parent=1 // pred_fallthru
      _
    // Predicated region
    $region54: #{tpu_custom_call.1} parent=1 // pred_check
      _
    $region55: #{tpu_custom_call.1} parent=1 // pred_check_branch
      %181 = sbr.rel (0) target = $region57
    $region56: #{tpu_custom_call.1} parent=1 // pred_region
      _
    $region57: #{tpu_custom_call.1} parent=1 // pred_fallthru
      _
    // Predicated region
    $region58: #{tpu_custom_call.1} parent=1 // pred_check
      _
    $region59: #{tpu_custom_call.1} parent=1 // pred_check_branch
      %183 = sbr.rel (0) target = $region61
    $region60: #{tpu_custom_call.1} parent=1 // pred_region
      _
    $region61: #{tpu_custom_call.1} parent=1 // pred_fallthru
      _
    // Predicated region
    $region62: #{tpu_custom_call.1} parent=1 // pred_check
      _
    $region63: #{tpu_custom_call.1} parent=1 // pred_check_branch
      %185 = sbr.rel (0) target = $region65
    $region64: #{tpu_custom_call.1} parent=1 // pred_region
      %187 = vsyncadd [#allocation21], 0
      %s188 = sshll.u32 %s15, 4
      %s189 = int_to_ptr.hbm [resolvable:$true] %s188
      %s190 = sshll.u32 [#allocation20], 4
      %s191 = int_to_ptr.vmem [resolvable:$true] %s190
      %196 = dma.hbm_to_vmem [thread:$0]  %s189, 3072, %s191, [#allocation21], 192, 192, 12
    $region65: #{tpu_custom_call.1} parent=1 // pred_fallthru
      _
    // Predicated region
    $region66: #{tpu_custom_call.1} parent=1 // pred_check
      _
    $region67: #{tpu_custom_call.1} parent=1 // pred_check_branch
      %198 = sbr.rel (0) target = $region69
    $region68: #{tpu_custom_call.1} parent=1 // pred_region
      _
    $region69: #{tpu_custom_call.1} parent=1 // pred_fallthru
      _
    // Predicated region
    $region70: #{tpu_custom_call.1} parent=1 // pred_check
      _
    $region71: #{tpu_custom_call.1} parent=1 // pred_check_branch
      %200 = sbr.rel (0) target = $region73
    $region72: #{tpu_custom_call.1} parent=1 // pred_region
      %202 = dma.done [#allocation3], 512
    $region73: #{tpu_custom_call.1} parent=1 // pred_fallthru
      _
    // Predicated region
    $region74: #{tpu_custom_call.1} parent=1 // pred_check
      _
    $region75: #{tpu_custom_call.1} parent=1 // pred_check_branch
      %204 = sbr.rel (0) target = $region77
    $region76: #{tpu_custom_call.1} parent=1 // pred_region
      %206 = dma.done [#allocation6], 256
    $region77: #{tpu_custom_call.1} parent=1 // pred_fallthru
      _
    // Predicated region
    $region78: #{tpu_custom_call.1} parent=1 // pred_check
      _
    $region79: #{tpu_custom_call.1} parent=1 // pred_check_branch
      %208 = sbr.rel (0) target = $region81
    $region80: #{tpu_custom_call.1} parent=1 // pred_region
      %210 = dma.done [#allocation6], 256
    $region81: #{tpu_custom_call.1} parent=1 // pred_fallthru
      _
    // Predicated region
    $region82: #{tpu_custom_call.1} parent=1 // pred_check
      _
    $region83: #{tpu_custom_call.1} parent=1 // pred_check_branch
      %212 = sbr.rel (0) target = $region85
    $region84: #{tpu_custom_call.1} parent=1 // pred_region
      %214 = dma.done [#allocation9], 6144
    $region85: #{tpu_custom_call.1} parent=1 // pred_fallthru
      _
    // Predicated region
    $region86: #{tpu_custom_call.1} parent=1 // pred_check
      _
    $region87: #{tpu_custom_call.1} parent=1 // pred_check_branch
      %216 = sbr.rel (0) target = $region89
    $region88: #{tpu_custom_call.1} parent=1 // pred_region
      %218 = dma.done [#allocation9], 96
    $region89: #{tpu_custom_call.1} parent=1 // pred_fallthru
      _
    // Predicated region
    $region90: #{tpu_custom_call.1} parent=1 // pred_check
      _
    $region91: #{tpu_custom_call.1} parent=1 // pred_check_branch
      %220 = sbr.rel (0) target = $region93
    $region92: #{tpu_custom_call.1} parent=1 // pred_region
      %222 = dma.done [#allocation12], 2048
    $region93: #{tpu_custom_call.1} parent=1 // pred_fallthru
      _
    // Predicated region
    $region94: #{tpu_custom_call.1} parent=1 // pred_check
      _
    $region95: #{tpu_custom_call.1} parent=1 // pred_check_branch
      %224 = sbr.rel (0) target = $region97
    $region96: #{tpu_custom_call.1} parent=1 // pred_region
      %226 = dma.done [#allocation12], 32
    $region97: #{tpu_custom_call.1} parent=1 // pred_fallthru
      _
    // Predicated region
    $region98: #{tpu_custom_call.1} parent=1 // pred_check
      _
    $region99: #{tpu_custom_call.1} parent=1 // pred_check_branch
      %228 = sbr.rel (0) target = $region101
    $region100: #{tpu_custom_call.1} parent=1 // pred_region
      %230 = dma.done [#allocation15], 32
    $region101: #{tpu_custom_call.1} parent=1 // pred_fallthru
      _
    // Predicated region
    $region102: #{tpu_custom_call.1} parent=1 // pred_check
      _
    $region103: #{tpu_custom_call.1} parent=1 // pred_check_branch
      %232 = sbr.rel (0) target = $region105
    $region104: #{tpu_custom_call.1} parent=1 // pred_region
      %234 = dma.done [#allocation15], 32
    $region105: #{tpu_custom_call.1} parent=1 // pred_fallthru
      _
    // Predicated region
    $region106: #{tpu_custom_call.1} parent=1 // pred_check
      _
    $region107: #{tpu_custom_call.1} parent=1 // pred_check_branch
      %236 = sbr.rel (0) target = $region109
    $region108: #{tpu_custom_call.1} parent=1 // pred_region
      %238 = dma.done [#allocation18], 4096
    $region109: #{tpu_custom_call.1} parent=1 // pred_fallthru
      _
    // Predicated region
    $region110: #{tpu_custom_call.1} parent=1 // pred_check
      _
    $region111: #{tpu_custom_call.1} parent=1 // pred_check_branch
      %240 = sbr.rel (0) target = $region113
    $region112: #{tpu_custom_call.1} parent=1 // pred_region
      %242 = dma.done [#allocation18], 4096
    $region113: #{tpu_custom_call.1} parent=1 // pred_fallthru
      _
    // Predicated region
    $region114: #{tpu_custom_call.1} parent=1 // pred_check
      _
    $region115: #{tpu_custom_call.1} parent=1 // pred_check_branch
      %244 = sbr.rel (0) target = $region117
    $region116: #{tpu_custom_call.1} parent=1 // pred_region
      %246 = dma.done [#allocation21], 3072
    $region117: #{tpu_custom_call.1} parent=1 // pred_fallthru
      _
    %v248 = vld [vmem:[#allocation2] sm:$0xff]
    %v249 = vld [vmem:[#allocation2 + $0x8] sm:$0xff]
    %v250 = vld [vmem:[#allocation2 + $0x10] sm:$0xff]
    %v251 = vld [vmem:[#allocation2 + $0x18] sm:$0xff]
    %v252 = vmul.f32 %v248, 11.313708
    %v253 = vmul.f32 %v249, 11.313708
    %v254 = vmul.f32 %v250, 11.313708
    %v255 = vmul.f32 %v251, 11.313708
    %v256 = vld [vmem:[#allocation7] sm:$0xff]
    %v257 = vld [vmem:[#allocation7 + $0x8] sm:$0xff]
    %v258 = vadd.f32 %v252, %v256
    %v259 = vadd.f32 %v253, %v257
    %v260 = vadd.f32 %v254, %v256
    %v261 = vadd.f32 %v255, %v257
    %v262 = vld [vmem:[#allocation5] sm:$0xff]
    %v263 = vld [vmem:[#allocation5 + $0x8] sm:$0xff]
    %v264 = vpack.c.bf16 %v259, %v258
    %v265 = vpack.c.bf16 %v261, %v260
    %v266 = vld [vmem:[#allocation8] sm:$0xff]
    %v267 = vld [vmem:[#allocation8 + $0x8] sm:$0xf]
    %v268 = vld [vmem:[#allocation8 + $0xc] sm:$0xff]
    %v269 = vld [vmem:[#allocation8 + $0x14] sm:$0xf]
    %v270 = vld [vmem:[#allocation8 + $0x18] sm:$0xff]
    %v271 = vld [vmem:[#allocation8 + $0x20] sm:$0xf]
    %v272 = vld [vmem:[#allocation8 + $0x24] sm:$0xff]
    %v273 = vld [vmem:[#allocation8 + $0x2c] sm:$0xf]
    %v274 = vld [vmem:[#allocation8 + $0x30] sm:$0xff]
    %v275 = vld [vmem:[#allocation8 + $0x38] sm:$0xf]
    %v276 = vld [vmem:[#allocation8 + $0x3c] sm:$0xff]
    %v277 = vld [vmem:[#allocation8 + $0x44] sm:$0xf]
    %v278 = vld [vmem:[#allocation8 + $0x48] sm:$0xff]
    %v279 = vld [vmem:[#allocation8 + $0x50] sm:$0xf]
    %v280 = vld [vmem:[#allocation8 + $0x54] sm:$0xff]
    %v281 = vld [vmem:[#allocation8 + $0x5c] sm:$0xf]
    %v282 = vld [vmem:[#allocation8 + $0x60] sm:$0xff]
    %v283 = vld [vmem:[#allocation8 + $0x68] sm:$0xf]
    %v284 = vld [vmem:[#allocation8 + $0x6c] sm:$0xff]
    %v285 = vld [vmem:[#allocation8 + $0x74] sm:$0xf]
    %v286 = vld [vmem:[#allocation8 + $0x78] sm:$0xff]
    %v287 = vld [vmem:[#allocation8 + $0x80] sm:$0xf]
    %v288 = vld [vmem:[#allocation8 + $0x84] sm:$0xff]
    %v289 = vld [vmem:[#allocation8 + $0x8c] sm:$0xf]
    %v290 = vld [vmem:[#allocation8 + $0x90] sm:$0xff]
    %v291 = vld [vmem:[#allocation8 + $0x98] sm:$0xf]
    %v292 = vld [vmem:[#allocation8 + $0x9c] sm:$0xff]
    %v293 = vld [vmem:[#allocation8 + $0xa4] sm:$0xf]
    %v294 = vld [vmem:[#allocation8 + $0xa8] sm:$0xff]
    %v295 = vld [vmem:[#allocation8 + $0xb0] sm:$0xf]
    %v296 = vld [vmem:[#allocation8 + $0xb4] sm:$0xff]
    %v297 = vld [vmem:[#allocation8 + $0xbc] sm:$0xf]
    %v298 = vld [vmem:[#allocation10] sm:$0x7]
    %v300 = vperm.slane %v298, 0
    %v301 = vperm.slane %v298, 1
    %v302 = vperm.slane %v298, 2
    %v338 = vunpack.c.l.b16 %v266
    %v339 = vunpack.c.h.b16 %v266
    %v340 = vunpack.c.l.b16 %v267
    %v341 = vunpack.c.l.b16 %v268
    %v342 = vunpack.c.h.b16 %v268
    %v343 = vunpack.c.l.b16 %v269
    %v344 = vunpack.c.l.b16 %v270
    %v345 = vunpack.c.h.b16 %v270
    %v346 = vunpack.c.l.b16 %v271
    %v347 = vunpack.c.l.b16 %v272
    %v348 = vunpack.c.h.b16 %v272
    %v349 = vunpack.c.l.b16 %v273
    %v350 = vunpack.c.l.b16 %v274
    %v351 = vunpack.c.h.b16 %v274
    %v352 = vunpack.c.l.b16 %v275
    %v353 = vunpack.c.l.b16 %v276
    %v354 = vunpack.c.h.b16 %v276
    %v355 = vunpack.c.l.b16 %v277
    %v356 = vunpack.c.l.b16 %v278
    %v357 = vunpack.c.h.b16 %v278
    %v358 = vunpack.c.l.b16 %v279
    %v359 = vunpack.c.l.b16 %v280
    %v360 = vunpack.c.h.b16 %v280
    %v361 = vunpack.c.l.b16 %v281
    %v362 = vunpack.c.l.b16 %v282
    %v363 = vunpack.c.h.b16 %v282
    %v364 = vunpack.c.l.b16 %v283
    %v365 = vunpack.c.l.b16 %v284
    %v366 = vunpack.c.h.b16 %v284
    %v367 = vunpack.c.l.b16 %v285
    %v368 = vunpack.c.l.b16 %v286
    %v369 = vunpack.c.h.b16 %v286
    %v370 = vunpack.c.l.b16 %v287
    %v371 = vunpack.c.l.b16 %v288
    %v372 = vunpack.c.h.b16 %v288
    %v373 = vunpack.c.l.b16 %v289
    %v374 = vunpack.c.l.b16 %v290
    %v375 = vunpack.c.h.b16 %v290
    %v376 = vunpack.c.l.b16 %v291
    %v377 = vunpack.c.l.b16 %v292
    %v378 = vunpack.c.h.b16 %v292
    %v379 = vunpack.c.l.b16 %v293
    %v380 = vunpack.c.l.b16 %v294
    %v381 = vunpack.c.h.b16 %v294
    %v382 = vunpack.c.l.b16 %v295
    %v383 = vunpack.c.l.b16 %v296
    %v384 = vunpack.c.h.b16 %v296
    %v385 = vunpack.c.l.b16 %v297
    %v386 = vpack.c.b16 %v341, %v338
    %v387 = vpack.c.b16 %v342, %v339
    %v388 = vpack.c.b16 %v343, %v340
    %v389 = vpack.c.b16 %v347, %v344
    %v390 = vpack.c.b16 %v348, %v345
    %v391 = vpack.c.b16 %v349, %v346
    %v392 = vpack.c.b16 %v353, %v350
    %v393 = vpack.c.b16 %v354, %v351
    %v394 = vpack.c.b16 %v355, %v352
    %v395 = vpack.c.b16 %v359, %v356
    %v396 = vpack.c.b16 %v360, %v357
    %v397 = vpack.c.b16 %v361, %v358
    %v398 = vpack.c.b16 %v365, %v362
    %v399 = vpack.c.b16 %v366, %v363
    %v400 = vpack.c.b16 %v367, %v364
    %v401 = vpack.c.b16 %v371, %v368
    %v402 = vpack.c.b16 %v372, %v369
    %v403 = vpack.c.b16 %v373, %v370
    %v404 = vpack.c.b16 %v377, %v374
    %v405 = vpack.c.b16 %v378, %v375
    %v406 = vpack.c.b16 %v379, %v376
    %v407 = vpack.c.b16 %v383, %v380
    %v408 = vpack.c.b16 %v384, %v381
    %v409 = vpack.c.b16 %v385, %v382
    %434 = vmatpush.bf16.msra.mxu0 %v407
    %435 = vmatpush.bf16.msra.mxu0 %v404
    %436 = vmatpush.bf16.msra.mxu0 %v401
    %437 = vmatpush.bf16.msra.mxu0 %v398
    %438 = vmatpush.bf16.msra.mxu0 %v395
    %439 = vmatpush.bf16.msra.mxu0 %v392
    %440 = vmatpush.bf16.msra.mxu0 %v389
    %441 = vmatpush.bf16.msra.mxu0 %v386
    %442 = vmatmul.bf16.gmra.mxu0 %v264
    %v443 = vpop.f32.mrf.mxu0
    %v444 = vadd.f32 %v300, %v443
    %v445 = vpop.f32.mrf.mxu0
    %v446 = vadd.f32 %v300, %v445
    %447 = vmatmul.bf16.gmra.mxu0 %v265
    %v448 = vpop.f32.mrf.mxu0
    %v449 = vadd.f32 %v300, %v448
    %v450 = vpop.f32.mrf.mxu0
    %v451 = vadd.f32 %v300, %v450
    %452 = vdwg.mxu0
    %453 = vmatpush.bf16.msra.mxu0 %v408
    %454 = vmatpush.bf16.msra.mxu0 %v405
    %455 = vmatpush.bf16.msra.mxu0 %v402
    %456 = vmatpush.bf16.msra.mxu0 %v399
    %457 = vmatpush.bf16.msra.mxu0 %v396
    %458 = vmatpush.bf16.msra.mxu0 %v393
    %459 = vmatpush.bf16.msra.mxu0 %v390
    %460 = vmatpush.bf16.msra.mxu0 %v387
    %461 = vmatmul.bf16.gmra.mxu0 %v264
    %v462 = vpop.f32.mrf.mxu0
    %v463 = vadd.f32 %v301, %v462
    %v464 = vpop.f32.mrf.mxu0
    %v465 = vadd.f32 %v301, %v464
    %466 = vmatmul.bf16.gmra.mxu0 %v265
    %v467 = vpop.f32.mrf.mxu0
    %v468 = vadd.f32 %v301, %v467
    %v469 = vpop.f32.mrf.mxu0
    %v470 = vadd.f32 %v301, %v469
    %471 = vdwg.mxu0
    %472 = vmatpush.bf16.msra.mxu0 %v409
    %473 = vmatpush.bf16.msra.mxu0 %v406
    %474 = vmatpush.bf16.msra.mxu0 %v403
    %475 = vmatpush.bf16.msra.mxu0 %v400
    %476 = vmatpush.bf16.msra.mxu0 %v397
    %477 = vmatpush.bf16.msra.mxu0 %v394
    %478 = vmatpush.bf16.msra.mxu0 %v391
    %479 = vmatpush.bf16.msra.mxu0 %v388
    %480 = vmatmul.bf16.gmra.mxu0 %v264
    %v481 = vpop.f32.mrf.mxu0
    %v482 = vadd.f32 %v302, %v481
    %v483 = vpop.f32.mrf.mxu0
    %v484 = vadd.f32 %v302, %v483
    %485 = vmatmul.bf16.gmra.mxu0 %v265
    %v486 = vpop.f32.mrf.mxu0
    %v487 = vadd.f32 %v302, %v486
    %v488 = vpop.f32.mrf.mxu0
    %v489 = vadd.f32 %v302, %v488
    %490 = vdwg.mxu0
    %v491 = vpack.c.bf16 %v444, %v444
    %v492 = vpack.c.bf16 %v446, %v446
    %v493 = vpack.c.bf16 %v449, %v449
    %v494 = vpack.c.bf16 %v451, %v451
    %v495 = vpack.c.bf16 %v463, %v463
    %v496 = vpack.c.bf16 %v465, %v465
    %v497 = vpack.c.bf16 %v468, %v468
    %v498 = vpack.c.bf16 %v470, %v470
    %v499 = vpack.c.bf16 %v482, %v482
    %v500 = vpack.c.bf16 %v484, %v484
    %v501 = vpack.c.bf16 %v487, %v487
    %v502 = vpack.c.bf16 %v489, %v489
    %v505 = vunpack.c.l.b16 %v491
    %v506 = vunpack.c.l.b16 %v492
    %v507 = vpack.c.b16 %v506, %v505
    %v510 = vunpack.c.l.b16 %v495
    %v511 = vunpack.c.l.b16 %v496
    %v512 = vpack.c.b16 %v511, %v510
    %vm513 = vcmask 523264
    %v515 = vsel %vm513, %v507, 0
    %v518 = vsel %vm513, %v512, 0
    %520 = vmatpush.bf16.xpose.msra.mxu0 0
    %521 = vmatpush.bf16.xpose.msra.mxu0 0
    %522 = vmatpush.bf16.xpose.msra.mxu0 0
    %523 = vmatpush.bf16.xpose.msra.mxu0 0
    %524 = vmatpush.bf16.xpose.msra.mxu0 0
    %525 = vmatpush.bf16.xpose.msra.mxu0 0
    %526 = vmatpush.bf16.xpose.msra.mxu0 0
    %527 = vmatpush.bf16.xpose.msra.mxu0 %v518
    %528 = vmatmul.bf16.gmra.mxu0 %v515
    %v529 = vpop.f32.mrf.mxu0
    %v530 = vadd.f32 0.0, %v529
    %v531 = vpop.f32.mrf.mxu0
    %v532 = vadd.f32 0.0, %v531
    %533 = vdwg.mxu0
    %v536 = vunpack.c.l.b16 %v493
    %v537 = vunpack.c.l.b16 %v494
    %v538 = vpack.c.b16 %v537, %v536
    %v541 = vunpack.c.l.b16 %v497
    %v542 = vunpack.c.l.b16 %v498
    %v543 = vpack.c.b16 %v542, %v541
    %v545 = vsel %vm513, %v538, 0
    %v548 = vsel %vm513, %v543, 0
    %550 = vmatpush.bf16.xpose.msra.mxu0 0
    %551 = vmatpush.bf16.xpose.msra.mxu0 0
    %552 = vmatpush.bf16.xpose.msra.mxu0 0
    %553 = vmatpush.bf16.xpose.msra.mxu0 0
    %554 = vmatpush.bf16.xpose.msra.mxu0 0
    %555 = vmatpush.bf16.xpose.msra.mxu0 0
    %556 = vmatpush.bf16.xpose.msra.mxu0 0
    %557 = vmatpush.bf16.xpose.msra.mxu0 %v548
    %558 = vmatmul.bf16.gmra.mxu0 %v545
    %v559 = vpop.f32.mrf.mxu0
    %v560 = vadd.f32 0.0, %v559
    %v561 = vpop.f32.mrf.mxu0
    %v562 = vadd.f32 0.0, %v561
    %563 = vdwg.mxu0
    %v564 = vmul.f32 %v530, 0.125
    %v565 = vmul.f32 %v532, 0.125
    %v566 = vmul.f32 %v560, 0.125
    %v567 = vmul.f32 %v562, 0.125
    %v568 = vadd.f32 %v564, %v262
    %v569 = vadd.f32 %v565, %v263
    %v570 = vadd.f32 %v566, %v262
    %v571 = vadd.f32 %v567, %v263
    %vm572 = vcmask 130048
    %v573 = vsel %vm572, %v568, -inf
    %574 = vmax.xlane.f32.xlu0 %v573
    %v575 = vpop.xlane.xlu0 %574
    %v576 = vsel %vm572, %v569, -inf
    %577 = vmax.xlane.f32.xlu0 %v576
    %v578 = vpop.xlane.xlu0 %577
    %v579 = vsel %vm572, %v570, -inf
    %580 = vmax.xlane.f32.xlu0 %v579
    %v581 = vpop.xlane.xlu0 %580
    %v582 = vsel %vm572, %v571, -inf
    %583 = vmax.xlane.f32.xlu0 %v582
    %v584 = vpop.xlane.xlu0 %583
    %v585 = vsub.f32 %v568, %v575
    %v586 = vsub.f32 %v569, %v578
    %v587 = vsub.f32 %v570, %v581
    %v588 = vsub.f32 %v571, %v584
    %v589 = vmul.f32 %v585, 1.442695
    %v590 = vpow.pop %v589
    %v591 = vmul.f32 %v586, 1.442695
    %v592 = vpow.pop %v591
    %v593 = vmul.f32 %v587, 1.442695
    %v594 = vpow.pop %v593
    %v595 = vmul.f32 %v588, 1.442695
    %v596 = vpow.pop %v595
    %v597 = vsel %vm572, %v590, 0.0
    %598 = vadd.xlane.f32.xlu0 %v597
    %v599 = vpop.xlane.xlu0 %598
    %v600 = vsel %vm572, %v592, 0.0
    %601 = vadd.xlane.f32.xlu0 %v600
    %v602 = vpop.xlane.xlu0 %601
    %v603 = vsel %vm572, %v594, 0.0
    %604 = vadd.xlane.f32.xlu0 %v603
    %v605 = vpop.xlane.xlu0 %604
    %v606 = vsel %vm572, %v596, 0.0
    %607 = vadd.xlane.f32.xlu0 %v606
    %v608 = vpop.xlane.xlu0 %607
    %v609 = vrcp.pop %v599
    %v610 = vmul.f32 %v599, %v609
    %v611 = vsub.f32 1.0, %v610
    %v612 = vmul.f32 %v609, %v611
    %v613 = vadd.f32 %v609, %v612
    %vm614 = vweird.f32 %v599
    %vm615 = vweird.f32 %v609
    %vm616 = vmor %vm614, %vm615
    %v617 = vsel %vm616, %v609, %v613
    %v618 = vand.u32 2147483647, %v599
    %vm619 = vcmp.eq.f32.partialorder %v618, 8.507059e+37
    %v620 = vand.u32 %v599, 2147483648
    %v621 = vor.u32 1.1754944e-38, %v620
    %v622 = vsel %vm619, %v621, %v617
    %v623 = vmul.f32 %v590, %v622
    %v624 = vrcp.pop %v602
    %v625 = vmul.f32 %v602, %v624
    %v626 = vsub.f32 1.0, %v625
    %v627 = vmul.f32 %v624, %v626
    %v628 = vadd.f32 %v624, %v627
    %vm629 = vweird.f32 %v602
    %vm630 = vweird.f32 %v624
    %vm631 = vmor %vm629, %vm630
    %v632 = vsel %vm631, %v624, %v628
    %v633 = vand.u32 2147483647, %v602
    %vm634 = vcmp.eq.f32.partialorder %v633, 8.507059e+37
    %v635 = vand.u32 %v602, 2147483648
    %v636 = vor.u32 1.1754944e-38, %v635
    %v637 = vsel %vm634, %v636, %v632
    %v638 = vmul.f32 %v592, %v637
    %v639 = vrcp.pop %v605
    %v640 = vmul.f32 %v605, %v639
    %v641 = vsub.f32 1.0, %v640
    %v642 = vmul.f32 %v639, %v641
    %v643 = vadd.f32 %v639, %v642
    %vm644 = vweird.f32 %v605
    %vm645 = vweird.f32 %v639
    %vm646 = vmor %vm644, %vm645
    %v647 = vsel %vm646, %v639, %v643
    %v648 = vand.u32 2147483647, %v605
    %vm649 = vcmp.eq.f32.partialorder %v648, 8.507059e+37
    %v650 = vand.u32 %v605, 2147483648
    %v651 = vor.u32 1.1754944e-38, %v650
    %v652 = vsel %vm649, %v651, %v647
    %v653 = vmul.f32 %v594, %v652
    %v654 = vrcp.pop %v608
    %v655 = vmul.f32 %v608, %v654
    %v656 = vsub.f32 1.0, %v655
    %v657 = vmul.f32 %v654, %v656
    %v658 = vadd.f32 %v654, %v657
    %vm659 = vweird.f32 %v608
    %vm660 = vweird.f32 %v654
    %vm661 = vmor %vm659, %vm660
    %v662 = vsel %vm661, %v654, %v658
    %v663 = vand.u32 2147483647, %v608
    %vm664 = vcmp.eq.f32.partialorder %v663, 8.507059e+37
    %v665 = vand.u32 %v608, 2147483648
    %v666 = vor.u32 1.1754944e-38, %v665
    %v667 = vsel %vm664, %v666, %v662
    %v668 = vmul.f32 %v596, %v667
    %v669 = vpack.c.bf16 %v623, %v623
    %v670 = vpack.c.bf16 %v638, %v638
    %v671 = vpack.c.bf16 %v653, %v653
    %v672 = vpack.c.bf16 %v668, %v668
    %v675 = vunpack.c.l.b16 %v669
    %v676 = vunpack.c.l.b16 %v670
    %v677 = vpack.c.b16 %v676, %v675
    %v680 = vunpack.c.l.b16 %v499
    %v681 = vunpack.c.l.b16 %v500
    %v682 = vpack.c.b16 %v681, %v680
    %v685 = vsel %vm572, %v677, 0
    %687 = vmatpush.bf16.msra.mxu0 0
    %688 = vmatpush.bf16.msra.mxu0 0
    %689 = vmatpush.bf16.msra.mxu0 0
    %690 = vmatpush.bf16.msra.mxu0 0
    %691 = vmatpush.bf16.msra.mxu0 0
    %692 = vmatpush.bf16.msra.mxu0 0
    %693 = vmatpush.bf16.msra.mxu0 0
    %694 = vmatpush.bf16.msra.mxu0 %v682
    %695 = vmatmul.bf16.gmra.mxu0 %v685
    %v696 = vpop.f32.mrf.mxu0
    %v697 = vadd.f32 0.0, %v696
    %v698 = vpop.f32.mrf.mxu0
    %v699 = vadd.f32 0.0, %v698
    %700 = vdwg.mxu0
    %v703 = vunpack.c.l.b16 %v671
    %v704 = vunpack.c.l.b16 %v672
    %v705 = vpack.c.b16 %v704, %v703
    %v708 = vunpack.c.l.b16 %v501
    %v709 = vunpack.c.l.b16 %v502
    %v710 = vpack.c.b16 %v709, %v708
    %v713 = vsel %vm572, %v705, 0
    %715 = vmatpush.bf16.msra.mxu0 0
    %716 = vmatpush.bf16.msra.mxu0 0
    %717 = vmatpush.bf16.msra.mxu0 0
    %718 = vmatpush.bf16.msra.mxu0 0
    %719 = vmatpush.bf16.msra.mxu0 0
    %720 = vmatpush.bf16.msra.mxu0 0
    %721 = vmatpush.bf16.msra.mxu0 0
    %722 = vmatpush.bf16.msra.mxu0 %v710
    %723 = vmatmul.bf16.gmra.mxu0 %v713
    %v724 = vpop.f32.mrf.mxu0
    %v725 = vadd.f32 0.0, %v724
    %v726 = vpop.f32.mrf.mxu0
    %v727 = vadd.f32 0.0, %v726
    %728 = vdwg.mxu0
    %729 = vrot.lane.b32.xlu0 %v507, 64
    %v730 = vpop.permute.xlu0 %729
    %731 = vrot.lane.b32.xlu0 %v512, 64
    %v732 = vpop.permute.xlu0 %731
    %v734 = vsel %vm513, %v730, 0
    %v737 = vsel %vm513, %v732, 0
    %739 = vmatpush.bf16.xpose.msra.mxu0 0
    %740 = vmatpush.bf16.xpose.msra.mxu0 0
    %741 = vmatpush.bf16.xpose.msra.mxu0 0
    %742 = vmatpush.bf16.xpose.msra.mxu0 0
    %743 = vmatpush.bf16.xpose.msra.mxu0 0
    %744 = vmatpush.bf16.xpose.msra.mxu0 0
    %745 = vmatpush.bf16.xpose.msra.mxu0 0
    %746 = vmatpush.bf16.xpose.msra.mxu0 %v737
    %747 = vmatmul.bf16.gmra.mxu0 %v734
    %v748 = vpop.f32.mrf.mxu0
    %v749 = vadd.f32 0.0, %v748
    %v750 = vpop.f32.mrf.mxu0
    %v751 = vadd.f32 0.0, %v750
    %752 = vdwg.mxu0
    %753 = vrot.lane.b32.xlu0 %v538, 64
    %v754 = vpop.permute.xlu0 %753
    %755 = vrot.lane.b32.xlu0 %v543, 64
    %v756 = vpop.permute.xlu0 %755
    %v758 = vsel %vm513, %v754, 0
    %v761 = vsel %vm513, %v756, 0
    %763 = vmatpush.bf16.xpose.msra.mxu0 0
    %764 = vmatpush.bf16.xpose.msra.mxu0 0
    %765 = vmatpush.bf16.xpose.msra.mxu0 0
    %766 = vmatpush.bf16.xpose.msra.mxu0 0
    %767 = vmatpush.bf16.xpose.msra.mxu0 0
    %768 = vmatpush.bf16.xpose.msra.mxu0 0
    %769 = vmatpush.bf16.xpose.msra.mxu0 0
    %770 = vmatpush.bf16.xpose.msra.mxu0 %v761
    %771 = vmatmul.bf16.gmra.mxu0 %v758
    %v772 = vpop.f32.mrf.mxu0
    %v773 = vadd.f32 0.0, %v772
    %v774 = vpop.f32.mrf.mxu0
    %v775 = vadd.f32 0.0, %v774
    %776 = vdwg.mxu0
    %v777 = vmul.f32 %v749, 0.125
    %v778 = vmul.f32 %v751, 0.125
    %v779 = vmul.f32 %v773, 0.125
    %v780 = vmul.f32 %v775, 0.125
    %v781 = vadd.f32 %v777, %v262
    %v782 = vadd.f32 %v778, %v263
    %v783 = vadd.f32 %v779, %v262
    %v784 = vadd.f32 %v780, %v263
    %v785 = vsel %vm572, %v781, -inf
    %786 = vmax.xlane.f32.xlu0 %v785
    %v787 = vpop.xlane.xlu0 %786
    %v788 = vsel %vm572, %v782, -inf
    %789 = vmax.xlane.f32.xlu0 %v788
    %v790 = vpop.xlane.xlu0 %789
    %v791 = vsel %vm572, %v783, -inf
    %792 = vmax.xlane.f32.xlu0 %v791
    %v793 = vpop.xlane.xlu0 %792
    %v794 = vsel %vm572, %v784, -inf
    %795 = vmax.xlane.f32.xlu0 %v794
    %v796 = vpop.xlane.xlu0 %795
    %v797 = vsub.f32 %v781, %v787
    %v798 = vsub.f32 %v782, %v790
    %v799 = vsub.f32 %v783, %v793
    %v800 = vsub.f32 %v784, %v796
    %v801 = vmul.f32 %v797, 1.442695
    %v802 = vpow.pop %v801
    %v803 = vmul.f32 %v798, 1.442695
    %v804 = vpow.pop %v803
    %v805 = vmul.f32 %v799, 1.442695
    %v806 = vpow.pop %v805
    %v807 = vmul.f32 %v800, 1.442695
    %v808 = vpow.pop %v807
    %v809 = vsel %vm572, %v802, 0.0
    %810 = vadd.xlane.f32.xlu0 %v809
    %v811 = vpop.xlane.xlu0 %810
    %v812 = vsel %vm572, %v804, 0.0
    %813 = vadd.xlane.f32.xlu0 %v812
    %v814 = vpop.xlane.xlu0 %813
    %v815 = vsel %vm572, %v806, 0.0
    %816 = vadd.xlane.f32.xlu0 %v815
    %v817 = vpop.xlane.xlu0 %816
    %v818 = vsel %vm572, %v808, 0.0
    %819 = vadd.xlane.f32.xlu0 %v818
    %v820 = vpop.xlane.xlu0 %819
    %v821 = vrcp.pop %v811
    %v822 = vmul.f32 %v811, %v821
    %v823 = vsub.f32 1.0, %v822
    %v824 = vmul.f32 %v821, %v823
    %v825 = vadd.f32 %v821, %v824
    %vm826 = vweird.f32 %v811
    %vm827 = vweird.f32 %v821
    %vm828 = vmor %vm826, %vm827
    %v829 = vsel %vm828, %v821, %v825
    %v830 = vand.u32 2147483647, %v811
    %vm831 = vcmp.eq.f32.partialorder %v830, 8.507059e+37
    %v832 = vand.u32 %v811, 2147483648
    %v833 = vor.u32 1.1754944e-38, %v832
    %v834 = vsel %vm831, %v833, %v829
    %v835 = vmul.f32 %v802, %v834
    %v836 = vrcp.pop %v814
    %v837 = vmul.f32 %v814, %v836
    %v838 = vsub.f32 1.0, %v837
    %v839 = vmul.f32 %v836, %v838
    %v840 = vadd.f32 %v836, %v839
    %vm841 = vweird.f32 %v814
    %vm842 = vweird.f32 %v836
    %vm843 = vmor %vm841, %vm842
    %v844 = vsel %vm843, %v836, %v840
    %v845 = vand.u32 2147483647, %v814
    %vm846 = vcmp.eq.f32.partialorder %v845, 8.507059e+37
    %v847 = vand.u32 %v814, 2147483648
    %v848 = vor.u32 1.1754944e-38, %v847
    %v849 = vsel %vm846, %v848, %v844
    %v850 = vmul.f32 %v804, %v849
    %v851 = vrcp.pop %v817
    %v852 = vmul.f32 %v817, %v851
    %v853 = vsub.f32 1.0, %v852
    %v854 = vmul.f32 %v851, %v853
    %v855 = vadd.f32 %v851, %v854
    %vm856 = vweird.f32 %v817
    %vm857 = vweird.f32 %v851
    %vm858 = vmor %vm856, %vm857
    %v859 = vsel %vm858, %v851, %v855
    %v860 = vand.u32 2147483647, %v817
    %vm861 = vcmp.eq.f32.partialorder %v860, 8.507059e+37
    %v862 = vand.u32 %v817, 2147483648
    %v863 = vor.u32 1.1754944e-38, %v862
    %v864 = vsel %vm861, %v863, %v859
    %v865 = vmul.f32 %v806, %v864
    %v866 = vrcp.pop %v820
    %v867 = vmul.f32 %v820, %v866
    %v868 = vsub.f32 1.0, %v867
    %v869 = vmul.f32 %v866, %v868
    %v870 = vadd.f32 %v866, %v869
    %vm871 = vweird.f32 %v820
    %vm872 = vweird.f32 %v866
    %vm873 = vmor %vm871, %vm872
    %v874 = vsel %vm873, %v866, %v870
    %v875 = vand.u32 2147483647, %v820
    %vm876 = vcmp.eq.f32.partialorder %v875, 8.507059e+37
    %v877 = vand.u32 %v820, 2147483648
    %v878 = vor.u32 1.1754944e-38, %v877
    %v879 = vsel %vm876, %v878, %v874
    %v880 = vmul.f32 %v808, %v879
    %v881 = vpack.c.bf16 %v835, %v835
    %v882 = vpack.c.bf16 %v850, %v850
    %v883 = vpack.c.bf16 %v865, %v865
    %v884 = vpack.c.bf16 %v880, %v880
    %v887 = vunpack.c.l.b16 %v881
    %v888 = vunpack.c.l.b16 %v882
    %v889 = vpack.c.b16 %v888, %v887
    %890 = vrot.lane.b32.xlu0 %v682, 64
    %v891 = vpop.permute.xlu0 %890
    %v894 = vsel %vm572, %v889, 0
    %896 = vmatpush.bf16.msra.mxu0 0
    %897 = vmatpush.bf16.msra.mxu0 0
    %898 = vmatpush.bf16.msra.mxu0 0
    %899 = vmatpush.bf16.msra.mxu0 0
    %900 = vmatpush.bf16.msra.mxu0 0
    %901 = vmatpush.bf16.msra.mxu0 0
    %902 = vmatpush.bf16.msra.mxu0 0
    %903 = vmatpush.bf16.msra.mxu0 %v891
    %904 = vmatmul.bf16.gmra.mxu0 %v894
    %v905 = vpop.f32.mrf.mxu0
    %v906 = vadd.f32 0.0, %v905
    %v907 = vpop.f32.mrf.mxu0
    %v908 = vadd.f32 0.0, %v907
    %909 = vdwg.mxu0
    %v912 = vunpack.c.l.b16 %v883
    %v913 = vunpack.c.l.b16 %v884
    %v914 = vpack.c.b16 %v913, %v912
    %915 = vrot.lane.b32.xlu0 %v710, 64
    %v916 = vpop.permute.xlu0 %915
    %v919 = vsel %vm572, %v914, 0
    %921 = vmatpush.bf16.msra.mxu0 0
    %922 = vmatpush.bf16.msra.mxu0 0
    %923 = vmatpush.bf16.msra.mxu0 0
    %924 = vmatpush.bf16.msra.mxu0 0
    %925 = vmatpush.bf16.msra.mxu0 0
    %926 = vmatpush.bf16.msra.mxu0 0
    %927 = vmatpush.bf16.msra.mxu0 0
    %928 = vmatpush.bf16.msra.mxu0 %v916
    %929 = vmatmul.bf16.gmra.mxu0 %v919
    %v930 = vpop.f32.mrf.mxu0
    %v931 = vadd.f32 0.0, %v930
    %v932 = vpop.f32.mrf.mxu0
    %v933 = vadd.f32 0.0, %v932
    %934 = vdwg.mxu0
    %939 = vrot.lane.b32.xlu0 %v906, 64
    %v940 = vpop.permute.xlu0 %939
    %941 = vrot.lane.b32.xlu0 %v908, 64
    %v942 = vpop.permute.xlu0 %941
    %943 = vrot.lane.b32.xlu0 %v931, 64
    %v944 = vpop.permute.xlu0 %943
    %945 = vrot.lane.b32.xlu0 %v933, 64
    %v946 = vpop.permute.xlu0 %945
    %v951 = vsel %vm513, %v697, %v940
    %v952 = vsel %vm513, %v699, %v942
    %v953 = vsel %vm513, %v725, %v944
    %v954 = vsel %vm513, %v727, %v946
    %v955 = vpack.c.bf16 %v952, %v951
    %v956 = vpack.c.bf16 %v954, %v953
    %v957 = vld [vmem:[#allocation11] sm:$0xf]
    %v958 = vld [vmem:[#allocation11 + $0x4] sm:$0xf]
    %v959 = vld [vmem:[#allocation11 + $0x8] sm:$0xf]
    %v960 = vld [vmem:[#allocation11 + $0xc] sm:$0xf]
    %v961 = vld [vmem:[#allocation11 + $0x10] sm:$0xf]
    %v962 = vld [vmem:[#allocation11 + $0x14] sm:$0xf]
    %v963 = vld [vmem:[#allocation11 + $0x18] sm:$0xf]
    %v964 = vld [vmem:[#allocation11 + $0x1c] sm:$0xf]
    %v965 = vld [vmem:[#allocation11 + $0x20] sm:$0xf]
    %v966 = vld [vmem:[#allocation11 + $0x24] sm:$0xf]
    %v967 = vld [vmem:[#allocation11 + $0x28] sm:$0xf]
    %v968 = vld [vmem:[#allocation11 + $0x2c] sm:$0xf]
    %v969 = vld [vmem:[#allocation11 + $0x30] sm:$0xf]
    %v970 = vld [vmem:[#allocation11 + $0x34] sm:$0xf]
    %v971 = vld [vmem:[#allocation11 + $0x38] sm:$0xf]
    %v972 = vld [vmem:[#allocation11 + $0x3c] sm:$0xf]
    %v973 = vld [vmem:[#allocation13] sm:$0x1]
    %v975 = vperm.slane %v973, 0
    %v993 = vunpack.c.l.b16 %v957
    %v994 = vunpack.c.l.b16 %v958
    %v995 = vunpack.c.l.b16 %v959
    %v996 = vunpack.c.l.b16 %v960
    %v997 = vunpack.c.l.b16 %v961
    %v998 = vunpack.c.l.b16 %v962
    %v999 = vunpack.c.l.b16 %v963
    %v1000 = vunpack.c.l.b16 %v964
    %v1001 = vunpack.c.l.b16 %v965
    %v1002 = vunpack.c.l.b16 %v966
    %v1003 = vunpack.c.l.b16 %v967
    %v1004 = vunpack.c.l.b16 %v968
    %v1005 = vunpack.c.l.b16 %v969
    %v1006 = vunpack.c.l.b16 %v970
    %v1007 = vunpack.c.l.b16 %v971
    %v1008 = vunpack.c.l.b16 %v972
    %v1009 = vpack.c.b16 %v994, %v993
    %v1010 = vpack.c.b16 %v996, %v995
    %v1011 = vpack.c.b16 %v998, %v997
    %v1012 = vpack.c.b16 %v1000, %v999
    %v1013 = vpack.c.b16 %v1002, %v1001
    %v1014 = vpack.c.b16 %v1004, %v1003
    %v1015 = vpack.c.b16 %v1006, %v1005
    %v1016 = vpack.c.b16 %v1008, %v1007
    %1025 = vmatpush.bf16.msra.mxu0 %v1016
    %1026 = vmatpush.bf16.msra.mxu0 %v1015
    %1027 = vmatpush.bf16.msra.mxu0 %v1014
    %1028 = vmatpush.bf16.msra.mxu0 %v1013
    %1029 = vmatpush.bf16.msra.mxu0 %v1012
    %1030 = vmatpush.bf16.msra.mxu0 %v1011
    %1031 = vmatpush.bf16.msra.mxu0 %v1010
    %1032 = vmatpush.bf16.msra.mxu0 %v1009
    %1033 = vmatmul.bf16.gmra.mxu0 %v955
    %v1034 = vpop.f32.mrf.mxu0
    %v1035 = vadd.f32 %v975, %v1034
    %v1036 = vpop.f32.mrf.mxu0
    %v1037 = vadd.f32 %v975, %v1036
    %1038 = vmatmul.bf16.gmra.mxu0 %v956
    %v1039 = vpop.f32.mrf.mxu0
    %v1040 = vadd.f32 %v975, %v1039
    %v1041 = vpop.f32.mrf.mxu0
    %v1042 = vadd.f32 %v975, %v1041
    %1043 = vdwg.mxu0
    %v1044 = vadd.f32 %v258, %v1035
    %v1045 = vadd.f32 %v259, %v1037
    %v1046 = vadd.f32 %v260, %v1040
    %v1047 = vadd.f32 %v261, %v1042
    %v1048 = vld [vmem:[#allocation14] sm:$0x1]
    %v1049 = vld [vmem:[#allocation16] sm:$0x1]
    %1050 = vadd.xlane.f32.xlu0 %v1044
    %v1051 = vpop.xlane.xlu0 %1050
    %1052 = vadd.xlane.f32.xlu0 %v1045
    %v1053 = vpop.xlane.xlu0 %1052
    %1054 = vadd.xlane.f32.xlu0 %v1046
    %v1055 = vpop.xlane.xlu0 %1054
    %1056 = vadd.xlane.f32.xlu0 %v1047
    %v1057 = vpop.xlane.xlu0 %1056
    %v1058 = vrcp.pop 128.0
    %v1059 = vmul.f32 128.0, %v1058
    %v1060 = vsub.f32 1.0, %v1059
    %v1061 = vmul.f32 %v1058, %v1060
    %v1062 = vadd.f32 %v1058, %v1061
    %vm1063 = vweird.f32 %v1058
    %v1064 = vsel %vm1063, %v1058, %v1062
    %v1065 = vmul.f32 %v1051, %v1064
    %v1066 = vmul.f32 %v1053, %v1064
    %v1067 = vmul.f32 %v1055, %v1064
    %v1068 = vmul.f32 %v1057, %v1064
    %v1069 = vsub.f32 %v1044, %v1065
    %v1070 = vsub.f32 %v1045, %v1066
    %v1071 = vsub.f32 %v1046, %v1067
    %v1072 = vsub.f32 %v1047, %v1068
    %v1073 = vmul.f32 %v1069, %v1069
    %v1074 = vmul.f32 %v1070, %v1070
    %v1075 = vmul.f32 %v1071, %v1071
    %v1076 = vmul.f32 %v1072, %v1072
    %1077 = vadd.xlane.f32.xlu0 %v1073
    %v1078 = vpop.xlane.xlu0 %1077
    %1079 = vadd.xlane.f32.xlu0 %v1074
    %v1080 = vpop.xlane.xlu0 %1079
    %1081 = vadd.xlane.f32.xlu0 %v1075
    %v1082 = vpop.xlane.xlu0 %1081
    %1083 = vadd.xlane.f32.xlu0 %v1076
    %v1084 = vpop.xlane.xlu0 %1083
    %v1085 = vmul.f32 %v1078, %v1064
    %v1086 = vmul.f32 %v1080, %v1064
    %v1087 = vmul.f32 %v1082, %v1064
    %v1088 = vmul.f32 %v1084, %v1064
    %v1089 = vadd.f32 %v1085, 1e-05
    %v1090 = vadd.f32 %v1086, 1e-05
    %v1091 = vadd.f32 %v1087, 1e-05
    %v1092 = vadd.f32 %v1088, 1e-05
    %v1093 = vrsqrt.pop %v1089
    %v1094 = vmul.f32 %v1093, %v1089
    %v1095 = vmul.f32 %v1094, %v1093
    %v1096 = vmul.f32 0.5, %v1095
    %v1097 = vsub.f32 1.5, %v1096
    %v1098 = vmul.f32 %v1093, %v1097
    %vm1099 = vweird.f32 %v1089
    %vm1100 = vweird.f32 %v1093
    %vm1101 = vmor %vm1099, %vm1100
    %v1102 = vsel %vm1101, %v1093, %v1098
    %v1103 = vrsqrt.pop %v1090
    %v1104 = vmul.f32 %v1103, %v1090
    %v1105 = vmul.f32 %v1104, %v1103
    %v1106 = vmul.f32 0.5, %v1105
    %v1107 = vsub.f32 1.5, %v1106
    %v1108 = vmul.f32 %v1103, %v1107
    %vm1109 = vweird.f32 %v1090
    %vm1110 = vweird.f32 %v1103
    %vm1111 = vmor %vm1109, %vm1110
    %v1112 = vsel %vm1111, %v1103, %v1108
    %v1113 = vrsqrt.pop %v1091
    %v1114 = vmul.f32 %v1113, %v1091
    %v1115 = vmul.f32 %v1114, %v1113
    %v1116 = vmul.f32 0.5, %v1115
    %v1117 = vsub.f32 1.5, %v1116
    %v1118 = vmul.f32 %v1113, %v1117
    %vm1119 = vweird.f32 %v1091
    %vm1120 = vweird.f32 %v1113
    %vm1121 = vmor %vm1119, %vm1120
    %v1122 = vsel %vm1121, %v1113, %v1118
    %v1123 = vrsqrt.pop %v1092
    %v1124 = vmul.f32 %v1123, %v1092
    %v1125 = vmul.f32 %v1124, %v1123
    %v1126 = vmul.f32 0.5, %v1125
    %v1127 = vsub.f32 1.5, %v1126
    %v1128 = vmul.f32 %v1123, %v1127
    %vm1129 = vweird.f32 %v1092
    %vm1130 = vweird.f32 %v1123
    %vm1131 = vmor %vm1129, %vm1130
    %v1132 = vsel %vm1131, %v1123, %v1128
    %v1133 = vmul.f32 %v1069, %v1102
    %v1134 = vmul.f32 %v1070, %v1112
    %v1135 = vmul.f32 %v1071, %v1122
    %v1136 = vmul.f32 %v1072, %v1132
    %v1138 = vperm.slane %v1048, 0
    %v1140 = vmul.f32 %v1133, %v1138
    %v1141 = vmul.f32 %v1134, %v1138
    %v1142 = vmul.f32 %v1135, %v1138
    %v1143 = vmul.f32 %v1136, %v1138
    %v1145 = vperm.slane %v1049, 0
    %v1147 = vadd.f32 %v1140, %v1145
    %v1148 = vadd.f32 %v1141, %v1145
    %v1149 = vadd.f32 %v1142, %v1145
    %v1150 = vadd.f32 %v1143, %v1145
    %v1151 = vpack.c.bf16 %v1148, %v1147
    %v1152 = vpack.c.bf16 %v1150, %v1149
    %v1153 = vld [vmem:[#allocation17] sm:$0xff]
    %v1154 = vld [vmem:[#allocation17 + $0x8] sm:$0xff]
    %v1155 = vld [vmem:[#allocation17 + $0x10] sm:$0xff]
    %v1156 = vld [vmem:[#allocation17 + $0x18] sm:$0xff]
    %v1157 = vld [vmem:[#allocation17 + $0x20] sm:$0xff]
    %v1158 = vld [vmem:[#allocation17 + $0x28] sm:$0xff]
    %v1159 = vld [vmem:[#allocation17 + $0x30] sm:$0xff]
    %v1160 = vld [vmem:[#allocation17 + $0x38] sm:$0xff]
    %v1161 = vld [vmem:[#allocation17 + $0x40] sm:$0xff]
    %v1162 = vld [vmem:[#allocation17 + $0x48] sm:$0xff]
    %v1163 = vld [vmem:[#allocation17 + $0x50] sm:$0xff]
    %v1164 = vld [vmem:[#allocation17 + $0x58] sm:$0xff]
    %v1165 = vld [vmem:[#allocation17 + $0x60] sm:$0xff]
    %v1166 = vld [vmem:[#allocation17 + $0x68] sm:$0xff]
    %v1167 = vld [vmem:[#allocation17 + $0x70] sm:$0xff]
    %v1168 = vld [vmem:[#allocation17 + $0x78] sm:$0xff]
    %v1169 = vld [vmem:[%s10] sm:$0x3]
    %v1171 = vperm.slane %v1169, 0
    %v1172 = vperm.slane %v1169, 1
    %v1191 = vunpack.c.l.b16 %v1153
    %v1192 = vunpack.c.h.b16 %v1153
    %v1193 = vunpack.c.l.b16 %v1154
    %v1194 = vunpack.c.h.b16 %v1154
    %v1195 = vunpack.c.l.b16 %v1155
    %v1196 = vunpack.c.h.b16 %v1155
    %v1197 = vunpack.c.l.b16 %v1156
    %v1198 = vunpack.c.h.b16 %v1156
    %v1199 = vunpack.c.l.b16 %v1157
    %v1200 = vunpack.c.h.b16 %v1157
    %v1201 = vunpack.c.l.b16 %v1158
    %v1202 = vunpack.c.h.b16 %v1158
    %v1203 = vunpack.c.l.b16 %v1159
    %v1204 = vunpack.c.h.b16 %v1159
    %v1205 = vunpack.c.l.b16 %v1160
    %v1206 = vunpack.c.h.b16 %v1160
    %v1207 = vunpack.c.l.b16 %v1161
    %v1208 = vunpack.c.h.b16 %v1161
    %v1209 = vunpack.c.l.b16 %v1162
    %v1210 = vunpack.c.h.b16 %v1162
    %v1211 = vunpack.c.l.b16 %v1163
    %v1212 = vunpack.c.h.b16 %v1163
    %v1213 = vunpack.c.l.b16 %v1164
    %v1214 = vunpack.c.h.b16 %v1164
    %v1215 = vunpack.c.l.b16 %v1165
    %v1216 = vunpack.c.h.b16 %v1165
    %v1217 = vunpack.c.l.b16 %v1166
    %v1218 = vunpack.c.h.b16 %v1166
    %v1219 = vunpack.c.l.b16 %v1167
    %v1220 = vunpack.c.h.b16 %v1167
    %v1221 = vunpack.c.l.b16 %v1168
    %v1222 = vunpack.c.h.b16 %v1168
    %v1223 = vpack.c.b16 %v1193, %v1191
    %v1224 = vpack.c.b16 %v1194, %v1192
    %v1225 = vpack.c.b16 %v1197, %v1195
    %v1226 = vpack.c.b16 %v1198, %v1196
    %v1227 = vpack.c.b16 %v1201, %v1199
    %v1228 = vpack.c.b16 %v1202, %v1200
    %v1229 = vpack.c.b16 %v1205, %v1203
    %v1230 = vpack.c.b16 %v1206, %v1204
    %v1231 = vpack.c.b16 %v1209, %v1207
    %v1232 = vpack.c.b16 %v1210, %v1208
    %v1233 = vpack.c.b16 %v1213, %v1211
    %v1234 = vpack.c.b16 %v1214, %v1212
    %v1235 = vpack.c.b16 %v1217, %v1215
    %v1236 = vpack.c.b16 %v1218, %v1216
    %v1237 = vpack.c.b16 %v1221, %v1219
    %v1238 = vpack.c.b16 %v1222, %v1220
    %1255 = vmatpush.bf16.msra.mxu0 %v1237
    %1256 = vmatpush.bf16.msra.mxu0 %v1235
    %1257 = vmatpush.bf16.msra.mxu0 %v1233
    %1258 = vmatpush.bf16.msra.mxu0 %v1231
    %1259 = vmatpush.bf16.msra.mxu0 %v1229
    %1260 = vmatpush.bf16.msra.mxu0 %v1227
    %1261 = vmatpush.bf16.msra.mxu0 %v1225
    %1262 = vmatpush.bf16.msra.mxu0 %v1223
    %1263 = vmatmul.bf16.gmra.mxu0 %v1151
    %v1264 = vpop.f32.mrf.mxu0
    %v1265 = vadd.f32 %v1171, %v1264
    %v1266 = vpop.f32.mrf.mxu0
    %v1267 = vadd.f32 %v1171, %v1266
    %1268 = vmatmul.bf16.gmra.mxu0 %v1152
    %v1269 = vpop.f32.mrf.mxu0
    %v1270 = vadd.f32 %v1171, %v1269
    %v1271 = vpop.f32.mrf.mxu0
    %v1272 = vadd.f32 %v1171, %v1271
    %1273 = vdwg.mxu0
    %1274 = vmatpush.bf16.msra.mxu0 %v1238
    %1275 = vmatpush.bf16.msra.mxu0 %v1236
    %1276 = vmatpush.bf16.msra.mxu0 %v1234
    %1277 = vmatpush.bf16.msra.mxu0 %v1232
    %1278 = vmatpush.bf16.msra.mxu0 %v1230
    %1279 = vmatpush.bf16.msra.mxu0 %v1228
    %1280 = vmatpush.bf16.msra.mxu0 %v1226
    %1281 = vmatpush.bf16.msra.mxu0 %v1224
    %1282 = vmatmul.bf16.gmra.mxu0 %v1151
    %v1283 = vpop.f32.mrf.mxu0
    %v1284 = vadd.f32 %v1172, %v1283
    %v1285 = vpop.f32.mrf.mxu0
    %v1286 = vadd.f32 %v1172, %v1285
    %1287 = vmatmul.bf16.gmra.mxu0 %v1152
    %v1288 = vpop.f32.mrf.mxu0
    %v1289 = vadd.f32 %v1172, %v1288
    %v1290 = vpop.f32.mrf.mxu0
    %v1291 = vadd.f32 %v1172, %v1290
    %1292 = vdwg.mxu0
    %v1293 = vmax.f32 %v1265, 0.0
    %v1294 = vmax.f32 %v1284, 0.0
    %v1295 = vmax.f32 %v1267, 0.0
    %v1296 = vmax.f32 %v1286, 0.0
    %v1297 = vmax.f32 %v1270, 0.0
    %v1298 = vmax.f32 %v1289, 0.0
    %v1299 = vmax.f32 %v1272, 0.0
    %v1300 = vmax.f32 %v1291, 0.0
    %v1301 = vpack.c.bf16 %v1295, %v1293
    %v1302 = vpack.c.bf16 %v1296, %v1294
    %v1303 = vpack.c.bf16 %v1299, %v1297
    %v1304 = vpack.c.bf16 %v1300, %v1298
    %v1305 = vld [vmem:[#allocation19] sm:$0xf]
    %v1306 = vld [vmem:[#allocation19 + $0x4] sm:$0xf]
    %v1307 = vld [vmem:[#allocation19 + $0x8] sm:$0xf]
    %v1308 = vld [vmem:[#allocation19 + $0xc] sm:$0xf]
    %v1309 = vld [vmem:[#allocation19 + $0x10] sm:$0xf]
    %v1310 = vld [vmem:[#allocation19 + $0x14] sm:$0xf]
    %v1311 = vld [vmem:[#allocation19 + $0x18] sm:$0xf]
    %v1312 = vld [vmem:[#allocation19 + $0x1c] sm:$0xf]
    %v1313 = vld [vmem:[#allocation19 + $0x20] sm:$0xf]
    %v1314 = vld [vmem:[#allocation19 + $0x24] sm:$0xf]
    %v1315 = vld [vmem:[#allocation19 + $0x28] sm:$0xf]
    %v1316 = vld [vmem:[#allocation19 + $0x2c] sm:$0xf]
    %v1317 = vld [vmem:[#allocation19 + $0x30] sm:$0xf]
    %v1318 = vld [vmem:[#allocation19 + $0x34] sm:$0xf]
    %v1319 = vld [vmem:[#allocation19 + $0x38] sm:$0xf]
    %v1320 = vld [vmem:[#allocation19 + $0x3c] sm:$0xf]
    %v1321 = vld [vmem:[#allocation19 + $0x40] sm:$0xf]
    %v1322 = vld [vmem:[#allocation19 + $0x44] sm:$0xf]
    %v1323 = vld [vmem:[#allocation19 + $0x48] sm:$0xf]
    %v1324 = vld [vmem:[#allocation19 + $0x4c] sm:$0xf]
    %v1325 = vld [vmem:[#allocation19 + $0x50] sm:$0xf]
    %v1326 = vld [vmem:[#allocation19 + $0x54] sm:$0xf]
    %v1327 = vld [vmem:[#allocation19 + $0x58] sm:$0xf]
    %v1328 = vld [vmem:[#allocation19 + $0x5c] sm:$0xf]
    %v1329 = vld [vmem:[#allocation19 + $0x60] sm:$0xf]
    %v1330 = vld [vmem:[#allocation19 + $0x64] sm:$0xf]
    %v1331 = vld [vmem:[#allocation19 + $0x68] sm:$0xf]
    %v1332 = vld [vmem:[#allocation19 + $0x6c] sm:$0xf]
    %v1333 = vld [vmem:[#allocation19 + $0x70] sm:$0xf]
    %v1334 = vld [vmem:[#allocation19 + $0x74] sm:$0xf]
    %v1335 = vld [vmem:[#allocation19 + $0x78] sm:$0xf]
    %v1336 = vld [vmem:[#allocation19 + $0x7c] sm:$0xf]
    %v1337 = vld [vmem:[%s12] sm:$0x1]
    %v1339 = vperm.slane %v1337, 0
    %v1373 = vunpack.c.l.b16 %v1305
    %v1374 = vunpack.c.l.b16 %v1306
    %v1375 = vunpack.c.l.b16 %v1307
    %v1376 = vunpack.c.l.b16 %v1308
    %v1377 = vunpack.c.l.b16 %v1309
    %v1378 = vunpack.c.l.b16 %v1310
    %v1379 = vunpack.c.l.b16 %v1311
    %v1380 = vunpack.c.l.b16 %v1312
    %v1381 = vunpack.c.l.b16 %v1313
    %v1382 = vunpack.c.l.b16 %v1314
    %v1383 = vunpack.c.l.b16 %v1315
    %v1384 = vunpack.c.l.b16 %v1316
    %v1385 = vunpack.c.l.b16 %v1317
    %v1386 = vunpack.c.l.b16 %v1318
    %v1387 = vunpack.c.l.b16 %v1319
    %v1388 = vunpack.c.l.b16 %v1320
    %v1389 = vunpack.c.l.b16 %v1321
    %v1390 = vunpack.c.l.b16 %v1322
    %v1391 = vunpack.c.l.b16 %v1323
    %v1392 = vunpack.c.l.b16 %v1324
    %v1393 = vunpack.c.l.b16 %v1325
    %v1394 = vunpack.c.l.b16 %v1326
    %v1395 = vunpack.c.l.b16 %v1327
    %v1396 = vunpack.c.l.b16 %v1328
    %v1397 = vunpack.c.l.b16 %v1329
    %v1398 = vunpack.c.l.b16 %v1330
    %v1399 = vunpack.c.l.b16 %v1331
    %v1400 = vunpack.c.l.b16 %v1332
    %v1401 = vunpack.c.l.b16 %v1333
    %v1402 = vunpack.c.l.b16 %v1334
    %v1403 = vunpack.c.l.b16 %v1335
    %v1404 = vunpack.c.l.b16 %v1336
    %v1405 = vpack.c.b16 %v1374, %v1373
    %v1406 = vpack.c.b16 %v1376, %v1375
    %v1407 = vpack.c.b16 %v1378, %v1377
    %v1408 = vpack.c.b16 %v1380, %v1379
    %v1409 = vpack.c.b16 %v1382, %v1381
    %v1410 = vpack.c.b16 %v1384, %v1383
    %v1411 = vpack.c.b16 %v1386, %v1385
    %v1412 = vpack.c.b16 %v1388, %v1387
    %v1413 = vpack.c.b16 %v1390, %v1389
    %v1414 = vpack.c.b16 %v1392, %v1391
    %v1415 = vpack.c.b16 %v1394, %v1393
    %v1416 = vpack.c.b16 %v1396, %v1395
    %v1417 = vpack.c.b16 %v1398, %v1397
    %v1418 = vpack.c.b16 %v1400, %v1399
    %v1419 = vpack.c.b16 %v1402, %v1401
    %v1420 = vpack.c.b16 %v1404, %v1403
    %1437 = vmatpush.bf16.msra.mxu0 %v1412
    %1438 = vmatpush.bf16.msra.mxu0 %v1411
    %1439 = vmatpush.bf16.msra.mxu0 %v1410
    %1440 = vmatpush.bf16.msra.mxu0 %v1409
    %1441 = vmatpush.bf16.msra.mxu0 %v1408
    %1442 = vmatpush.bf16.msra.mxu0 %v1407
    %1443 = vmatpush.bf16.msra.mxu0 %v1406
    %1444 = vmatpush.bf16.msra.mxu0 %v1405
    %1445 = vmatmul.bf16.gmra.mxu0 %v1301
    %v1446 = vpop.f32.mrf.mxu0
    %v1447 = vadd.f32 %v1339, %v1446
    %v1448 = vpop.f32.mrf.mxu0
    %v1449 = vadd.f32 %v1339, %v1448
    %1450 = vmatmul.bf16.gmra.mxu0 %v1303
    %v1451 = vpop.f32.mrf.mxu0
    %v1452 = vadd.f32 %v1339, %v1451
    %v1453 = vpop.f32.mrf.mxu0
    %v1454 = vadd.f32 %v1339, %v1453
    %1455 = vdwg.mxu0
    %1456 = vmatpush.bf16.msra.mxu0 %v1420
    %1457 = vmatpush.bf16.msra.mxu0 %v1419
    %1458 = vmatpush.bf16.msra.mxu0 %v1418
    %1459 = vmatpush.bf16.msra.mxu0 %v1417
    %1460 = vmatpush.bf16.msra.mxu0 %v1416
    %1461 = vmatpush.bf16.msra.mxu0 %v1415
    %1462 = vmatpush.bf16.msra.mxu0 %v1414
    %1463 = vmatpush.bf16.msra.mxu0 %v1413
    %1464 = vmatmul.bf16.gmra.mxu0 %v1302
    %v1465 = vpop.f32.mrf.mxu0
    %v1466 = vadd.f32 %v1447, %v1465
    %v1467 = vpop.f32.mrf.mxu0
    %v1468 = vadd.f32 %v1449, %v1467
    %1469 = vmatmul.bf16.gmra.mxu0 %v1304
    %v1470 = vpop.f32.mrf.mxu0
    %v1471 = vadd.f32 %v1452, %v1470
    %v1472 = vpop.f32.mrf.mxu0
    %v1473 = vadd.f32 %v1454, %v1472
    %1474 = vdwg.mxu0
    %v1475 = vadd.f32 %v1147, %v1466
    %v1476 = vadd.f32 %v1148, %v1468
    %v1477 = vadd.f32 %v1149, %v1471
    %v1478 = vadd.f32 %v1150, %v1473
    %v1479 = vld [vmem:[%s13] sm:$0x1]
    %v1480 = vld [vmem:[%s14] sm:$0x1]
    %1481 = vadd.xlane.f32.xlu0 %v1475
    %v1482 = vpop.xlane.xlu0 %1481
    %1483 = vadd.xlane.f32.xlu0 %v1476
    %v1484 = vpop.xlane.xlu0 %1483
    %1485 = vadd.xlane.f32.xlu0 %v1477
    %v1486 = vpop.xlane.xlu0 %1485
    %1487 = vadd.xlane.f32.xlu0 %v1478
    %v1488 = vpop.xlane.xlu0 %1487
    %v1489 = vmul.f32 %v1482, %v1064
    %v1490 = vmul.f32 %v1484, %v1064
    %v1491 = vmul.f32 %v1486, %v1064
    %v1492 = vmul.f32 %v1488, %v1064
    %v1493 = vsub.f32 %v1475, %v1489
    %v1494 = vsub.f32 %v1476, %v1490
    %v1495 = vsub.f32 %v1477, %v1491
    %v1496 = vsub.f32 %v1478, %v1492
    %v1497 = vmul.f32 %v1493, %v1493
    %v1498 = vmul.f32 %v1494, %v1494
    %v1499 = vmul.f32 %v1495, %v1495
    %v1500 = vmul.f32 %v1496, %v1496
    %1501 = vadd.xlane.f32.xlu0 %v1497
    %v1502 = vpop.xlane.xlu0 %1501
    %1503 = vadd.xlane.f32.xlu0 %v1498
    %v1504 = vpop.xlane.xlu0 %1503
    %1505 = vadd.xlane.f32.xlu0 %v1499
    %v1506 = vpop.xlane.xlu0 %1505
    %1507 = vadd.xlane.f32.xlu0 %v1500
    %v1508 = vpop.xlane.xlu0 %1507
    %v1509 = vmul.f32 %v1502, %v1064
    %v1510 = vmul.f32 %v1504, %v1064
    %v1511 = vmul.f32 %v1506, %v1064
    %v1512 = vmul.f32 %v1508, %v1064
    %v1513 = vadd.f32 %v1509, 1e-05
    %v1514 = vadd.f32 %v1510, 1e-05
    %v1515 = vadd.f32 %v1511, 1e-05
    %v1516 = vadd.f32 %v1512, 1e-05
    %v1517 = vrsqrt.pop %v1513
    %v1518 = vmul.f32 %v1517, %v1513
    %v1519 = vmul.f32 %v1518, %v1517
    %v1520 = vmul.f32 0.5, %v1519
    %v1521 = vsub.f32 1.5, %v1520
    %v1522 = vmul.f32 %v1517, %v1521
    %vm1523 = vweird.f32 %v1513
    %vm1524 = vweird.f32 %v1517
    %vm1525 = vmor %vm1523, %vm1524
    %v1526 = vsel %vm1525, %v1517, %v1522
    %v1527 = vrsqrt.pop %v1514
    %v1528 = vmul.f32 %v1527, %v1514
    %v1529 = vmul.f32 %v1528, %v1527
    %v1530 = vmul.f32 0.5, %v1529
    %v1531 = vsub.f32 1.5, %v1530
    %v1532 = vmul.f32 %v1527, %v1531
    %vm1533 = vweird.f32 %v1514
    %vm1534 = vweird.f32 %v1527
    %vm1535 = vmor %vm1533, %vm1534
    %v1536 = vsel %vm1535, %v1527, %v1532
    %v1537 = vrsqrt.pop %v1515
    %v1538 = vmul.f32 %v1537, %v1515
    %v1539 = vmul.f32 %v1538, %v1537
    %v1540 = vmul.f32 0.5, %v1539
    %v1541 = vsub.f32 1.5, %v1540
    %v1542 = vmul.f32 %v1537, %v1541
    %vm1543 = vweird.f32 %v1515
    %vm1544 = vweird.f32 %v1537
    %vm1545 = vmor %vm1543, %vm1544
    %v1546 = vsel %vm1545, %v1537, %v1542
    %v1547 = vrsqrt.pop %v1516
    %v1548 = vmul.f32 %v1547, %v1516
    %v1549 = vmul.f32 %v1548, %v1547
    %v1550 = vmul.f32 0.5, %v1549
    %v1551 = vsub.f32 1.5, %v1550
    %v1552 = vmul.f32 %v1547, %v1551
    %vm1553 = vweird.f32 %v1516
    %vm1554 = vweird.f32 %v1547
    %vm1555 = vmor %vm1553, %vm1554
    %v1556 = vsel %vm1555, %v1547, %v1552
    %v1557 = vmul.f32 %v1493, %v1526
    %v1558 = vmul.f32 %v1494, %v1536
    %v1559 = vmul.f32 %v1495, %v1546
    %v1560 = vmul.f32 %v1496, %v1556
    %v1562 = vperm.slane %v1479, 0
    %v1564 = vmul.f32 %v1557, %v1562
    %v1565 = vmul.f32 %v1558, %v1562
    %v1566 = vmul.f32 %v1559, %v1562
    %v1567 = vmul.f32 %v1560, %v1562
    %v1569 = vperm.slane %v1480, 0
    %v1571 = vadd.f32 %v1564, %v1569
    %v1572 = vadd.f32 %v1565, %v1569
    %v1573 = vadd.f32 %v1566, %v1569
    %v1574 = vadd.f32 %v1567, %v1569
    %v1575 = vpack.c.bf16 %v1572, %v1571
    %v1576 = vpack.c.bf16 %v1574, %v1573
    %s1577 = scalar_lea.vmem [#allocation8], 192
    %v1578 = vld [vmem:[%s1577] sm:$0xff]
    %v1579 = vld [vmem:[%s1577 + $0x8] sm:$0xf]
    %v1580 = vld [vmem:[%s1577 + $0xc] sm:$0xff]
    %v1581 = vld [vmem:[%s1577 + $0x14] sm:$0xf]
    %v1582 = vld [vmem:[%s1577 + $0x18] sm:$0xff]
    %v1583 = vld [vmem:[%s1577 + $0x20] sm:$0xf]
    %v1584 = vld [vmem:[%s1577 + $0x24] sm:$0xff]
    %v1585 = vld [vmem:[%s1577 + $0x2c] sm:$0xf]
    %v1586 = vld [vmem:[%s1577 + $0x30] sm:$0xff]
    %v1587 = vld [vmem:[%s1577 + $0x38] sm:$0xf]
    %v1588 = vld [vmem:[%s1577 + $0x3c] sm:$0xff]
    %v1589 = vld [vmem:[%s1577 + $0x44] sm:$0xf]
    %v1590 = vld [vmem:[%s1577 + $0x48] sm:$0xff]
    %v1591 = vld [vmem:[%s1577 + $0x50] sm:$0xf]
    %v1592 = vld [vmem:[%s1577 + $0x54] sm:$0xff]
    %v1593 = vld [vmem:[%s1577 + $0x5c] sm:$0xf]
    %v1594 = vld [vmem:[%s1577 + $0x60] sm:$0xff]
    %v1595 = vld [vmem:[%s1577 + $0x68] sm:$0xf]
    %v1596 = vld [vmem:[%s1577 + $0x6c] sm:$0xff]
    %v1597 = vld [vmem:[%s1577 + $0x74] sm:$0xf]
    %v1598 = vld [vmem:[%s1577 + $0x78] sm:$0xff]
    %v1599 = vld [vmem:[%s1577 + $0x80] sm:$0xf]
    %v1600 = vld [vmem:[%s1577 + $0x84] sm:$0xff]
    %v1601 = vld [vmem:[%s1577 + $0x8c] sm:$0xf]
    %v1602 = vld [vmem:[%s1577 + $0x90] sm:$0xff]
    %v1603 = vld [vmem:[%s1577 + $0x98] sm:$0xf]
    %v1604 = vld [vmem:[%s1577 + $0x9c] sm:$0xff]
    %v1605 = vld [vmem:[%s1577 + $0xa4] sm:$0xf]
    %v1606 = vld [vmem:[%s1577 + $0xa8] sm:$0xff]
    %v1607 = vld [vmem:[%s1577 + $0xb0] sm:$0xf]
    %v1608 = vld [vmem:[%s1577 + $0xb4] sm:$0xff]
    %v1609 = vld [vmem:[%s1577 + $0xbc] sm:$0xf]
    %s1610 = scalar_lea.vmem [#allocation10], 3
    %v1611 = vld [vmem:[%s1610] sm:$0x7]
    %v1613 = vperm.slane %v1611, 0
    %v1614 = vperm.slane %v1611, 1
    %v1615 = vperm.slane %v1611, 2
    %v1651 = vunpack.c.l.b16 %v1578
    %v1652 = vunpack.c.h.b16 %v1578
    %v1653 = vunpack.c.l.b16 %v1579
    %v1654 = vunpack.c.l.b16 %v1580
    %v1655 = vunpack.c.h.b16 %v1580
    %v1656 = vunpack.c.l.b16 %v1581
    %v1657 = vunpack.c.l.b16 %v1582
    %v1658 = vunpack.c.h.b16 %v1582
    %v1659 = vunpack.c.l.b16 %v1583
    %v1660 = vunpack.c.l.b16 %v1584
    %v1661 = vunpack.c.h.b16 %v1584
    %v1662 = vunpack.c.l.b16 %v1585
    %v1663 = vunpack.c.l.b16 %v1586
    %v1664 = vunpack.c.h.b16 %v1586
    %v1665 = vunpack.c.l.b16 %v1587
    %v1666 = vunpack.c.l.b16 %v1588
    %v1667 = vunpack.c.h.b16 %v1588
    %v1668 = vunpack.c.l.b16 %v1589
    %v1669 = vunpack.c.l.b16 %v1590
    %v1670 = vunpack.c.h.b16 %v1590
    %v1671 = vunpack.c.l.b16 %v1591
    %v1672 = vunpack.c.l.b16 %v1592
    %v1673 = vunpack.c.h.b16 %v1592
    %v1674 = vunpack.c.l.b16 %v1593
    %v1675 = vunpack.c.l.b16 %v1594
    %v1676 = vunpack.c.h.b16 %v1594
    %v1677 = vunpack.c.l.b16 %v1595
    %v1678 = vunpack.c.l.b16 %v1596
    %v1679 = vunpack.c.h.b16 %v1596
    %v1680 = vunpack.c.l.b16 %v1597
    %v1681 = vunpack.c.l.b16 %v1598
    %v1682 = vunpack.c.h.b16 %v1598
    %v1683 = vunpack.c.l.b16 %v1599
    %v1684 = vunpack.c.l.b16 %v1600
    %v1685 = vunpack.c.h.b16 %v1600
    %v1686 = vunpack.c.l.b16 %v1601
    %v1687 = vunpack.c.l.b16 %v1602
    %v1688 = vunpack.c.h.b16 %v1602
    %v1689 = vunpack.c.l.b16 %v1603
    %v1690 = vunpack.c.l.b16 %v1604
    %v1691 = vunpack.c.h.b16 %v1604
    %v1692 = vunpack.c.l.b16 %v1605
    %v1693 = vunpack.c.l.b16 %v1606
    %v1694 = vunpack.c.h.b16 %v1606
    %v1695 = vunpack.c.l.b16 %v1607
    %v1696 = vunpack.c.l.b16 %v1608
    %v1697 = vunpack.c.h.b16 %v1608
    %v1698 = vunpack.c.l.b16 %v1609
    %v1699 = vpack.c.b16 %v1654, %v1651
    %v1700 = vpack.c.b16 %v1655, %v1652
    %v1701 = vpack.c.b16 %v1656, %v1653
    %v1702 = vpack.c.b16 %v1660, %v1657
    %v1703 = vpack.c.b16 %v1661, %v1658
    %v1704 = vpack.c.b16 %v1662, %v1659
    %v1705 = vpack.c.b16 %v1666, %v1663
    %v1706 = vpack.c.b16 %v1667, %v1664
    %v1707 = vpack.c.b16 %v1668, %v1665
    %v1708 = vpack.c.b16 %v1672, %v1669
    %v1709 = vpack.c.b16 %v1673, %v1670
    %v1710 = vpack.c.b16 %v1674, %v1671
    %v1711 = vpack.c.b16 %v1678, %v1675
    %v1712 = vpack.c.b16 %v1679, %v1676
    %v1713 = vpack.c.b16 %v1680, %v1677
    %v1714 = vpack.c.b16 %v1684, %v1681
    %v1715 = vpack.c.b16 %v1685, %v1682
    %v1716 = vpack.c.b16 %v1686, %v1683
    %v1717 = vpack.c.b16 %v1690, %v1687
    %v1718 = vpack.c.b16 %v1691, %v1688
    %v1719 = vpack.c.b16 %v1692, %v1689
    %v1720 = vpack.c.b16 %v1696, %v1693
    %v1721 = vpack.c.b16 %v1697, %v1694
    %v1722 = vpack.c.b16 %v1698, %v1695
    %1747 = vmatpush.bf16.msra.mxu0 %v1720
    %1748 = vmatpush.bf16.msra.mxu0 %v1717
    %1749 = vmatpush.bf16.msra.mxu0 %v1714
    %1750 = vmatpush.bf16.msra.mxu0 %v1711
    %1751 = vmatpush.bf16.msra.mxu0 %v1708
    %1752 = vmatpush.bf16.msra.mxu0 %v1705
    %1753 = vmatpush.bf16.msra.mxu0 %v1702
    %1754 = vmatpush.bf16.msra.mxu0 %v1699
    %1755 = vmatmul.bf16.gmra.mxu0 %v1575
    %v1756 = vpop.f32.mrf.mxu0
    %v1757 = vadd.f32 %v1613, %v1756
    %v1758 = vpop.f32.mrf.mxu0
    %v1759 = vadd.f32 %v1613, %v1758
    %1760 = vmatmul.bf16.gmra.mxu0 %v1576
    %v1761 = vpop.f32.mrf.mxu0
    %v1762 = vadd.f32 %v1613, %v1761
    %v1763 = vpop.f32.mrf.mxu0
    %v1764 = vadd.f32 %v1613, %v1763
    %1765 = vdwg.mxu0
    %1766 = vmatpush.bf16.msra.mxu0 %v1721
    %1767 = vmatpush.bf16.msra.mxu0 %v1718
    %1768 = vmatpush.bf16.msra.mxu0 %v1715
    %1769 = vmatpush.bf16.msra.mxu0 %v1712
    %1770 = vmatpush.bf16.msra.mxu0 %v1709
    %1771 = vmatpush.bf16.msra.mxu0 %v1706
    %1772 = vmatpush.bf16.msra.mxu0 %v1703
    %1773 = vmatpush.bf16.msra.mxu0 %v1700
    %1774 = vmatmul.bf16.gmra.mxu0 %v1575
    %v1775 = vpop.f32.mrf.mxu0
    %v1776 = vadd.f32 %v1614, %v1775
    %v1777 = vpop.f32.mrf.mxu0
    %v1778 = vadd.f32 %v1614, %v1777
    %1779 = vmatmul.bf16.gmra.mxu0 %v1576
    %v1780 = vpop.f32.mrf.mxu0
    %v1781 = vadd.f32 %v1614, %v1780
    %v1782 = vpop.f32.mrf.mxu0
    %v1783 = vadd.f32 %v1614, %v1782
    %1784 = vdwg.mxu0
    %1785 = vmatpush.bf16.msra.mxu0 %v1722
    %1786 = vmatpush.bf16.msra.mxu0 %v1719
    %1787 = vmatpush.bf16.msra.mxu0 %v1716
    %1788 = vmatpush.bf16.msra.mxu0 %v1713
    %1789 = vmatpush.bf16.msra.mxu0 %v1710
    %1790 = vmatpush.bf16.msra.mxu0 %v1707
    %1791 = vmatpush.bf16.msra.mxu0 %v1704
    %1792 = vmatpush.bf16.msra.mxu0 %v1701
    %1793 = vmatmul.bf16.gmra.mxu0 %v1575
    %v1794 = vpop.f32.mrf.mxu0
    %v1795 = vadd.f32 %v1615, %v1794
    %v1796 = vpop.f32.mrf.mxu0
    %v1797 = vadd.f32 %v1615, %v1796
    %1798 = vmatmul.bf16.gmra.mxu0 %v1576
    %v1799 = vpop.f32.mrf.mxu0
    %v1800 = vadd.f32 %v1615, %v1799
    %v1801 = vpop.f32.mrf.mxu0
    %v1802 = vadd.f32 %v1615, %v1801
    %1803 = vdwg.mxu0
    %v1804 = vpack.c.bf16 %v1757, %v1757
    %v1805 = vpack.c.bf16 %v1759, %v1759
    %v1806 = vpack.c.bf16 %v1762, %v1762
    %v1807 = vpack.c.bf16 %v1764, %v1764
    %v1808 = vpack.c.bf16 %v1776, %v1776
    %v1809 = vpack.c.bf16 %v1778, %v1778
    %v1810 = vpack.c.bf16 %v1781, %v1781
    %v1811 = vpack.c.bf16 %v1783, %v1783
    %v1812 = vpack.c.bf16 %v1795, %v1795
    %v1813 = vpack.c.bf16 %v1797, %v1797
    %v1814 = vpack.c.bf16 %v1800, %v1800
    %v1815 = vpack.c.bf16 %v1802, %v1802
    %v1818 = vunpack.c.l.b16 %v1804
    %v1819 = vunpack.c.l.b16 %v1805
    %v1820 = vpack.c.b16 %v1819, %v1818
    %v1823 = vunpack.c.l.b16 %v1808
    %v1824 = vunpack.c.l.b16 %v1809
    %v1825 = vpack.c.b16 %v1824, %v1823
    %v1827 = vsel %vm513, %v1820, 0
    %v1830 = vsel %vm513, %v1825, 0
    %1832 = vmatpush.bf16.xpose.msra.mxu0 0
    %1833 = vmatpush.bf16.xpose.msra.mxu0 0
    %1834 = vmatpush.bf16.xpose.msra.mxu0 0
    %1835 = vmatpush.bf16.xpose.msra.mxu0 0
    %1836 = vmatpush.bf16.xpose.msra.mxu0 0
    %1837 = vmatpush.bf16.xpose.msra.mxu0 0
    %1838 = vmatpush.bf16.xpose.msra.mxu0 0
    %1839 = vmatpush.bf16.xpose.msra.mxu0 %v1830
    %1840 = vmatmul.bf16.gmra.mxu0 %v1827
    %v1841 = vpop.f32.mrf.mxu0
    %v1842 = vadd.f32 0.0, %v1841
    %v1843 = vpop.f32.mrf.mxu0
    %v1844 = vadd.f32 0.0, %v1843
    %1845 = vdwg.mxu0
    %v1848 = vunpack.c.l.b16 %v1806
    %v1849 = vunpack.c.l.b16 %v1807
    %v1850 = vpack.c.b16 %v1849, %v1848
    %v1853 = vunpack.c.l.b16 %v1810
    %v1854 = vunpack.c.l.b16 %v1811
    %v1855 = vpack.c.b16 %v1854, %v1853
    %v1857 = vsel %vm513, %v1850, 0
    %v1860 = vsel %vm513, %v1855, 0
    %1862 = vmatpush.bf16.xpose.msra.mxu0 0
    %1863 = vmatpush.bf16.xpose.msra.mxu0 0
    %1864 = vmatpush.bf16.xpose.msra.mxu0 0
    %1865 = vmatpush.bf16.xpose.msra.mxu0 0
    %1866 = vmatpush.bf16.xpose.msra.mxu0 0
    %1867 = vmatpush.bf16.xpose.msra.mxu0 0
    %1868 = vmatpush.bf16.xpose.msra.mxu0 0
    %1869 = vmatpush.bf16.xpose.msra.mxu0 %v1860
    %1870 = vmatmul.bf16.gmra.mxu0 %v1857
    %v1871 = vpop.f32.mrf.mxu0
    %v1872 = vadd.f32 0.0, %v1871
    %v1873 = vpop.f32.mrf.mxu0
    %v1874 = vadd.f32 0.0, %v1873
    %1875 = vdwg.mxu0
    %v1876 = vmul.f32 %v1842, 0.125
    %v1877 = vmul.f32 %v1844, 0.125
    %v1878 = vmul.f32 %v1872, 0.125
    %v1879 = vmul.f32 %v1874, 0.125
    %v1880 = vadd.f32 %v1876, %v262
    %v1881 = vadd.f32 %v1877, %v263
    %v1882 = vadd.f32 %v1878, %v262
    %v1883 = vadd.f32 %v1879, %v263
    %v1884 = vsel %vm572, %v1880, -inf
    %1885 = vmax.xlane.f32.xlu0 %v1884
    %v1886 = vpop.xlane.xlu0 %1885
    %v1887 = vsel %vm572, %v1881, -inf
    %1888 = vmax.xlane.f32.xlu0 %v1887
    %v1889 = vpop.xlane.xlu0 %1888
    %v1890 = vsel %vm572, %v1882, -inf
    %1891 = vmax.xlane.f32.xlu0 %v1890
    %v1892 = vpop.xlane.xlu0 %1891
    %v1893 = vsel %vm572, %v1883, -inf
    %1894 = vmax.xlane.f32.xlu0 %v1893
    %v1895 = vpop.xlane.xlu0 %1894
    %v1896 = vsub.f32 %v1880, %v1886
    %v1897 = vsub.f32 %v1881, %v1889
    %v1898 = vsub.f32 %v1882, %v1892
    %v1899 = vsub.f32 %v1883, %v1895
    %v1900 = vmul.f32 %v1896, 1.442695
    %v1901 = vpow.pop %v1900
    %v1902 = vmul.f32 %v1897, 1.442695
    %v1903 = vpow.pop %v1902
    %v1904 = vmul.f32 %v1898, 1.442695
    %v1905 = vpow.pop %v1904
    %v1906 = vmul.f32 %v1899, 1.442695
    %v1907 = vpow.pop %v1906
    %v1908 = vsel %vm572, %v1901, 0.0
    %1909 = vadd.xlane.f32.xlu0 %v1908
    %v1910 = vpop.xlane.xlu0 %1909
    %v1911 = vsel %vm572, %v1903, 0.0
    %1912 = vadd.xlane.f32.xlu0 %v1911
    %v1913 = vpop.xlane.xlu0 %1912
    %v1914 = vsel %vm572, %v1905, 0.0
    %1915 = vadd.xlane.f32.xlu0 %v1914
    %v1916 = vpop.xlane.xlu0 %1915
    %v1917 = vsel %vm572, %v1907, 0.0
    %1918 = vadd.xlane.f32.xlu0 %v1917
    %v1919 = vpop.xlane.xlu0 %1918
    %v1920 = vrcp.pop %v1910
    %v1921 = vmul.f32 %v1910, %v1920
    %v1922 = vsub.f32 1.0, %v1921
    %v1923 = vmul.f32 %v1920, %v1922
    %v1924 = vadd.f32 %v1920, %v1923
    %vm1925 = vweird.f32 %v1910
    %vm1926 = vweird.f32 %v1920
    %vm1927 = vmor %vm1925, %vm1926
    %v1928 = vsel %vm1927, %v1920, %v1924
    %v1929 = vand.u32 2147483647, %v1910
    %vm1930 = vcmp.eq.f32.partialorder %v1929, 8.507059e+37
    %v1931 = vand.u32 %v1910, 2147483648
    %v1932 = vor.u32 1.1754944e-38, %v1931
    %v1933 = vsel %vm1930, %v1932, %v1928
    %v1934 = vmul.f32 %v1901, %v1933
    %v1935 = vrcp.pop %v1913
    %v1936 = vmul.f32 %v1913, %v1935
    %v1937 = vsub.f32 1.0, %v1936
    %v1938 = vmul.f32 %v1935, %v1937
    %v1939 = vadd.f32 %v1935, %v1938
    %vm1940 = vweird.f32 %v1913
    %vm1941 = vweird.f32 %v1935
    %vm1942 = vmor %vm1940, %vm1941
    %v1943 = vsel %vm1942, %v1935, %v1939
    %v1944 = vand.u32 2147483647, %v1913
    %vm1945 = vcmp.eq.f32.partialorder %v1944, 8.507059e+37
    %v1946 = vand.u32 %v1913, 2147483648
    %v1947 = vor.u32 1.1754944e-38, %v1946
    %v1948 = vsel %vm1945, %v1947, %v1943
    %v1949 = vmul.f32 %v1903, %v1948
    %v1950 = vrcp.pop %v1916
    %v1951 = vmul.f32 %v1916, %v1950
    %v1952 = vsub.f32 1.0, %v1951
    %v1953 = vmul.f32 %v1950, %v1952
    %v1954 = vadd.f32 %v1950, %v1953
    %vm1955 = vweird.f32 %v1916
    %vm1956 = vweird.f32 %v1950
    %vm1957 = vmor %vm1955, %vm1956
    %v1958 = vsel %vm1957, %v1950, %v1954
    %v1959 = vand.u32 2147483647, %v1916
    %vm1960 = vcmp.eq.f32.partialorder %v1959, 8.507059e+37
    %v1961 = vand.u32 %v1916, 2147483648
    %v1962 = vor.u32 1.1754944e-38, %v1961
    %v1963 = vsel %vm1960, %v1962, %v1958
    %v1964 = vmul.f32 %v1905, %v1963
    %v1965 = vrcp.pop %v1919
    %v1966 = vmul.f32 %v1919, %v1965
    %v1967 = vsub.f32 1.0, %v1966
    %v1968 = vmul.f32 %v1965, %v1967
    %v1969 = vadd.f32 %v1965, %v1968
    %vm1970 = vweird.f32 %v1919
    %vm1971 = vweird.f32 %v1965
    %vm1972 = vmor %vm1970, %vm1971
    %v1973 = vsel %vm1972, %v1965, %v1969
    %v1974 = vand.u32 2147483647, %v1919
    %vm1975 = vcmp.eq.f32.partialorder %v1974, 8.507059e+37
    %v1976 = vand.u32 %v1919, 2147483648
    %v1977 = vor.u32 1.1754944e-38, %v1976
    %v1978 = vsel %vm1975, %v1977, %v1973
    %v1979 = vmul.f32 %v1907, %v1978
    %v1980 = vpack.c.bf16 %v1934, %v1934
    %v1981 = vpack.c.bf16 %v1949, %v1949
    %v1982 = vpack.c.bf16 %v1964, %v1964
    %v1983 = vpack.c.bf16 %v1979, %v1979
    %v1986 = vunpack.c.l.b16 %v1980
    %v1987 = vunpack.c.l.b16 %v1981
    %v1988 = vpack.c.b16 %v1987, %v1986
    %v1991 = vunpack.c.l.b16 %v1812
    %v1992 = vunpack.c.l.b16 %v1813
    %v1993 = vpack.c.b16 %v1992, %v1991
    %v1996 = vsel %vm572, %v1988, 0
    %1998 = vmatpush.bf16.msra.mxu0 0
    %1999 = vmatpush.bf16.msra.mxu0 0
    %2000 = vmatpush.bf16.msra.mxu0 0
    %2001 = vmatpush.bf16.msra.mxu0 0
    %2002 = vmatpush.bf16.msra.mxu0 0
    %2003 = vmatpush.bf16.msra.mxu0 0
    %2004 = vmatpush.bf16.msra.mxu0 0
    %2005 = vmatpush.bf16.msra.mxu0 %v1993
    %2006 = vmatmul.bf16.gmra.mxu0 %v1996
    %v2007 = vpop.f32.mrf.mxu0
    %v2008 = vadd.f32 0.0, %v2007
    %v2009 = vpop.f32.mrf.mxu0
    %v2010 = vadd.f32 0.0, %v2009
    %2011 = vdwg.mxu0
    %v2014 = vunpack.c.l.b16 %v1982
    %v2015 = vunpack.c.l.b16 %v1983
    %v2016 = vpack.c.b16 %v2015, %v2014
    %v2019 = vunpack.c.l.b16 %v1814
    %v2020 = vunpack.c.l.b16 %v1815
    %v2021 = vpack.c.b16 %v2020, %v2019
    %v2024 = vsel %vm572, %v2016, 0
    %2026 = vmatpush.bf16.msra.mxu0 0
    %2027 = vmatpush.bf16.msra.mxu0 0
    %2028 = vmatpush.bf16.msra.mxu0 0
    %2029 = vmatpush.bf16.msra.mxu0 0
    %2030 = vmatpush.bf16.msra.mxu0 0
    %2031 = vmatpush.bf16.msra.mxu0 0
    %2032 = vmatpush.bf16.msra.mxu0 0
    %2033 = vmatpush.bf16.msra.mxu0 %v2021
    %2034 = vmatmul.bf16.gmra.mxu0 %v2024
    %v2035 = vpop.f32.mrf.mxu0
    %v2036 = vadd.f32 0.0, %v2035
    %v2037 = vpop.f32.mrf.mxu0
    %v2038 = vadd.f32 0.0, %v2037
    %2039 = vdwg.mxu0
    %2040 = vrot.lane.b32.xlu0 %v1820, 64
    %v2041 = vpop.permute.xlu0 %2040
    %2042 = vrot.lane.b32.xlu0 %v1825, 64
    %v2043 = vpop.permute.xlu0 %2042
    %v2045 = vsel %vm513, %v2041, 0
    %v2048 = vsel %vm513, %v2043, 0
    %2050 = vmatpush.bf16.xpose.msra.mxu0 0
    %2051 = vmatpush.bf16.xpose.msra.mxu0 0
    %2052 = vmatpush.bf16.xpose.msra.mxu0 0
    %2053 = vmatpush.bf16.xpose.msra.mxu0 0
    %2054 = vmatpush.bf16.xpose.msra.mxu0 0
    %2055 = vmatpush.bf16.xpose.msra.mxu0 0
    %2056 = vmatpush.bf16.xpose.msra.mxu0 0
    %2057 = vmatpush.bf16.xpose.msra.mxu0 %v2048
    %2058 = vmatmul.bf16.gmra.mxu0 %v2045
    %v2059 = vpop.f32.mrf.mxu0
    %v2060 = vadd.f32 0.0, %v2059
    %v2061 = vpop.f32.mrf.mxu0
    %v2062 = vadd.f32 0.0, %v2061
    %2063 = vdwg.mxu0
    %2064 = vrot.lane.b32.xlu0 %v1850, 64
    %v2065 = vpop.permute.xlu0 %2064
    %2066 = vrot.lane.b32.xlu0 %v1855, 64
    %v2067 = vpop.permute.xlu0 %2066
    %v2069 = vsel %vm513, %v2065, 0
    %v2072 = vsel %vm513, %v2067, 0
    %2074 = vmatpush.bf16.xpose.msra.mxu0 0
    %2075 = vmatpush.bf16.xpose.msra.mxu0 0
    %2076 = vmatpush.bf16.xpose.msra.mxu0 0
    %2077 = vmatpush.bf16.xpose.msra.mxu0 0
    %2078 = vmatpush.bf16.xpose.msra.mxu0 0
    %2079 = vmatpush.bf16.xpose.msra.mxu0 0
    %2080 = vmatpush.bf16.xpose.msra.mxu0 0
    %2081 = vmatpush.bf16.xpose.msra.mxu0 %v2072
    %2082 = vmatmul.bf16.gmra.mxu0 %v2069
    %v2083 = vpop.f32.mrf.mxu0
    %v2084 = vadd.f32 0.0, %v2083
    %v2085 = vpop.f32.mrf.mxu0
    %v2086 = vadd.f32 0.0, %v2085
    %2087 = vdwg.mxu0
    %v2088 = vmul.f32 %v2060, 0.125
    %v2089 = vmul.f32 %v2062, 0.125
    %v2090 = vmul.f32 %v2084, 0.125
    %v2091 = vmul.f32 %v2086, 0.125
    %v2092 = vadd.f32 %v2088, %v262
    %v2093 = vadd.f32 %v2089, %v263
    %v2094 = vadd.f32 %v2090, %v262
    %v2095 = vadd.f32 %v2091, %v263
    %v2096 = vsel %vm572, %v2092, -inf
    %2097 = vmax.xlane.f32.xlu0 %v2096
    %v2098 = vpop.xlane.xlu0 %2097
    %v2099 = vsel %vm572, %v2093, -inf
    %2100 = vmax.xlane.f32.xlu0 %v2099
    %v2101 = vpop.xlane.xlu0 %2100
    %v2102 = vsel %vm572, %v2094, -inf
    %2103 = vmax.xlane.f32.xlu0 %v2102
    %v2104 = vpop.xlane.xlu0 %2103
    %v2105 = vsel %vm572, %v2095, -inf
    %2106 = vmax.xlane.f32.xlu0 %v2105
    %v2107 = vpop.xlane.xlu0 %2106
    %v2108 = vsub.f32 %v2092, %v2098
    %v2109 = vsub.f32 %v2093, %v2101
    %v2110 = vsub.f32 %v2094, %v2104
    %v2111 = vsub.f32 %v2095, %v2107
    %v2112 = vmul.f32 %v2108, 1.442695
    %v2113 = vpow.pop %v2112
    %v2114 = vmul.f32 %v2109, 1.442695
    %v2115 = vpow.pop %v2114
    %v2116 = vmul.f32 %v2110, 1.442695
    %v2117 = vpow.pop %v2116
    %v2118 = vmul.f32 %v2111, 1.442695
    %v2119 = vpow.pop %v2118
    %v2120 = vsel %vm572, %v2113, 0.0
    %2121 = vadd.xlane.f32.xlu0 %v2120
    %v2122 = vpop.xlane.xlu0 %2121
    %v2123 = vsel %vm572, %v2115, 0.0
    %2124 = vadd.xlane.f32.xlu0 %v2123
    %v2125 = vpop.xlane.xlu0 %2124
    %v2126 = vsel %vm572, %v2117, 0.0
    %2127 = vadd.xlane.f32.xlu0 %v2126
    %v2128 = vpop.xlane.xlu0 %2127
    %v2129 = vsel %vm572, %v2119, 0.0
    %2130 = vadd.xlane.f32.xlu0 %v2129
    %v2131 = vpop.xlane.xlu0 %2130
    %v2132 = vrcp.pop %v2122
    %v2133 = vmul.f32 %v2122, %v2132
    %v2134 = vsub.f32 1.0, %v2133
    %v2135 = vmul.f32 %v2132, %v2134
    %v2136 = vadd.f32 %v2132, %v2135
    %vm2137 = vweird.f32 %v2122
    %vm2138 = vweird.f32 %v2132
    %vm2139 = vmor %vm2137, %vm2138
    %v2140 = vsel %vm2139, %v2132, %v2136
    %v2141 = vand.u32 2147483647, %v2122
    %vm2142 = vcmp.eq.f32.partialorder %v2141, 8.507059e+37
    %v2143 = vand.u32 %v2122, 2147483648
    %v2144 = vor.u32 1.1754944e-38, %v2143
    %v2145 = vsel %vm2142, %v2144, %v2140
    %v2146 = vmul.f32 %v2113, %v2145
    %v2147 = vrcp.pop %v2125
    %v2148 = vmul.f32 %v2125, %v2147
    %v2149 = vsub.f32 1.0, %v2148
    %v2150 = vmul.f32 %v2147, %v2149
    %v2151 = vadd.f32 %v2147, %v2150
    %vm2152 = vweird.f32 %v2125
    %vm2153 = vweird.f32 %v2147
    %vm2154 = vmor %vm2152, %vm2153
    %v2155 = vsel %vm2154, %v2147, %v2151
    %v2156 = vand.u32 2147483647, %v2125
    %vm2157 = vcmp.eq.f32.partialorder %v2156, 8.507059e+37
    %v2158 = vand.u32 %v2125, 2147483648
    %v2159 = vor.u32 1.1754944e-38, %v2158
    %v2160 = vsel %vm2157, %v2159, %v2155
    %v2161 = vmul.f32 %v2115, %v2160
    %v2162 = vrcp.pop %v2128
    %v2163 = vmul.f32 %v2128, %v2162
    %v2164 = vsub.f32 1.0, %v2163
    %v2165 = vmul.f32 %v2162, %v2164
    %v2166 = vadd.f32 %v2162, %v2165
    %vm2167 = vweird.f32 %v2128
    %vm2168 = vweird.f32 %v2162
    %vm2169 = vmor %vm2167, %vm2168
    %v2170 = vsel %vm2169, %v2162, %v2166
    %v2171 = vand.u32 2147483647, %v2128
    %vm2172 = vcmp.eq.f32.partialorder %v2171, 8.507059e+37
    %v2173 = vand.u32 %v2128, 2147483648
    %v2174 = vor.u32 1.1754944e-38, %v2173
    %v2175 = vsel %vm2172, %v2174, %v2170
    %v2176 = vmul.f32 %v2117, %v2175
    %v2177 = vrcp.pop %v2131
    %v2178 = vmul.f32 %v2131, %v2177
    %v2179 = vsub.f32 1.0, %v2178
    %v2180 = vmul.f32 %v2177, %v2179
    %v2181 = vadd.f32 %v2177, %v2180
    %vm2182 = vweird.f32 %v2131
    %vm2183 = vweird.f32 %v2177
    %vm2184 = vmor %vm2182, %vm2183
    %v2185 = vsel %vm2184, %v2177, %v2181
    %v2186 = vand.u32 2147483647, %v2131
    %vm2187 = vcmp.eq.f32.partialorder %v2186, 8.507059e+37
    %v2188 = vand.u32 %v2131, 2147483648
    %v2189 = vor.u32 1.1754944e-38, %v2188
    %v2190 = vsel %vm2187, %v2189, %v2185
    %v2191 = vmul.f32 %v2119, %v2190
    %v2192 = vpack.c.bf16 %v2146, %v2146
    %v2193 = vpack.c.bf16 %v2161, %v2161
    %v2194 = vpack.c.bf16 %v2176, %v2176
    %v2195 = vpack.c.bf16 %v2191, %v2191
    %v2198 = vunpack.c.l.b16 %v2192
    %v2199 = vunpack.c.l.b16 %v2193
    %v2200 = vpack.c.b16 %v2199, %v2198
    %2201 = vrot.lane.b32.xlu0 %v1993, 64
    %v2202 = vpop.permute.xlu0 %2201
    %v2205 = vsel %vm572, %v2200, 0
    %2207 = vmatpush.bf16.msra.mxu0 0
    %2208 = vmatpush.bf16.msra.mxu0 0
    %2209 = vmatpush.bf16.msra.mxu0 0
    %2210 = vmatpush.bf16.msra.mxu0 0
    %2211 = vmatpush.bf16.msra.mxu0 0
    %2212 = vmatpush.bf16.msra.mxu0 0
    %2213 = vmatpush.bf16.msra.mxu0 0
    %2214 = vmatpush.bf16.msra.mxu0 %v2202
    %2215 = vmatmul.bf16.gmra.mxu0 %v2205
    %v2216 = vpop.f32.mrf.mxu0
    %v2217 = vadd.f32 0.0, %v2216
    %v2218 = vpop.f32.mrf.mxu0
    %v2219 = vadd.f32 0.0, %v2218
    %2220 = vdwg.mxu0
    %v2223 = vunpack.c.l.b16 %v2194
    %v2224 = vunpack.c.l.b16 %v2195
    %v2225 = vpack.c.b16 %v2224, %v2223
    %2226 = vrot.lane.b32.xlu0 %v2021, 64
    %v2227 = vpop.permute.xlu0 %2226
    %v2230 = vsel %vm572, %v2225, 0
    %2232 = vmatpush.bf16.msra.mxu0 0
    %2233 = vmatpush.bf16.msra.mxu0 0
    %2234 = vmatpush.bf16.msra.mxu0 0
    %2235 = vmatpush.bf16.msra.mxu0 0
    %2236 = vmatpush.bf16.msra.mxu0 0
    %2237 = vmatpush.bf16.msra.mxu0 0
    %2238 = vmatpush.bf16.msra.mxu0 0
    %2239 = vmatpush.bf16.msra.mxu0 %v2227
    %2240 = vmatmul.bf16.gmra.mxu0 %v2230
    %v2241 = vpop.f32.mrf.mxu0
    %v2242 = vadd.f32 0.0, %v2241
    %v2243 = vpop.f32.mrf.mxu0
    %v2244 = vadd.f32 0.0, %v2243
    %2245 = vdwg.mxu0
    %2250 = vrot.lane.b32.xlu0 %v2217, 64
    %v2251 = vpop.permute.xlu0 %2250
    %2252 = vrot.lane.b32.xlu0 %v2219, 64
    %v2253 = vpop.permute.xlu0 %2252
    %2254 = vrot.lane.b32.xlu0 %v2242, 64
    %v2255 = vpop.permute.xlu0 %2254
    %2256 = vrot.lane.b32.xlu0 %v2244, 64
    %v2257 = vpop.permute.xlu0 %2256
    %v2262 = vsel %vm513, %v2008, %v2251
    %v2263 = vsel %vm513, %v2010, %v2253
    %v2264 = vsel %vm513, %v2036, %v2255
    %v2265 = vsel %vm513, %v2038, %v2257
    %v2266 = vpack.c.bf16 %v2263, %v2262
    %v2267 = vpack.c.bf16 %v2265, %v2264
    %s2268 = scalar_lea.vmem [#allocation11], 64
    %v2269 = vld [vmem:[%s2268] sm:$0xf]
    %v2270 = vld [vmem:[%s2268 + $0x4] sm:$0xf]
    %v2271 = vld [vmem:[%s2268 + $0x8] sm:$0xf]
    %v2272 = vld [vmem:[%s2268 + $0xc] sm:$0xf]
    %v2273 = vld [vmem:[%s2268 + $0x10] sm:$0xf]
    %v2274 = vld [vmem:[%s2268 + $0x14] sm:$0xf]
    %v2275 = vld [vmem:[%s2268 + $0x18] sm:$0xf]
    %v2276 = vld [vmem:[%s2268 + $0x1c] sm:$0xf]
    %v2277 = vld [vmem:[%s2268 + $0x20] sm:$0xf]
    %v2278 = vld [vmem:[%s2268 + $0x24] sm:$0xf]
    %v2279 = vld [vmem:[%s2268 + $0x28] sm:$0xf]
    %v2280 = vld [vmem:[%s2268 + $0x2c] sm:$0xf]
    %v2281 = vld [vmem:[%s2268 + $0x30] sm:$0xf]
    %v2282 = vld [vmem:[%s2268 + $0x34] sm:$0xf]
    %v2283 = vld [vmem:[%s2268 + $0x38] sm:$0xf]
    %v2284 = vld [vmem:[%s2268 + $0x3c] sm:$0xf]
    %s2285 = scalar_lea.vmem [#allocation13], 1
    %v2286 = vld [vmem:[%s2285] sm:$0x1]
    %v2288 = vperm.slane %v2286, 0
    %v2306 = vunpack.c.l.b16 %v2269
    %v2307 = vunpack.c.l.b16 %v2270
    %v2308 = vunpack.c.l.b16 %v2271
    %v2309 = vunpack.c.l.b16 %v2272
    %v2310 = vunpack.c.l.b16 %v2273
    %v2311 = vunpack.c.l.b16 %v2274
    %v2312 = vunpack.c.l.b16 %v2275
    %v2313 = vunpack.c.l.b16 %v2276
    %v2314 = vunpack.c.l.b16 %v2277
    %v2315 = vunpack.c.l.b16 %v2278
    %v2316 = vunpack.c.l.b16 %v2279
    %v2317 = vunpack.c.l.b16 %v2280
    %v2318 = vunpack.c.l.b16 %v2281
    %v2319 = vunpack.c.l.b16 %v2282
    %v2320 = vunpack.c.l.b16 %v2283
    %v2321 = vunpack.c.l.b16 %v2284
    %v2322 = vpack.c.b16 %v2307, %v2306
    %v2323 = vpack.c.b16 %v2309, %v2308
    %v2324 = vpack.c.b16 %v2311, %v2310
    %v2325 = vpack.c.b16 %v2313, %v2312
    %v2326 = vpack.c.b16 %v2315, %v2314
    %v2327 = vpack.c.b16 %v2317, %v2316
    %v2328 = vpack.c.b16 %v2319, %v2318
    %v2329 = vpack.c.b16 %v2321, %v2320
    %2338 = vmatpush.bf16.msra.mxu0 %v2329
    %2339 = vmatpush.bf16.msra.mxu0 %v2328
    %2340 = vmatpush.bf16.msra.mxu0 %v2327
    %2341 = vmatpush.bf16.msra.mxu0 %v2326
    %2342 = vmatpush.bf16.msra.mxu0 %v2325
    %2343 = vmatpush.bf16.msra.mxu0 %v2324
    %2344 = vmatpush.bf16.msra.mxu0 %v2323
    %2345 = vmatpush.bf16.msra.mxu0 %v2322
    %2346 = vmatmul.bf16.gmra.mxu0 %v2266
    %v2347 = vpop.f32.mrf.mxu0
    %v2348 = vadd.f32 %v2288, %v2347
    %v2349 = vpop.f32.mrf.mxu0
    %v2350 = vadd.f32 %v2288, %v2349
    %2351 = vmatmul.bf16.gmra.mxu0 %v2267
    %v2352 = vpop.f32.mrf.mxu0
    %v2353 = vadd.f32 %v2288, %v2352
    %v2354 = vpop.f32.mrf.mxu0
    %v2355 = vadd.f32 %v2288, %v2354
    %2356 = vdwg.mxu0
    %v2357 = vadd.f32 %v1571, %v2348
    %v2358 = vadd.f32 %v1572, %v2350
    %v2359 = vadd.f32 %v1573, %v2353
    %v2360 = vadd.f32 %v1574, %v2355
    %s2361 = scalar_lea.vmem [#allocation14], 1
    %v2362 = vld [vmem:[%s2361] sm:$0x1]
    %s2363 = scalar_lea.vmem [#allocation16], 1
    %v2364 = vld [vmem:[%s2363] sm:$0x1]
    %2365 = vadd.xlane.f32.xlu0 %v2357
    %v2366 = vpop.xlane.xlu0 %2365
    %2367 = vadd.xlane.f32.xlu0 %v2358
    %v2368 = vpop.xlane.xlu0 %2367
    %2369 = vadd.xlane.f32.xlu0 %v2359
    %v2370 = vpop.xlane.xlu0 %2369
    %2371 = vadd.xlane.f32.xlu0 %v2360
    %v2372 = vpop.xlane.xlu0 %2371
    %v2373 = vmul.f32 %v2366, %v1064
    %v2374 = vmul.f32 %v2368, %v1064
    %v2375 = vmul.f32 %v2370, %v1064
    %v2376 = vmul.f32 %v2372, %v1064
    %v2377 = vsub.f32 %v2357, %v2373
    %v2378 = vsub.f32 %v2358, %v2374
    %v2379 = vsub.f32 %v2359, %v2375
    %v2380 = vsub.f32 %v2360, %v2376
    %v2381 = vmul.f32 %v2377, %v2377
    %v2382 = vmul.f32 %v2378, %v2378
    %v2383 = vmul.f32 %v2379, %v2379
    %v2384 = vmul.f32 %v2380, %v2380
    %2385 = vadd.xlane.f32.xlu0 %v2381
    %v2386 = vpop.xlane.xlu0 %2385
    %2387 = vadd.xlane.f32.xlu0 %v2382
    %v2388 = vpop.xlane.xlu0 %2387
    %2389 = vadd.xlane.f32.xlu0 %v2383
    %v2390 = vpop.xlane.xlu0 %2389
    %2391 = vadd.xlane.f32.xlu0 %v2384
    %v2392 = vpop.xlane.xlu0 %2391
    %v2393 = vmul.f32 %v2386, %v1064
    %v2394 = vmul.f32 %v2388, %v1064
    %v2395 = vmul.f32 %v2390, %v1064
    %v2396 = vmul.f32 %v2392, %v1064
    %v2397 = vadd.f32 %v2393, 1e-05
    %v2398 = vadd.f32 %v2394, 1e-05
    %v2399 = vadd.f32 %v2395, 1e-05
    %v2400 = vadd.f32 %v2396, 1e-05
    %v2401 = vrsqrt.pop %v2397
    %v2402 = vmul.f32 %v2401, %v2397
    %v2403 = vmul.f32 %v2402, %v2401
    %v2404 = vmul.f32 0.5, %v2403
    %v2405 = vsub.f32 1.5, %v2404
    %v2406 = vmul.f32 %v2401, %v2405
    %vm2407 = vweird.f32 %v2397
    %vm2408 = vweird.f32 %v2401
    %vm2409 = vmor %vm2407, %vm2408
    %v2410 = vsel %vm2409, %v2401, %v2406
    %v2411 = vrsqrt.pop %v2398
    %v2412 = vmul.f32 %v2411, %v2398
    %v2413 = vmul.f32 %v2412, %v2411
    %v2414 = vmul.f32 0.5, %v2413
    %v2415 = vsub.f32 1.5, %v2414
    %v2416 = vmul.f32 %v2411, %v2415
    %vm2417 = vweird.f32 %v2398
    %vm2418 = vweird.f32 %v2411
    %vm2419 = vmor %vm2417, %vm2418
    %v2420 = vsel %vm2419, %v2411, %v2416
    %v2421 = vrsqrt.pop %v2399
    %v2422 = vmul.f32 %v2421, %v2399
    %v2423 = vmul.f32 %v2422, %v2421
    %v2424 = vmul.f32 0.5, %v2423
    %v2425 = vsub.f32 1.5, %v2424
    %v2426 = vmul.f32 %v2421, %v2425
    %vm2427 = vweird.f32 %v2399
    %vm2428 = vweird.f32 %v2421
    %vm2429 = vmor %vm2427, %vm2428
    %v2430 = vsel %vm2429, %v2421, %v2426
    %v2431 = vrsqrt.pop %v2400
    %v2432 = vmul.f32 %v2431, %v2400
    %v2433 = vmul.f32 %v2432, %v2431
    %v2434 = vmul.f32 0.5, %v2433
    %v2435 = vsub.f32 1.5, %v2434
    %v2436 = vmul.f32 %v2431, %v2435
    %vm2437 = vweird.f32 %v2400
    %vm2438 = vweird.f32 %v2431
    %vm2439 = vmor %vm2437, %vm2438
    %v2440 = vsel %vm2439, %v2431, %v2436
    %v2441 = vmul.f32 %v2377, %v2410
    %v2442 = vmul.f32 %v2378, %v2420
    %v2443 = vmul.f32 %v2379, %v2430
    %v2444 = vmul.f32 %v2380, %v2440
    %v2446 = vperm.slane %v2362, 0
    %v2448 = vmul.f32 %v2441, %v2446
    %v2449 = vmul.f32 %v2442, %v2446
    %v2450 = vmul.f32 %v2443, %v2446
    %v2451 = vmul.f32 %v2444, %v2446
    %v2453 = vperm.slane %v2364, 0
    %v2455 = vadd.f32 %v2448, %v2453
    %v2456 = vadd.f32 %v2449, %v2453
    %v2457 = vadd.f32 %v2450, %v2453
    %v2458 = vadd.f32 %v2451, %v2453
    %v2459 = vpack.c.bf16 %v2456, %v2455
    %v2460 = vpack.c.bf16 %v2458, %v2457
    %s2461 = scalar_lea.vmem [#allocation17], 128
    %v2462 = vld [vmem:[%s2461] sm:$0xff]
    %v2463 = vld [vmem:[%s2461 + $0x8] sm:$0xff]
    %v2464 = vld [vmem:[%s2461 + $0x10] sm:$0xff]
    %v2465 = vld [vmem:[%s2461 + $0x18] sm:$0xff]
    %v2466 = vld [vmem:[%s2461 + $0x20] sm:$0xff]
    %v2467 = vld [vmem:[%s2461 + $0x28] sm:$0xff]
    %v2468 = vld [vmem:[%s2461 + $0x30] sm:$0xff]
    %v2469 = vld [vmem:[%s2461 + $0x38] sm:$0xff]
    %v2470 = vld [vmem:[%s2461 + $0x40] sm:$0xff]
    %v2471 = vld [vmem:[%s2461 + $0x48] sm:$0xff]
    %v2472 = vld [vmem:[%s2461 + $0x50] sm:$0xff]
    %v2473 = vld [vmem:[%s2461 + $0x58] sm:$0xff]
    %v2474 = vld [vmem:[%s2461 + $0x60] sm:$0xff]
    %v2475 = vld [vmem:[%s2461 + $0x68] sm:$0xff]
    %v2476 = vld [vmem:[%s2461 + $0x70] sm:$0xff]
    %v2477 = vld [vmem:[%s2461 + $0x78] sm:$0xff]
    %s2478 = scalar_lea.vmem %s10, 2
    %v2479 = vld [vmem:[%s2478] sm:$0x3]
    %v2481 = vperm.slane %v2479, 0
    %v2482 = vperm.slane %v2479, 1
    %v2501 = vunpack.c.l.b16 %v2462
    %v2502 = vunpack.c.h.b16 %v2462
    %v2503 = vunpack.c.l.b16 %v2463
    %v2504 = vunpack.c.h.b16 %v2463
    %v2505 = vunpack.c.l.b16 %v2464
    %v2506 = vunpack.c.h.b16 %v2464
    %v2507 = vunpack.c.l.b16 %v2465
    %v2508 = vunpack.c.h.b16 %v2465
    %v2509 = vunpack.c.l.b16 %v2466
    %v2510 = vunpack.c.h.b16 %v2466
    %v2511 = vunpack.c.l.b16 %v2467
    %v2512 = vunpack.c.h.b16 %v2467
    %v2513 = vunpack.c.l.b16 %v2468
    %v2514 = vunpack.c.h.b16 %v2468
    %v2515 = vunpack.c.l.b16 %v2469
    %v2516 = vunpack.c.h.b16 %v2469
    %v2517 = vunpack.c.l.b16 %v2470
    %v2518 = vunpack.c.h.b16 %v2470
    %v2519 = vunpack.c.l.b16 %v2471
    %v2520 = vunpack.c.h.b16 %v2471
    %v2521 = vunpack.c.l.b16 %v2472
    %v2522 = vunpack.c.h.b16 %v2472
    %v2523 = vunpack.c.l.b16 %v2473
    %v2524 = vunpack.c.h.b16 %v2473
    %v2525 = vunpack.c.l.b16 %v2474
    %v2526 = vunpack.c.h.b16 %v2474
    %v2527 = vunpack.c.l.b16 %v2475
    %v2528 = vunpack.c.h.b16 %v2475
    %v2529 = vunpack.c.l.b16 %v2476
    %v2530 = vunpack.c.h.b16 %v2476
    %v2531 = vunpack.c.l.b16 %v2477
    %v2532 = vunpack.c.h.b16 %v2477
    %v2533 = vpack.c.b16 %v2503, %v2501
    %v2534 = vpack.c.b16 %v2504, %v2502
    %v2535 = vpack.c.b16 %v2507, %v2505
    %v2536 = vpack.c.b16 %v2508, %v2506
    %v2537 = vpack.c.b16 %v2511, %v2509
    %v2538 = vpack.c.b16 %v2512, %v2510
    %v2539 = vpack.c.b16 %v2515, %v2513
    %v2540 = vpack.c.b16 %v2516, %v2514
    %v2541 = vpack.c.b16 %v2519, %v2517
    %v2542 = vpack.c.b16 %v2520, %v2518
    %v2543 = vpack.c.b16 %v2523, %v2521
    %v2544 = vpack.c.b16 %v2524, %v2522
    %v2545 = vpack.c.b16 %v2527, %v2525
    %v2546 = vpack.c.b16 %v2528, %v2526
    %v2547 = vpack.c.b16 %v2531, %v2529
    %v2548 = vpack.c.b16 %v2532, %v2530
    %2565 = vmatpush.bf16.msra.mxu0 %v2547
    %2566 = vmatpush.bf16.msra.mxu0 %v2545
    %2567 = vmatpush.bf16.msra.mxu0 %v2543
    %2568 = vmatpush.bf16.msra.mxu0 %v2541
    %2569 = vmatpush.bf16.msra.mxu0 %v2539
    %2570 = vmatpush.bf16.msra.mxu0 %v2537
    %2571 = vmatpush.bf16.msra.mxu0 %v2535
    %2572 = vmatpush.bf16.msra.mxu0 %v2533
    %2573 = vmatmul.bf16.gmra.mxu0 %v2459
    %v2574 = vpop.f32.mrf.mxu0
    %v2575 = vadd.f32 %v2481, %v2574
    %v2576 = vpop.f32.mrf.mxu0
    %v2577 = vadd.f32 %v2481, %v2576
    %2578 = vmatmul.bf16.gmra.mxu0 %v2460
    %v2579 = vpop.f32.mrf.mxu0
    %v2580 = vadd.f32 %v2481, %v2579
    %v2581 = vpop.f32.mrf.mxu0
    %v2582 = vadd.f32 %v2481, %v2581
    %2583 = vdwg.mxu0
    %2584 = vmatpush.bf16.msra.mxu0 %v2548
    %2585 = vmatpush.bf16.msra.mxu0 %v2546
    %2586 = vmatpush.bf16.msra.mxu0 %v2544
    %2587 = vmatpush.bf16.msra.mxu0 %v2542
    %2588 = vmatpush.bf16.msra.mxu0 %v2540
    %2589 = vmatpush.bf16.msra.mxu0 %v2538
    %2590 = vmatpush.bf16.msra.mxu0 %v2536
    %2591 = vmatpush.bf16.msra.mxu0 %v2534
    %2592 = vmatmul.bf16.gmra.mxu0 %v2459
    %v2593 = vpop.f32.mrf.mxu0
    %v2594 = vadd.f32 %v2482, %v2593
    %v2595 = vpop.f32.mrf.mxu0
    %v2596 = vadd.f32 %v2482, %v2595
    %2597 = vmatmul.bf16.gmra.mxu0 %v2460
    %v2598 = vpop.f32.mrf.mxu0
    %v2599 = vadd.f32 %v2482, %v2598
    %v2600 = vpop.f32.mrf.mxu0
    %v2601 = vadd.f32 %v2482, %v2600
    %2602 = vdwg.mxu0
    %v2603 = vmax.f32 %v2575, 0.0
    %v2604 = vmax.f32 %v2594, 0.0
    %v2605 = vmax.f32 %v2577, 0.0
    %v2606 = vmax.f32 %v2596, 0.0
    %v2607 = vmax.f32 %v2580, 0.0
    %v2608 = vmax.f32 %v2599, 0.0
    %v2609 = vmax.f32 %v2582, 0.0
    %v2610 = vmax.f32 %v2601, 0.0
    %v2611 = vpack.c.bf16 %v2605, %v2603
    %v2612 = vpack.c.bf16 %v2606, %v2604
    %v2613 = vpack.c.bf16 %v2609, %v2607
    %v2614 = vpack.c.bf16 %v2610, %v2608
    %s2615 = scalar_lea.vmem [#allocation19], 128
    %v2616 = vld [vmem:[%s2615] sm:$0xf]
    %v2617 = vld [vmem:[%s2615 + $0x4] sm:$0xf]
    %v2618 = vld [vmem:[%s2615 + $0x8] sm:$0xf]
    %v2619 = vld [vmem:[%s2615 + $0xc] sm:$0xf]
    %v2620 = vld [vmem:[%s2615 + $0x10] sm:$0xf]
    %v2621 = vld [vmem:[%s2615 + $0x14] sm:$0xf]
    %v2622 = vld [vmem:[%s2615 + $0x18] sm:$0xf]
    %v2623 = vld [vmem:[%s2615 + $0x1c] sm:$0xf]
    %v2624 = vld [vmem:[%s2615 + $0x20] sm:$0xf]
    %v2625 = vld [vmem:[%s2615 + $0x24] sm:$0xf]
    %v2626 = vld [vmem:[%s2615 + $0x28] sm:$0xf]
    %v2627 = vld [vmem:[%s2615 + $0x2c] sm:$0xf]
    %v2628 = vld [vmem:[%s2615 + $0x30] sm:$0xf]
    %v2629 = vld [vmem:[%s2615 + $0x34] sm:$0xf]
    %v2630 = vld [vmem:[%s2615 + $0x38] sm:$0xf]
    %v2631 = vld [vmem:[%s2615 + $0x3c] sm:$0xf]
    %v2632 = vld [vmem:[%s2615 + $0x40] sm:$0xf]
    %v2633 = vld [vmem:[%s2615 + $0x44] sm:$0xf]
    %v2634 = vld [vmem:[%s2615 + $0x48] sm:$0xf]
    %v2635 = vld [vmem:[%s2615 + $0x4c] sm:$0xf]
    %v2636 = vld [vmem:[%s2615 + $0x50] sm:$0xf]
    %v2637 = vld [vmem:[%s2615 + $0x54] sm:$0xf]
    %v2638 = vld [vmem:[%s2615 + $0x58] sm:$0xf]
    %v2639 = vld [vmem:[%s2615 + $0x5c] sm:$0xf]
    %v2640 = vld [vmem:[%s2615 + $0x60] sm:$0xf]
    %v2641 = vld [vmem:[%s2615 + $0x64] sm:$0xf]
    %v2642 = vld [vmem:[%s2615 + $0x68] sm:$0xf]
    %v2643 = vld [vmem:[%s2615 + $0x6c] sm:$0xf]
    %v2644 = vld [vmem:[%s2615 + $0x70] sm:$0xf]
    %v2645 = vld [vmem:[%s2615 + $0x74] sm:$0xf]
    %v2646 = vld [vmem:[%s2615 + $0x78] sm:$0xf]
    %v2647 = vld [vmem:[%s2615 + $0x7c] sm:$0xf]
    %s2648 = scalar_lea.vmem %s12, 1
    %v2649 = vld [vmem:[%s2648] sm:$0x1]
    %v2651 = vperm.slane %v2649, 0
    %v2685 = vunpack.c.l.b16 %v2616
    %v2686 = vunpack.c.l.b16 %v2617
    %v2687 = vunpack.c.l.b16 %v2618
    %v2688 = vunpack.c.l.b16 %v2619
    %v2689 = vunpack.c.l.b16 %v2620
    %v2690 = vunpack.c.l.b16 %v2621
    %v2691 = vunpack.c.l.b16 %v2622
    %v2692 = vunpack.c.l.b16 %v2623
    %v2693 = vunpack.c.l.b16 %v2624
    %v2694 = vunpack.c.l.b16 %v2625
    %v2695 = vunpack.c.l.b16 %v2626
    %v2696 = vunpack.c.l.b16 %v2627
    %v2697 = vunpack.c.l.b16 %v2628
    %v2698 = vunpack.c.l.b16 %v2629
    %v2699 = vunpack.c.l.b16 %v2630
    %v2700 = vunpack.c.l.b16 %v2631
    %v2701 = vunpack.c.l.b16 %v2632
    %v2702 = vunpack.c.l.b16 %v2633
    %v2703 = vunpack.c.l.b16 %v2634
    %v2704 = vunpack.c.l.b16 %v2635
    %v2705 = vunpack.c.l.b16 %v2636
    %v2706 = vunpack.c.l.b16 %v2637
    %v2707 = vunpack.c.l.b16 %v2638
    %v2708 = vunpack.c.l.b16 %v2639
    %v2709 = vunpack.c.l.b16 %v2640
    %v2710 = vunpack.c.l.b16 %v2641
    %v2711 = vunpack.c.l.b16 %v2642
    %v2712 = vunpack.c.l.b16 %v2643
    %v2713 = vunpack.c.l.b16 %v2644
    %v2714 = vunpack.c.l.b16 %v2645
    %v2715 = vunpack.c.l.b16 %v2646
    %v2716 = vunpack.c.l.b16 %v2647
    %v2717 = vpack.c.b16 %v2686, %v2685
    %v2718 = vpack.c.b16 %v2688, %v2687
    %v2719 = vpack.c.b16 %v2690, %v2689
    %v2720 = vpack.c.b16 %v2692, %v2691
    %v2721 = vpack.c.b16 %v2694, %v2693
    %v2722 = vpack.c.b16 %v2696, %v2695
    %v2723 = vpack.c.b16 %v2698, %v2697
    %v2724 = vpack.c.b16 %v2700, %v2699
    %v2725 = vpack.c.b16 %v2702, %v2701
    %v2726 = vpack.c.b16 %v2704, %v2703
    %v2727 = vpack.c.b16 %v2706, %v2705
    %v2728 = vpack.c.b16 %v2708, %v2707
    %v2729 = vpack.c.b16 %v2710, %v2709
    %v2730 = vpack.c.b16 %v2712, %v2711
    %v2731 = vpack.c.b16 %v2714, %v2713
    %v2732 = vpack.c.b16 %v2716, %v2715
    %2749 = vmatpush.bf16.msra.mxu0 %v2724
    %2750 = vmatpush.bf16.msra.mxu0 %v2723
    %2751 = vmatpush.bf16.msra.mxu0 %v2722
    %2752 = vmatpush.bf16.msra.mxu0 %v2721
    %2753 = vmatpush.bf16.msra.mxu0 %v2720
    %2754 = vmatpush.bf16.msra.mxu0 %v2719
    %2755 = vmatpush.bf16.msra.mxu0 %v2718
    %2756 = vmatpush.bf16.msra.mxu0 %v2717
    %2757 = vmatmul.bf16.gmra.mxu0 %v2611
    %v2758 = vpop.f32.mrf.mxu0
    %v2759 = vadd.f32 %v2651, %v2758
    %v2760 = vpop.f32.mrf.mxu0
    %v2761 = vadd.f32 %v2651, %v2760
    %2762 = vmatmul.bf16.gmra.mxu0 %v2613
    %v2763 = vpop.f32.mrf.mxu0
    %v2764 = vadd.f32 %v2651, %v2763
    %v2765 = vpop.f32.mrf.mxu0
    %v2766 = vadd.f32 %v2651, %v2765
    %2767 = vdwg.mxu0
    %2768 = vmatpush.bf16.msra.mxu0 %v2732
    %2769 = vmatpush.bf16.msra.mxu0 %v2731
    %2770 = vmatpush.bf16.msra.mxu0 %v2730
    %2771 = vmatpush.bf16.msra.mxu0 %v2729
    %2772 = vmatpush.bf16.msra.mxu0 %v2728
    %2773 = vmatpush.bf16.msra.mxu0 %v2727
    %2774 = vmatpush.bf16.msra.mxu0 %v2726
    %2775 = vmatpush.bf16.msra.mxu0 %v2725
    %2776 = vmatmul.bf16.gmra.mxu0 %v2612
    %v2777 = vpop.f32.mrf.mxu0
    %v2778 = vadd.f32 %v2759, %v2777
    %v2779 = vpop.f32.mrf.mxu0
    %v2780 = vadd.f32 %v2761, %v2779
    %2781 = vmatmul.bf16.gmra.mxu0 %v2614
    %v2782 = vpop.f32.mrf.mxu0
    %v2783 = vadd.f32 %v2764, %v2782
    %v2784 = vpop.f32.mrf.mxu0
    %v2785 = vadd.f32 %v2766, %v2784
    %2786 = vdwg.mxu0
    %v2787 = vadd.f32 %v2455, %v2778
    %v2788 = vadd.f32 %v2456, %v2780
    %v2789 = vadd.f32 %v2457, %v2783
    %v2790 = vadd.f32 %v2458, %v2785
    %s2791 = scalar_lea.vmem %s13, 1
    %v2792 = vld [vmem:[%s2791] sm:$0x1]
    %s2793 = scalar_lea.vmem %s14, 1
    %v2794 = vld [vmem:[%s2793] sm:$0x1]
    %2795 = vadd.xlane.f32.xlu0 %v2787
    %v2796 = vpop.xlane.xlu0 %2795
    %2797 = vadd.xlane.f32.xlu0 %v2788
    %v2798 = vpop.xlane.xlu0 %2797
    %2799 = vadd.xlane.f32.xlu0 %v2789
    %v2800 = vpop.xlane.xlu0 %2799
    %2801 = vadd.xlane.f32.xlu0 %v2790
    %v2802 = vpop.xlane.xlu0 %2801
    %v2803 = vmul.f32 %v2796, %v1064
    %v2804 = vmul.f32 %v2798, %v1064
    %v2805 = vmul.f32 %v2800, %v1064
    %v2806 = vmul.f32 %v2802, %v1064
    %v2807 = vsub.f32 %v2787, %v2803
    %v2808 = vsub.f32 %v2788, %v2804
    %v2809 = vsub.f32 %v2789, %v2805
    %v2810 = vsub.f32 %v2790, %v2806
    %v2811 = vmul.f32 %v2807, %v2807
    %v2812 = vmul.f32 %v2808, %v2808
    %v2813 = vmul.f32 %v2809, %v2809
    %v2814 = vmul.f32 %v2810, %v2810
    %2815 = vadd.xlane.f32.xlu0 %v2811
    %v2816 = vpop.xlane.xlu0 %2815
    %2817 = vadd.xlane.f32.xlu0 %v2812
    %v2818 = vpop.xlane.xlu0 %2817
    %2819 = vadd.xlane.f32.xlu0 %v2813
    %v2820 = vpop.xlane.xlu0 %2819
    %2821 = vadd.xlane.f32.xlu0 %v2814
    %v2822 = vpop.xlane.xlu0 %2821
    %v2823 = vmul.f32 %v2816, %v1064
    %v2824 = vmul.f32 %v2818, %v1064
    %v2825 = vmul.f32 %v2820, %v1064
    %v2826 = vmul.f32 %v2822, %v1064
    %v2827 = vadd.f32 %v2823, 1e-05
    %v2828 = vadd.f32 %v2824, 1e-05
    %v2829 = vadd.f32 %v2825, 1e-05
    %v2830 = vadd.f32 %v2826, 1e-05
    %v2831 = vrsqrt.pop %v2827
    %v2832 = vmul.f32 %v2831, %v2827
    %v2833 = vmul.f32 %v2832, %v2831
    %v2834 = vmul.f32 0.5, %v2833
    %v2835 = vsub.f32 1.5, %v2834
    %v2836 = vmul.f32 %v2831, %v2835
    %vm2837 = vweird.f32 %v2827
    %vm2838 = vweird.f32 %v2831
    %vm2839 = vmor %vm2837, %vm2838
    %v2840 = vsel %vm2839, %v2831, %v2836
    %v2841 = vrsqrt.pop %v2828
    %v2842 = vmul.f32 %v2841, %v2828
    %v2843 = vmul.f32 %v2842, %v2841
    %v2844 = vmul.f32 0.5, %v2843
    %v2845 = vsub.f32 1.5, %v2844
    %v2846 = vmul.f32 %v2841, %v2845
    %vm2847 = vweird.f32 %v2828
    %vm2848 = vweird.f32 %v2841
    %vm2849 = vmor %vm2847, %vm2848
    %v2850 = vsel %vm2849, %v2841, %v2846
    %v2851 = vrsqrt.pop %v2829
    %v2852 = vmul.f32 %v2851, %v2829
    %v2853 = vmul.f32 %v2852, %v2851
    %v2854 = vmul.f32 0.5, %v2853
    %v2855 = vsub.f32 1.5, %v2854
    %v2856 = vmul.f32 %v2851, %v2855
    %vm2857 = vweird.f32 %v2829
    %vm2858 = vweird.f32 %v2851
    %vm2859 = vmor %vm2857, %vm2858
    %v2860 = vsel %vm2859, %v2851, %v2856
    %v2861 = vrsqrt.pop %v2830
    %v2862 = vmul.f32 %v2861, %v2830
    %v2863 = vmul.f32 %v2862, %v2861
    %v2864 = vmul.f32 0.5, %v2863
    %v2865 = vsub.f32 1.5, %v2864
    %v2866 = vmul.f32 %v2861, %v2865
    %vm2867 = vweird.f32 %v2830
    %vm2868 = vweird.f32 %v2861
    %vm2869 = vmor %vm2867, %vm2868
    %v2870 = vsel %vm2869, %v2861, %v2866
    %v2871 = vmul.f32 %v2807, %v2840
    %v2872 = vmul.f32 %v2808, %v2850
    %v2873 = vmul.f32 %v2809, %v2860
    %v2874 = vmul.f32 %v2810, %v2870
    %v2876 = vperm.slane %v2792, 0
    %v2878 = vmul.f32 %v2871, %v2876
    %v2879 = vmul.f32 %v2872, %v2876
    %v2880 = vmul.f32 %v2873, %v2876
    %v2881 = vmul.f32 %v2874, %v2876
    %v2883 = vperm.slane %v2794, 0
    %v2885 = vadd.f32 %v2878, %v2883
    %v2886 = vadd.f32 %v2879, %v2883
    %v2887 = vadd.f32 %v2880, %v2883
    %v2888 = vadd.f32 %v2881, %v2883
    %2889 = vst [vmem:[#allocation22] sm:$0xff] %v2885
    %2890 = vst [vmem:[#allocation22 + $0x8] sm:$0xff] %v2886
    %2891 = vst [vmem:[#allocation22 + $0x10] sm:$0xff] %v2887
    %2892 = vst [vmem:[#allocation22 + $0x18] sm:$0xff] %v2888
    %v2893 = vpack.c.bf16 %v2886, %v2885
    %v2894 = vpack.c.bf16 %v2888, %v2887
    %v2895 = vld [vmem:[#allocation20] sm:$0xff]
    %v2896 = vld [vmem:[#allocation20 + $0x8] sm:$0xf]
    %v2897 = vld [vmem:[#allocation20 + $0xc] sm:$0xff]
    %v2898 = vld [vmem:[#allocation20 + $0x14] sm:$0xf]
    %v2899 = vld [vmem:[#allocation20 + $0x18] sm:$0xff]
    %v2900 = vld [vmem:[#allocation20 + $0x20] sm:$0xf]
    %v2901 = vld [vmem:[#allocation20 + $0x24] sm:$0xff]
    %v2902 = vld [vmem:[#allocation20 + $0x2c] sm:$0xf]
    %v2903 = vld [vmem:[#allocation20 + $0x30] sm:$0xff]
    %v2904 = vld [vmem:[#allocation20 + $0x38] sm:$0xf]
    %v2905 = vld [vmem:[#allocation20 + $0x3c] sm:$0xff]
    %v2906 = vld [vmem:[#allocation20 + $0x44] sm:$0xf]
    %v2907 = vld [vmem:[#allocation20 + $0x48] sm:$0xff]
    %v2908 = vld [vmem:[#allocation20 + $0x50] sm:$0xf]
    %v2909 = vld [vmem:[#allocation20 + $0x54] sm:$0xff]
    %v2910 = vld [vmem:[#allocation20 + $0x5c] sm:$0xf]
    %v2911 = vld [vmem:[#allocation20 + $0x60] sm:$0xff]
    %v2912 = vld [vmem:[#allocation20 + $0x68] sm:$0xf]
    %v2913 = vld [vmem:[#allocation20 + $0x6c] sm:$0xff]
    %v2914 = vld [vmem:[#allocation20 + $0x74] sm:$0xf]
    %v2915 = vld [vmem:[#allocation20 + $0x78] sm:$0xff]
    %v2916 = vld [vmem:[#allocation20 + $0x80] sm:$0xf]
    %v2917 = vld [vmem:[#allocation20 + $0x84] sm:$0xff]
    %v2918 = vld [vmem:[#allocation20 + $0x8c] sm:$0xf]
    %v2919 = vld [vmem:[#allocation20 + $0x90] sm:$0xff]
    %v2920 = vld [vmem:[#allocation20 + $0x98] sm:$0xf]
    %v2921 = vld [vmem:[#allocation20 + $0x9c] sm:$0xff]
    %v2922 = vld [vmem:[#allocation20 + $0xa4] sm:$0xf]
    %v2923 = vld [vmem:[#allocation20 + $0xa8] sm:$0xff]
    %v2924 = vld [vmem:[#allocation20 + $0xb0] sm:$0xf]
    %v2925 = vld [vmem:[#allocation20 + $0xb4] sm:$0xff]
    %v2926 = vld [vmem:[#allocation20 + $0xbc] sm:$0xf]
    %v2927 = vld [vmem:[%s16] sm:$0x7]
    %v2929 = vperm.slane %v2927, 0
    %v2930 = vperm.slane %v2927, 1
    %v2931 = vperm.slane %v2927, 2
    %v2967 = vunpack.c.l.b16 %v2895
    %v2968 = vunpack.c.h.b16 %v2895
    %v2969 = vunpack.c.l.b16 %v2896
    %v2970 = vunpack.c.l.b16 %v2897
    %v2971 = vunpack.c.h.b16 %v2897
    %v2972 = vunpack.c.l.b16 %v2898
    %v2973 = vunpack.c.l.b16 %v2899
    %v2974 = vunpack.c.h.b16 %v2899
    %v2975 = vunpack.c.l.b16 %v2900
    %v2976 = vunpack.c.l.b16 %v2901
    %v2977 = vunpack.c.h.b16 %v2901
    %v2978 = vunpack.c.l.b16 %v2902
    %v2979 = vunpack.c.l.b16 %v2903
    %v2980 = vunpack.c.h.b16 %v2903
    %v2981 = vunpack.c.l.b16 %v2904
    %v2982 = vunpack.c.l.b16 %v2905
    %v2983 = vunpack.c.h.b16 %v2905
    %v2984 = vunpack.c.l.b16 %v2906
    %v2985 = vunpack.c.l.b16 %v2907
    %v2986 = vunpack.c.h.b16 %v2907
    %v2987 = vunpack.c.l.b16 %v2908
    %v2988 = vunpack.c.l.b16 %v2909
    %v2989 = vunpack.c.h.b16 %v2909
    %v2990 = vunpack.c.l.b16 %v2910
    %v2991 = vunpack.c.l.b16 %v2911
    %v2992 = vunpack.c.h.b16 %v2911
    %v2993 = vunpack.c.l.b16 %v2912
    %v2994 = vunpack.c.l.b16 %v2913
    %v2995 = vunpack.c.h.b16 %v2913
    %v2996 = vunpack.c.l.b16 %v2914
    %v2997 = vunpack.c.l.b16 %v2915
    %v2998 = vunpack.c.h.b16 %v2915
    %v2999 = vunpack.c.l.b16 %v2916
    %v3000 = vunpack.c.l.b16 %v2917
    %v3001 = vunpack.c.h.b16 %v2917
    %v3002 = vunpack.c.l.b16 %v2918
    %v3003 = vunpack.c.l.b16 %v2919
    %v3004 = vunpack.c.h.b16 %v2919
    %v3005 = vunpack.c.l.b16 %v2920
    %v3006 = vunpack.c.l.b16 %v2921
    %v3007 = vunpack.c.h.b16 %v2921
    %v3008 = vunpack.c.l.b16 %v2922
    %v3009 = vunpack.c.l.b16 %v2923
    %v3010 = vunpack.c.h.b16 %v2923
    %v3011 = vunpack.c.l.b16 %v2924
    %v3012 = vunpack.c.l.b16 %v2925
    %v3013 = vunpack.c.h.b16 %v2925
    %v3014 = vunpack.c.l.b16 %v2926
    %v3015 = vpack.c.b16 %v2970, %v2967
    %v3016 = vpack.c.b16 %v2971, %v2968
    %v3017 = vpack.c.b16 %v2972, %v2969
    %v3018 = vpack.c.b16 %v2976, %v2973
    %v3019 = vpack.c.b16 %v2977, %v2974
    %v3020 = vpack.c.b16 %v2978, %v2975
    %v3021 = vpack.c.b16 %v2982, %v2979
    %v3022 = vpack.c.b16 %v2983, %v2980
    %v3023 = vpack.c.b16 %v2984, %v2981
    %v3024 = vpack.c.b16 %v2988, %v2985
    %v3025 = vpack.c.b16 %v2989, %v2986
    %v3026 = vpack.c.b16 %v2990, %v2987
    %v3027 = vpack.c.b16 %v2994, %v2991
    %v3028 = vpack.c.b16 %v2995, %v2992
    %v3029 = vpack.c.b16 %v2996, %v2993
    %v3030 = vpack.c.b16 %v3000, %v2997
    %v3031 = vpack.c.b16 %v3001, %v2998
    %v3032 = vpack.c.b16 %v3002, %v2999
    %v3033 = vpack.c.b16 %v3006, %v3003
    %v3034 = vpack.c.b16 %v3007, %v3004
    %v3035 = vpack.c.b16 %v3008, %v3005
    %v3036 = vpack.c.b16 %v3012, %v3009
    %v3037 = vpack.c.b16 %v3013, %v3010
    %v3038 = vpack.c.b16 %v3014, %v3011
    %3063 = vmatpush.bf16.msra.mxu0 %v3036
    %3064 = vmatpush.bf16.msra.mxu0 %v3033
    %3065 = vmatpush.bf16.msra.mxu0 %v3030
    %3066 = vmatpush.bf16.msra.mxu0 %v3027
    %3067 = vmatpush.bf16.msra.mxu0 %v3024
    %3068 = vmatpush.bf16.msra.mxu0 %v3021
    %3069 = vmatpush.bf16.msra.mxu0 %v3018
    %3070 = vmatpush.bf16.msra.mxu0 %v3015
    %3071 = vmatmul.bf16.gmra.mxu0 %v2893
    %v3072 = vpop.f32.mrf.mxu0
    %v3073 = vadd.f32 %v2929, %v3072
    %v3074 = vpop.f32.mrf.mxu0
    %v3075 = vadd.f32 %v2929, %v3074
    %3076 = vmatmul.bf16.gmra.mxu0 %v2894
    %v3077 = vpop.f32.mrf.mxu0
    %v3078 = vadd.f32 %v2929, %v3077
    %v3079 = vpop.f32.mrf.mxu0
    %v3080 = vadd.f32 %v2929, %v3079
    %3081 = vdwg.mxu0
    %3082 = vmatpush.bf16.msra.mxu0 %v3037
    %3083 = vmatpush.bf16.msra.mxu0 %v3034
    %3084 = vmatpush.bf16.msra.mxu0 %v3031
    %3085 = vmatpush.bf16.msra.mxu0 %v3028
    %3086 = vmatpush.bf16.msra.mxu0 %v3025
    %3087 = vmatpush.bf16.msra.mxu0 %v3022
    %3088 = vmatpush.bf16.msra.mxu0 %v3019
    %3089 = vmatpush.bf16.msra.mxu0 %v3016
    %3090 = vmatmul.bf16.gmra.mxu0 %v2893
    %v3091 = vpop.f32.mrf.mxu0
    %v3092 = vadd.f32 %v2930, %v3091
    %v3093 = vpop.f32.mrf.mxu0
    %v3094 = vadd.f32 %v2930, %v3093
    %3095 = vmatmul.bf16.gmra.mxu0 %v2894
    %v3096 = vpop.f32.mrf.mxu0
    %v3097 = vadd.f32 %v2930, %v3096
    %v3098 = vpop.f32.mrf.mxu0
    %v3099 = vadd.f32 %v2930, %v3098
    %3100 = vdwg.mxu0
    %3101 = vmatpush.bf16.msra.mxu0 %v3038
    %3102 = vmatpush.bf16.msra.mxu0 %v3035
    %3103 = vmatpush.bf16.msra.mxu0 %v3032
    %3104 = vmatpush.bf16.msra.mxu0 %v3029
    %3105 = vmatpush.bf16.msra.mxu0 %v3026
    %3106 = vmatpush.bf16.msra.mxu0 %v3023
    %3107 = vmatpush.bf16.msra.mxu0 %v3020
    %3108 = vmatpush.bf16.msra.mxu0 %v3017
    %3109 = vmatmul.bf16.gmra.mxu0 %v2893
    %v3110 = vpop.f32.mrf.mxu0
    %v3111 = vadd.f32 %v2931, %v3110
    %v3112 = vpop.f32.mrf.mxu0
    %v3113 = vadd.f32 %v2931, %v3112
    %3114 = vmatmul.bf16.gmra.mxu0 %v2894
    %v3115 = vpop.f32.mrf.mxu0
    %v3116 = vadd.f32 %v2931, %v3115
    %v3117 = vpop.f32.mrf.mxu0
    %v3118 = vadd.f32 %v2931, %v3117
    %3119 = vdwg.mxu0
    %3120 = vst [vmem:[#allocation23] sm:$0xff] %v3073
    %3121 = vst [vmem:[#allocation23 + $0x8] sm:$0xff] %v3092
    %3122 = vst [vmem:[#allocation23 + $0x10] sm:$0xff] %v3111
    %3123 = vst [vmem:[#allocation23 + $0x18] sm:$0xff] %v3075
    %3124 = vst [vmem:[#allocation23 + $0x20] sm:$0xff] %v3094
    %3125 = vst [vmem:[#allocation23 + $0x28] sm:$0xff] %v3113
    %3126 = vst [vmem:[#allocation23 + $0x30] sm:$0xff] %v3078
    %3127 = vst [vmem:[#allocation23 + $0x38] sm:$0xff] %v3097
    %3128 = vst [vmem:[#allocation23 + $0x40] sm:$0xff] %v3116
    %3129 = vst [vmem:[#allocation23 + $0x48] sm:$0xff] %v3080
    %3130 = vst [vmem:[#allocation23 + $0x50] sm:$0xff] %v3099
    %3131 = vst [vmem:[#allocation23 + $0x58] sm:$0xff] %v3118
    // Predicated region
    $region118: #{tpu_custom_call.1} parent=1 // pred_check
      _
    $region119: #{tpu_custom_call.1} parent=1 // pred_check_branch
      %3133 = sbr.rel (0) target = $region121
    $region120: #{tpu_custom_call.1} parent=1 // pred_region
      %3135 = vsyncadd [#allocation4], 0
      %s3136 = sshll.u32 [#allocation22], 4
      %s3137 = int_to_ptr.vmem [resolvable:$true] %s3136
      %s3138 = sshll.u32 %s17, 4
      %s3139 = int_to_ptr.hbm [resolvable:$true] %s3138
      %3144 = dma.vmem_to_hbm [thread:$0]  %s3137, 512, %s3139, [#allocation4], 128, 128, 8
    $region121: #{tpu_custom_call.1} parent=1 // pred_fallthru
      _
    // Predicated region
    $region122: #{tpu_custom_call.1} parent=1 // pred_check
      _
    $region123: #{tpu_custom_call.1} parent=1 // pred_check_branch
      %3146 = sbr.rel (0) target = $region125
    $region124: #{tpu_custom_call.1} parent=1 // pred_region
      %3148 = vsyncadd [#allocation24], 0
      %s3149 = sshll.u32 [#allocation23], 4
      %s3150 = int_to_ptr.vmem [resolvable:$true] %s3149
      %s3151 = sshll.u32 %s18, 4
      %s3152 = int_to_ptr.hbm [resolvable:$true] %s3151
      %3157 = dma.vmem_to_hbm [thread:$0]  %s3150, 1536, %s3152, [#allocation24], 384, 384, 24
    $region125: #{tpu_custom_call.1} parent=1 // pred_fallthru
      _
    // Predicated region
    $region126: #{tpu_custom_call.1} parent=1 // pred_check
      _
    $region127: #{tpu_custom_call.1} parent=1 // pred_check_branch
      %3159 = sbr.rel (0) target = $region129
    $region128: #{tpu_custom_call.1} parent=1 // pred_region
      %3161 = dma.done [#allocation4], 512
    $region129: #{tpu_custom_call.1} parent=1 // pred_fallthru
      _
    // Predicated region
    $region130: #{tpu_custom_call.1} parent=1 // pred_check
      _
    $region131: #{tpu_custom_call.1} parent=1 // pred_check_branch
      %3163 = sbr.rel (0) target = $region133
    $region132: #{tpu_custom_call.1} parent=1 // pred_region
      %3165 = dma.done [#allocation24], 1536
    $region133: #{tpu_custom_call.1} parent=1 // pred_fallthru
      _
    %3166 = vsyncpa [#allocation3], 1
    %3167 = vsyncpa [#allocation6], 1
    %3168 = vsyncpa [#allocation9], 1
    %3169 = vsyncpa [#allocation12], 1
    %3170 = vsyncpa [#allocation15], 1
    %3171 = vsyncpa [#allocation18], 1
    %3172 = vsyncpa [#allocation21], 1
    %3173 = vsyncpa [#allocation4], 1
    %3174 = vsyncpa [#allocation24], 1

</llo_original>
